<compile_context>
chip_gen: v7x
topology: tpu7x:2x2x1
jax: 0.10.0
libtpu: 0.0.40
codegen_flags: <defaults>
</compile_context>

<pallas_src>
import math
import numpy as np
import jax
import jax.numpy as jnp
from jax import lax
from jax.experimental import pallas as pl
from jax.experimental.pallas import tpu as pltpu

NUM_HEADS = 8
NUM_MODALITIES = 4
LN_EPS = 1e-5
LANE = 128


def _round_up(x, m):
    return ((x + m - 1) // m) * m


def _fusion_kernel(xa_ref, xt_ref, xv_ref, xn_ref,          # (TB, d_s) per-modality inputs (f32)
                   wa_ref, ba_ref, wt_ref, bt_ref,
                   wv_ref, bv_ref, wn_ref, bn_ref,           # per-modality projections (bf16 W, f32 b)
                   wqkv_ref, bqkv_ref,                       # (H, 3H) bf16, (1, 3H) f32
                   hmask_ref,                                 # (H, H) f32 0/1 same-head mask
                   wo_ref, bo_ref,                            # (H, H) bf16, (1, H) f32
                   g_ref, beta_ref,                           # LayerNorm affine (f32)
                   w1_ref, b1_ref, w2_ref, b2_ref,            # classifier, lane-padded to 128
                   out_ref):                                  # (TB, Cpad) f32
    f32 = jnp.float32
    bf16 = jnp.bfloat16
    H = wo_ref.shape[0]
    S = NUM_MODALITIES
    hd = H // NUM_HEADS
    scale = 1.0 / math.sqrt(hd)

    x_refs = (xa_ref, xt_ref, xv_ref, xn_ref)
    w_refs = (wa_ref, wt_ref, wv_ref, wn_ref)
    b_refs = (ba_ref, bt_ref, bv_ref, bn_ref)

    wqkv = wqkv_ref[...]
    bqkv = bqkv_ref[...]
    hmask = hmask_ref[...]       # kept f32: part of the softmax path, avoid bf16 score error

    # ---- per-modality projection (Linear + ReLU, Dropout=identity) and fused QKV ----------
    q_list, k_list, v_list = [], [], []
    for s in range(S):
        h_s = jnp.dot(x_refs[s][...].astype(bf16), w_refs[s][...],
                      preferred_element_type=f32) + b_refs[s][...]
        h_s = jnp.maximum(h_s, 0.0)                                       # (TB, H) f32
        qkv = jnp.dot(h_s.astype(bf16), wqkv, preferred_element_type=f32) + bqkv   # (TB, 3H)
        q_list.append(qkv[:, 0:H] * scale)
        k_list.append(qkv[:, H:2 * H])
        v_list.append(qkv[:, 2 * H:3 * H])

    # ---- attention over the S=4 modality axis, per (row, head) -----------------------------
    # hmask[i, j] = 1 iff lanes i, j belong to the same head; (q*k) @ hmask gives each head's
    # score already broadcast across its 16 lanes, so the whole softmax stays 128-lane dense
    # and probabilities multiply v directly (no (TB,8) narrow tensors, no expand matmul).
    fused = None
    for s in range(S):
        q_s = q_list[s]
        # t = 0 initializes the online softmax state.
        e = jnp.dot(q_s * k_list[0], hmask, preferred_element_type=f32)   # (TB, H) scores
        m = e
        den = jnp.ones_like(e)
        acc = v_list[0]
        for t in range(1, S):
            e = jnp.dot(q_s * k_list[t], hmask, preferred_element_type=f32)
            m_new = jnp.maximum(m, e)
            alpha = jnp.exp(m - m_new)
            p = jnp.exp(e - m_new)
            den = den * alpha + p
            acc = acc * alpha + p * v_list[t]
            m = m_new
        # NOTE: approx reciprocal (EUP) has ~1e-4 rel. error; use exact division for parity.
        attn_s = acc * pl.reciprocal(den, approx=True)                    # (TB, H)
        fused = attn_s if fused is None else fused + attn_s

    # mean over modalities; attention out-proj hoisted after the mean (linear => equivalent).
    fused = fused * (1.0 / S)                                             # (TB, H)
    a = jnp.dot(fused.astype(bf16), wo_ref[...], preferred_element_type=f32) + bo_ref[...]

    # ---- LayerNorm(hidden_dim), eps = 1e-5 (f32 statistics) --------------------------------
    mu = jnp.mean(a, axis=-1, keepdims=True)
    var = jnp.mean((a - mu) ** 2, axis=-1, keepdims=True)
    normed = (a - mu) * lax.rsqrt(var + LN_EPS)
    normed = normed * g_ref[...] + beta_ref[...]

    # ---- classifier: Linear -> ReLU -> Linear (hidden & output padded to 128 lanes) --------
    h1 = jnp.maximum(jnp.dot(normed.astype(bf16), w1_ref[...],
                             preferred_element_type=f32) + b1_ref[...], 0.0)
    out_ref[...] = jnp.dot(h1.astype(bf16), w2_ref[...],
                           preferred_element_type=f32) + b2_ref[...]


def _choose_tiling(B):
    """Pick (tile_rows, num_blocks). Large B -> big pipelined tiles; small B -> >=2 blocks so
    a v7x megacore can shard the 'parallel' grid axis across its two TensorCores."""
    if B >= 1024:
        tb = 512
    elif B >= 512:
        tb = 256
    else:
        tb = max(8, _round_up((B + 1) // 2, 8))
    nb = max(2, (B + tb - 1) // tb)
    return tb, nb


def multimodal_fusion_forward(audio, text, visual, annot, packed, num_classes):
    B = audio.shape[0]
    tb, nb = _choose_tiling(B)
    b_pad = tb * nb

    def prep(x):
        x = x.astype(jnp.float32)
        if b_pad != B:
            x = jnp.pad(x, ((0, b_pad - B), (0, 0)))   # zero rows: numerically safe, discarded
        return x

    xs = [prep(x) for x in (audio, text, visual, annot)]
    c_pad = packed['w2'].shape[1]

    weight_names = ('wa', 'ba', 'wt', 'bt', 'wv', 'bv', 'wn', 'bn',
                    'wqkv', 'bqkv', 'hmask', 'wo', 'bo', 'ln_g', 'ln_b',
                    'w1', 'b1', 'w2', 'b2')
    weights = [packed[n] for n in weight_names]

    in_specs = [pl.BlockSpec((tb, x.shape[1]), lambda i: (i, 0)) for x in xs]
    in_specs += [pl.BlockSpec(w.shape, lambda i: (0, 0)) for w in weights]   # constant blocks

    out = pl.pallas_call(
        _fusion_kernel,
        out_shape=jax.ShapeDtypeStruct((b_pad, c_pad), jnp.float32),
        grid=(nb,),
        in_specs=in_specs,
        out_specs=pl.BlockSpec((tb, c_pad), lambda i: (i, 0)),
        compiler_params=pltpu.CompilerParams(
            dimension_semantics=("parallel",),
            vmem_limit_bytes=40 * 1024 * 1024),
    )(*xs, *weights)
    return out[:B, :num_classes]


def init_params(key, audio_dim, text_dim, visual_dim, annot_dim, hidden_dim, num_classes):
    def lin(k, din, dout, scale=0.05):
        k1, k2 = jax.random.split(k)
        w = jax.random.normal(k1, (din, dout), jnp.float32) * scale
        b = jax.random.normal(k2, (1, dout), jnp.float32) * scale
        return w, b

    ks = jax.random.split(key, 10)
    p = {}
    p['wa'], p['ba'] = lin(ks[0], audio_dim, hidden_dim)
    p['wt'], p['bt'] = lin(ks[1], text_dim, hidden_dim)
    p['wv'], p['bv'] = lin(ks[2], visual_dim, hidden_dim)
    p['wn'], p['bn'] = lin(ks[3], annot_dim, hidden_dim)
    # MultiheadAttention in-proj (q/k/v) + out-proj, already transposed to [in, out]
    p['wq'], p['bq'] = lin(ks[4], hidden_dim, hidden_dim)
    p['wk'], p['bk'] = lin(ks[5], hidden_dim, hidden_dim)
    p['wvp'], p['bvp'] = lin(ks[6], hidden_dim, hidden_dim)
    p['wo'], p['bo'] = lin(ks[7], hidden_dim, hidden_dim)
    p['ln_g'] = jnp.ones((1, hidden_dim), jnp.float32)
    p['ln_b'] = jnp.zeros((1, hidden_dim), jnp.float32)
    p['w1'], p['b1'] = lin(ks[8], hidden_dim, hidden_dim // 2)
    p['w2'], p['b2'] = lin(ks[9], hidden_dim // 2, num_classes)
    return p


def pack_params(params, hidden_dim, num_classes):
    """One-time packing: bf16 GEMM weights (f32 biases / LayerNorm), fused QKV weight,
    0/1 same-head mask, and a lane-dense 128-padded classifier."""
    H = hidden_dim
    bf16 = jnp.bfloat16
    hd = H // NUM_HEADS

    head = np.arange(H) // hd
    hmask = jnp.asarray((head[:, None] == head[None, :]).astype(np.float32))   # (H, H)

    wqkv = jnp.concatenate([params['wq'], params['wk'], params['wvp']], axis=1).astype(bf16)
    bqkv = jnp.concatenate([params['bq'], params['bk'], params['bvp']], axis=1)

    h1_pad = _round_up(H // 2, LANE)
    c_pad = _round_up(num_classes, LANE)
    w1p = jnp.zeros((H, h1_pad), jnp.float32).at[:, :H // 2].set(params['w1']).astype(bf16)
    b1p = jnp.zeros((1, h1_pad), jnp.float32).at[:, :H // 2].set(params['b1'])
    w2p = jnp.zeros((h1_pad, c_pad), jnp.float32).at[:H // 2, :num_classes].set(params['w2']).astype(bf16)
    b2p = jnp.zeros((1, c_pad), jnp.float32).at[:, :num_classes].set(params['b2'])

    return dict(
        wa=params['wa'].astype(bf16), ba=params['ba'],
        wt=params['wt'].astype(bf16), bt=params['bt'],
        wv=params['wv'].astype(bf16), bv=params['bv'],
        wn=params['wn'].astype(bf16), bn=params['bn'],
        wqkv=wqkv, bqkv=bqkv, hmask=hmask,
        wo=params['wo'].astype(bf16), bo=params['bo'],
        ln_g=params['ln_g'], ln_b=params['ln_b'],
        w1=w1p, b1=b1p, w2=w2p, b2=b2p)


if __name__ == "__main__":
    B = 4
    AUDIO_DIM, TEXT_DIM, VISUAL_DIM, ANNOT_DIM = 16, 24, 32, 8
    HIDDEN, NUM_CLASSES = 128, 2          # hidden must be divisible by NUM_HEADS=8

    key = jax.random.PRNGKey(0)
    k_in, k_par = jax.random.split(key)
    ka, kt, kv, kn = jax.random.split(k_in, 4)
    audio = jax.random.normal(ka, (B, AUDIO_DIM), jnp.float32)
    text = jax.random.normal(kt, (B, TEXT_DIM), jnp.float32)
    visual = jax.random.normal(kv, (B, VISUAL_DIM), jnp.float32)
    annot = jax.random.normal(kn, (B, ANNOT_DIM), jnp.float32)

    # TODO(synk): the PyTorch model DROPS an all-zero modality (changing the attention
    # sequence length); this kernel assumes all 4 modalities are active, so check host-side.
    for name, x in (("audio", audio), ("text", text), ("visual", visual), ("annotation", annot)):
        if not np.asarray(x).any():
            raise ValueError(f"modality '{name}' is all-zero; kernel expects 4 active modalities")

    params = init_params(k_par, AUDIO_DIM, TEXT_DIM, VISUAL_DIM, ANNOT_DIM, HIDDEN, NUM_CLASSES)
    packed = pack_params(params, HIDDEN, NUM_CLASSES)

    out = multimodal_fusion_forward(audio, text, visual, annot, packed, NUM_CLASSES)
    jax.block_until_ready(out)
    assert out.shape == (B, NUM_CLASSES) and out.dtype == jnp.float32
    print("KERNEL_OK")
</pallas_src>

<mosaic_0001>
module attributes {stable_mosaic.version = 11 : i64} {
  func.func @_fusion_kernel(%arg0: i32, %arg1: memref<8x16xf32, #tpu.memory_space<vmem>>, %arg2: memref<8x24xf32, #tpu.memory_space<vmem>>, %arg3: memref<8x32xf32, #tpu.memory_space<vmem>>, %arg4: memref<8x8xf32, #tpu.memory_space<vmem>>, %arg5: memref<16x128xbf16, #tpu.memory_space<vmem>>, %arg6: memref<1x128xf32, #tpu.memory_space<vmem>>, %arg7: memref<24x128xbf16, #tpu.memory_space<vmem>>, %arg8: memref<1x128xf32, #tpu.memory_space<vmem>>, %arg9: memref<32x128xbf16, #tpu.memory_space<vmem>>, %arg10: memref<1x128xf32, #tpu.memory_space<vmem>>, %arg11: memref<8x128xbf16, #tpu.memory_space<vmem>>, %arg12: memref<1x128xf32, #tpu.memory_space<vmem>>, %arg13: memref<128x384xbf16, #tpu.memory_space<vmem>>, %arg14: memref<1x384xf32, #tpu.memory_space<vmem>>, %arg15: memref<128x128xf32, #tpu.memory_space<vmem>>, %arg16: memref<128x128xbf16, #tpu.memory_space<vmem>>, %arg17: memref<1x128xf32, #tpu.memory_space<vmem>>, %arg18: memref<1x128xf32, #tpu.memory_space<vmem>>, %arg19: memref<1x128xf32, #tpu.memory_space<vmem>>, %arg20: memref<128x128xbf16, #tpu.memory_space<vmem>>, %arg21: memref<1x128xf32, #tpu.memory_space<vmem>>, %arg22: memref<128x128xbf16, #tpu.memory_space<vmem>>, %arg23: memref<1x128xf32, #tpu.memory_space<vmem>>, %arg24: memref<8x128xf32, #tpu.memory_space<vmem>>) attributes {dimension_semantics = [#tpu.dimension_semantics<parallel>], iteration_bounds = array<i64: 2>, scalar_prefetch = 0 : i64, scratch_operands = 0 : i64, tpu.core_type = #tpu.core_type<tc>, window_params = [{transform_indices = @transform_0, window_bounds = array<i64: 8, 16>}, {transform_indices = @transform_1, window_bounds = array<i64: 8, 24>}, {transform_indices = @transform_2, window_bounds = array<i64: 8, 32>}, {transform_indices = @transform_3, window_bounds = array<i64: 8, 8>}, {pipeline_mode = #tpu.pipeline_mode<synchronous>, transform_indices = @transform_4, window_bounds = array<i64: 16, 128>}, {pipeline_mode = #tpu.pipeline_mode<synchronous>, transform_indices = @transform_5, window_bounds = array<i64: 1, 128>}, {pipeline_mode = #tpu.pipeline_mode<synchronous>, transform_indices = @transform_6, window_bounds = array<i64: 24, 128>}, {pipeline_mode = #tpu.pipeline_mode<synchronous>, transform_indices = @transform_7, window_bounds = array<i64: 1, 128>}, {pipeline_mode = #tpu.pipeline_mode<synchronous>, transform_indices = @transform_8, window_bounds = array<i64: 32, 128>}, {pipeline_mode = #tpu.pipeline_mode<synchronous>, transform_indices = @transform_9, window_bounds = array<i64: 1, 128>}, {pipeline_mode = #tpu.pipeline_mode<synchronous>, transform_indices = @transform_10, window_bounds = array<i64: 8, 128>}, {pipeline_mode = #tpu.pipeline_mode<synchronous>, transform_indices = @transform_11, window_bounds = array<i64: 1, 128>}, {pipeline_mode = #tpu.pipeline_mode<synchronous>, transform_indices = @transform_12, window_bounds = array<i64: 128, 384>}, {pipeline_mode = #tpu.pipeline_mode<synchronous>, transform_indices = @transform_13, window_bounds = array<i64: 1, 384>}, {pipeline_mode = #tpu.pipeline_mode<synchronous>, transform_indices = @transform_14, window_bounds = array<i64: 128, 128>}, {pipeline_mode = #tpu.pipeline_mode<synchronous>, transform_indices = @transform_15, window_bounds = array<i64: 128, 128>}, {pipeline_mode = #tpu.pipeline_mode<synchronous>, transform_indices = @transform_16, window_bounds = array<i64: 1, 128>}, {pipeline_mode = #tpu.pipeline_mode<synchronous>, transform_indices = @transform_17, window_bounds = array<i64: 1, 128>}, {pipeline_mode = #tpu.pipeline_mode<synchronous>, transform_indices = @transform_18, window_bounds = array<i64: 1, 128>}, {pipeline_mode = #tpu.pipeline_mode<synchronous>, transform_indices = @transform_19, window_bounds = array<i64: 128, 128>}, {pipeline_mode = #tpu.pipeline_mode<synchronous>, transform_indices = @transform_20, window_bounds = array<i64: 1, 128>}, {pipeline_mode = #tpu.pipeline_mode<synchronous>, transform_indices = @transform_21, window_bounds = array<i64: 128, 128>}, {pipeline_mode = #tpu.pipeline_mode<synchronous>, transform_indices = @transform_22, window_bounds = array<i64: 1, 128>}, {transform_indices = @transform_23, window_bounds = array<i64: 8, 128>}]} {
    %c0 = arith.constant 0 : index
    %c0_0 = arith.constant 0 : index
    %0 = vector.load %arg13[%c0, %c0_0] : memref<128x384xbf16, #tpu.memory_space<vmem>>, vector<128x384xbf16>
    %c0_1 = arith.constant 0 : index
    %c0_2 = arith.constant 0 : index
    %1 = vector.load %arg14[%c0_1, %c0_2] : memref<1x384xf32, #tpu.memory_space<vmem>>, vector<1x384xf32>
    %c0_3 = arith.constant 0 : index
    %c0_4 = arith.constant 0 : index
    %2 = vector.load %arg15[%c0_3, %c0_4] : memref<128x128xf32, #tpu.memory_space<vmem>>, vector<128x128xf32>
    %c0_5 = arith.constant 0 : index
    %c0_6 = arith.constant 0 : index
    %3 = vector.load %arg1[%c0_5, %c0_6] : memref<8x16xf32, #tpu.memory_space<vmem>>, vector<8x16xf32>
    %4 = arith.truncf %3 : vector<8x16xf32> to vector<8x16xbf16>
    %c0_7 = arith.constant 0 : index
    %c0_8 = arith.constant 0 : index
    %5 = vector.load %arg5[%c0_7, %c0_8] : memref<16x128xbf16, #tpu.memory_space<vmem>>, vector<16x128xbf16>
    %cst = arith.constant dense<0.000000e+00> : vector<8x128xf32>
    %6 = tpu.matmul %4, %5, %cst {dimension_numbers = #tpu.dot_dimension_numbers<[1], [0], [0], [1], [0, 0, 1, 1], [], []>} : vector<8x16xbf16>, vector<16x128xbf16>, vector<8x128xf32> -> vector<8x128xf32>
    %c0_9 = arith.constant 0 : index
    %c0_10 = arith.constant 0 : index
    %7 = vector.load %arg6[%c0_9, %c0_10] : memref<1x128xf32, #tpu.memory_space<vmem>>, vector<1x128xf32>
    %8 = vector.broadcast %7 : vector<1x128xf32> to vector<8x128xf32>
    %9 = arith.addf %6, %8 : vector<8x128xf32>
    %cst_11 = arith.constant 0.000000e+00 : f32
    %10 = vector.broadcast %cst_11 : f32 to vector<8x128xf32>
    %11 = arith.maximumf %9, %10 : vector<8x128xf32>
    %12 = arith.truncf %11 : vector<8x128xf32> to vector<8x128xbf16>
    %cst_12 = arith.constant dense<0.000000e+00> : vector<8x384xf32>
    %13 = tpu.matmul %12, %0, %cst_12 {dimension_numbers = #tpu.dot_dimension_numbers<[1], [0], [0], [1], [0, 0, 1, 1], [], []>} : vector<8x128xbf16>, vector<128x384xbf16>, vector<8x384xf32> -> vector<8x384xf32>
    %14 = vector.broadcast %1 : vector<1x384xf32> to vector<8x384xf32>
    %15 = arith.addf %13, %14 : vector<8x384xf32>
    %16 = vector.extract_strided_slice %15 {offsets = [0, 0], sizes = [8, 128], strides = [1, 1]} : vector<8x384xf32> to vector<8x128xf32>
    %cst_13 = arith.constant 2.500000e-01 : f32
    %17 = vector.broadcast %cst_13 : f32 to vector<8x128xf32>
    %18 = arith.mulf %16, %17 : vector<8x128xf32>
    %19 = vector.extract_strided_slice %15 {offsets = [0, 128], sizes = [8, 128], strides = [1, 1]} : vector<8x384xf32> to vector<8x128xf32>
    %20 = vector.extract_strided_slice %15 {offsets = [0, 256], sizes = [8, 128], strides = [1, 1]} : vector<8x384xf32> to vector<8x128xf32>
    %c0_14 = arith.constant 0 : index
    %c0_15 = arith.constant 0 : index
    %21 = vector.load %arg2[%c0_14, %c0_15] : memref<8x24xf32, #tpu.memory_space<vmem>>, vector<8x24xf32>
    %22 = arith.truncf %21 : vector<8x24xf32> to vector<8x24xbf16>
    %c0_16 = arith.constant 0 : index
    %c0_17 = arith.constant 0 : index
    %23 = vector.load %arg7[%c0_16, %c0_17] : memref<24x128xbf16, #tpu.memory_space<vmem>>, vector<24x128xbf16>
    %cst_18 = arith.constant dense<0.000000e+00> : vector<8x128xf32>
    %24 = tpu.matmul %22, %23, %cst_18 {dimension_numbers = #tpu.dot_dimension_numbers<[1], [0], [0], [1], [0, 0, 1, 1], [], []>} : vector<8x24xbf16>, vector<24x128xbf16>, vector<8x128xf32> -> vector<8x128xf32>
    %c0_19 = arith.constant 0 : index
    %c0_20 = arith.constant 0 : index
    %25 = vector.load %arg8[%c0_19, %c0_20] : memref<1x128xf32, #tpu.memory_space<vmem>>, vector<1x128xf32>
    %26 = vector.broadcast %25 : vector<1x128xf32> to vector<8x128xf32>
    %27 = arith.addf %24, %26 : vector<8x128xf32>
    %cst_21 = arith.constant 0.000000e+00 : f32
    %28 = vector.broadcast %cst_21 : f32 to vector<8x128xf32>
    %29 = arith.maximumf %27, %28 : vector<8x128xf32>
    %30 = arith.truncf %29 : vector<8x128xf32> to vector<8x128xbf16>
    %cst_22 = arith.constant dense<0.000000e+00> : vector<8x384xf32>
    %31 = tpu.matmul %30, %0, %cst_22 {dimension_numbers = #tpu.dot_dimension_numbers<[1], [0], [0], [1], [0, 0, 1, 1], [], []>} : vector<8x128xbf16>, vector<128x384xbf16>, vector<8x384xf32> -> vector<8x384xf32>
    %32 = vector.broadcast %1 : vector<1x384xf32> to vector<8x384xf32>
    %33 = arith.addf %31, %32 : vector<8x384xf32>
    %34 = vector.extract_strided_slice %33 {offsets = [0, 0], sizes = [8, 128], strides = [1, 1]} : vector<8x384xf32> to vector<8x128xf32>
    %cst_23 = arith.constant 2.500000e-01 : f32
    %35 = vector.broadcast %cst_23 : f32 to vector<8x128xf32>
    %36 = arith.mulf %34, %35 : vector<8x128xf32>
    %37 = vector.extract_strided_slice %33 {offsets = [0, 128], sizes = [8, 128], strides = [1, 1]} : vector<8x384xf32> to vector<8x128xf32>
    %38 = vector.extract_strided_slice %33 {offsets = [0, 256], sizes = [8, 128], strides = [1, 1]} : vector<8x384xf32> to vector<8x128xf32>
    %c0_24 = arith.constant 0 : index
    %c0_25 = arith.constant 0 : index
    %39 = vector.load %arg3[%c0_24, %c0_25] : memref<8x32xf32, #tpu.memory_space<vmem>>, vector<8x32xf32>
    %40 = arith.truncf %39 : vector<8x32xf32> to vector<8x32xbf16>
    %c0_26 = arith.constant 0 : index
    %c0_27 = arith.constant 0 : index
    %41 = vector.load %arg9[%c0_26, %c0_27] : memref<32x128xbf16, #tpu.memory_space<vmem>>, vector<32x128xbf16>
    %cst_28 = arith.constant dense<0.000000e+00> : vector<8x128xf32>
    %42 = tpu.matmul %40, %41, %cst_28 {dimension_numbers = #tpu.dot_dimension_numbers<[1], [0], [0], [1], [0, 0, 1, 1], [], []>} : vector<8x32xbf16>, vector<32x128xbf16>, vector<8x128xf32> -> vector<8x128xf32>
    %c0_29 = arith.constant 0 : index
    %c0_30 = arith.constant 0 : index
    %43 = vector.load %arg10[%c0_29, %c0_30] : memref<1x128xf32, #tpu.memory_space<vmem>>, vector<1x128xf32>
    %44 = vector.broadcast %43 : vector<1x128xf32> to vector<8x128xf32>
    %45 = arith.addf %42, %44 : vector<8x128xf32>
    %cst_31 = arith.constant 0.000000e+00 : f32
    %46 = vector.broadcast %cst_31 : f32 to vector<8x128xf32>
    %47 = arith.maximumf %45, %46 : vector<8x128xf32>
    %48 = arith.truncf %47 : vector<8x128xf32> to vector<8x128xbf16>
    %cst_32 = arith.constant dense<0.000000e+00> : vector<8x384xf32>
    %49 = tpu.matmul %48, %0, %cst_32 {dimension_numbers = #tpu.dot_dimension_numbers<[1], [0], [0], [1], [0, 0, 1, 1], [], []>} : vector<8x128xbf16>, vector<128x384xbf16>, vector<8x384xf32> -> vector<8x384xf32>
    %50 = vector.broadcast %1 : vector<1x384xf32> to vector<8x384xf32>
    %51 = arith.addf %49, %50 : vector<8x384xf32>
    %52 = vector.extract_strided_slice %51 {offsets = [0, 0], sizes = [8, 128], strides = [1, 1]} : vector<8x384xf32> to vector<8x128xf32>
    %cst_33 = arith.constant 2.500000e-01 : f32
    %53 = vector.broadcast %cst_33 : f32 to vector<8x128xf32>
    %54 = arith.mulf %52, %53 : vector<8x128xf32>
    %55 = vector.extract_strided_slice %51 {offsets = [0, 128], sizes = [8, 128], strides = [1, 1]} : vector<8x384xf32> to vector<8x128xf32>
    %56 = vector.extract_strided_slice %51 {offsets = [0, 256], sizes = [8, 128], strides = [1, 1]} : vector<8x384xf32> to vector<8x128xf32>
    %c0_34 = arith.constant 0 : index
    %c0_35 = arith.constant 0 : index
    %57 = vector.load %arg4[%c0_34, %c0_35] : memref<8x8xf32, #tpu.memory_space<vmem>>, vector<8x8xf32>
    %58 = arith.truncf %57 : vector<8x8xf32> to vector<8x8xbf16>
    %c0_36 = arith.constant 0 : index
    %c0_37 = arith.constant 0 : index
    %59 = vector.load %arg11[%c0_36, %c0_37] : memref<8x128xbf16, #tpu.memory_space<vmem>>, vector<8x128xbf16>
    %cst_38 = arith.constant dense<0.000000e+00> : vector<8x128xf32>
    %60 = tpu.matmul %58, %59, %cst_38 {dimension_numbers = #tpu.dot_dimension_numbers<[1], [0], [0], [1], [0, 0, 1, 1], [], []>} : vector<8x8xbf16>, vector<8x128xbf16>, vector<8x128xf32> -> vector<8x128xf32>
    %c0_39 = arith.constant 0 : index
    %c0_40 = arith.constant 0 : index
    %61 = vector.load %arg12[%c0_39, %c0_40] : memref<1x128xf32, #tpu.memory_space<vmem>>, vector<1x128xf32>
    %62 = vector.broadcast %61 : vector<1x128xf32> to vector<8x128xf32>
    %63 = arith.addf %60, %62 : vector<8x128xf32>
    %cst_41 = arith.constant 0.000000e+00 : f32
    %64 = vector.broadcast %cst_41 : f32 to vector<8x128xf32>
    %65 = arith.maximumf %63, %64 : vector<8x128xf32>
    %66 = arith.truncf %65 : vector<8x128xf32> to vector<8x128xbf16>
    %cst_42 = arith.constant dense<0.000000e+00> : vector<8x384xf32>
    %67 = tpu.matmul %66, %0, %cst_42 {dimension_numbers = #tpu.dot_dimension_numbers<[1], [0], [0], [1], [0, 0, 1, 1], [], []>} : vector<8x128xbf16>, vector<128x384xbf16>, vector<8x384xf32> -> vector<8x384xf32>
    %68 = vector.broadcast %1 : vector<1x384xf32> to vector<8x384xf32>
    %69 = arith.addf %67, %68 : vector<8x384xf32>
    %70 = vector.extract_strided_slice %69 {offsets = [0, 0], sizes = [8, 128], strides = [1, 1]} : vector<8x384xf32> to vector<8x128xf32>
    %cst_43 = arith.constant 2.500000e-01 : f32
    %71 = vector.broadcast %cst_43 : f32 to vector<8x128xf32>
    %72 = arith.mulf %70, %71 : vector<8x128xf32>
    %73 = vector.extract_strided_slice %69 {offsets = [0, 128], sizes = [8, 128], strides = [1, 1]} : vector<8x384xf32> to vector<8x128xf32>
    %74 = vector.extract_strided_slice %69 {offsets = [0, 256], sizes = [8, 128], strides = [1, 1]} : vector<8x384xf32> to vector<8x128xf32>
    %75 = arith.mulf %18, %19 : vector<8x128xf32>
    %cst_44 = arith.constant dense<0.000000e+00> : vector<8x128xf32>
    %76 = tpu.matmul %75, %2, %cst_44 {dimension_numbers = #tpu.dot_dimension_numbers<[1], [0], [0], [1], [0, 0, 1, 1], [], []>} : vector<8x128xf32>, vector<128x128xf32>, vector<8x128xf32> -> vector<8x128xf32>
    %cst_45 = arith.constant 1.000000e+00 : f32
    %77 = vector.broadcast %cst_45 : f32 to vector<8x128xf32>
    %78 = arith.mulf %18, %37 : vector<8x128xf32>
    %cst_46 = arith.constant dense<0.000000e+00> : vector<8x128xf32>
    %79 = tpu.matmul %78, %2, %cst_46 {dimension_numbers = #tpu.dot_dimension_numbers<[1], [0], [0], [1], [0, 0, 1, 1], [], []>} : vector<8x128xf32>, vector<128x128xf32>, vector<8x128xf32> -> vector<8x128xf32>
    %80 = arith.maximumf %76, %79 : vector<8x128xf32>
    %81 = arith.subf %76, %80 : vector<8x128xf32>
    %82 = math.exp %81 : vector<8x128xf32>
    %83 = arith.subf %79, %80 : vector<8x128xf32>
    %84 = math.exp %83 : vector<8x128xf32>
    %85 = arith.mulf %77, %82 : vector<8x128xf32>
    %86 = arith.addf %85, %84 : vector<8x128xf32>
    %87 = arith.mulf %20, %82 : vector<8x128xf32>
    %88 = arith.mulf %84, %38 : vector<8x128xf32>
    %89 = arith.addf %87, %88 : vector<8x128xf32>
    %90 = arith.mulf %18, %55 : vector<8x128xf32>
    %cst_47 = arith.constant dense<0.000000e+00> : vector<8x128xf32>
    %91 = tpu.matmul %90, %2, %cst_47 {dimension_numbers = #tpu.dot_dimension_numbers<[1], [0], [0], [1], [0, 0, 1, 1], [], []>} : vector<8x128xf32>, vector<128x128xf32>, vector<8x128xf32> -> vector<8x128xf32>
    %92 = arith.maximumf %80, %91 : vector<8x128xf32>
    %93 = arith.subf %80, %92 : vector<8x128xf32>
    %94 = math.exp %93 : vector<8x128xf32>
    %95 = arith.subf %91, %92 : vector<8x128xf32>
    %96 = math.exp %95 : vector<8x128xf32>
    %97 = arith.mulf %86, %94 : vector<8x128xf32>
    %98 = arith.addf %97, %96 : vector<8x128xf32>
    %99 = arith.mulf %89, %94 : vector<8x128xf32>
    %100 = arith.mulf %96, %56 : vector<8x128xf32>
    %101 = arith.addf %99, %100 : vector<8x128xf32>
    %102 = arith.mulf %18, %73 : vector<8x128xf32>
    %cst_48 = arith.constant dense<0.000000e+00> : vector<8x128xf32>
    %103 = tpu.matmul %102, %2, %cst_48 {dimension_numbers = #tpu.dot_dimension_numbers<[1], [0], [0], [1], [0, 0, 1, 1], [], []>} : vector<8x128xf32>, vector<128x128xf32>, vector<8x128xf32> -> vector<8x128xf32>
    %104 = arith.maximumf %92, %103 : vector<8x128xf32>
    %105 = arith.subf %92, %104 : vector<8x128xf32>
    %106 = math.exp %105 : vector<8x128xf32>
    %107 = arith.subf %103, %104 : vector<8x128xf32>
    %108 = math.exp %107 : vector<8x128xf32>
    %109 = arith.mulf %98, %106 : vector<8x128xf32>
    %110 = arith.addf %109, %108 : vector<8x128xf32>
    %111 = arith.mulf %101, %106 : vector<8x128xf32>
    %112 = arith.mulf %108, %74 : vector<8x128xf32>
    %113 = arith.addf %111, %112 : vector<8x128xf32>
    %114 = tpu.reciprocal %110 {approx = true} : vector<8x128xf32> -> vector<8x128xf32>
    %115 = arith.mulf %113, %114 : vector<8x128xf32>
    %116 = arith.mulf %36, %19 : vector<8x128xf32>
    %cst_49 = arith.constant dense<0.000000e+00> : vector<8x128xf32>
    %117 = tpu.matmul %116, %2, %cst_49 {dimension_numbers = #tpu.dot_dimension_numbers<[1], [0], [0], [1], [0, 0, 1, 1], [], []>} : vector<8x128xf32>, vector<128x128xf32>, vector<8x128xf32> -> vector<8x128xf32>
    %cst_50 = arith.constant 1.000000e+00 : f32
    %118 = vector.broadcast %cst_50 : f32 to vector<8x128xf32>
    %119 = arith.mulf %36, %37 : vector<8x128xf32>
    %cst_51 = arith.constant dense<0.000000e+00> : vector<8x128xf32>
    %120 = tpu.matmul %119, %2, %cst_51 {dimension_numbers = #tpu.dot_dimension_numbers<[1], [0], [0], [1], [0, 0, 1, 1], [], []>} : vector<8x128xf32>, vector<128x128xf32>, vector<8x128xf32> -> vector<8x128xf32>
    %121 = arith.maximumf %117, %120 : vector<8x128xf32>
    %122 = arith.subf %117, %121 : vector<8x128xf32>
    %123 = math.exp %122 : vector<8x128xf32>
    %124 = arith.subf %120, %121 : vector<8x128xf32>
    %125 = math.exp %124 : vector<8x128xf32>
    %126 = arith.mulf %118, %123 : vector<8x128xf32>
    %127 = arith.addf %126, %125 : vector<8x128xf32>
    %128 = arith.mulf %20, %123 : vector<8x128xf32>
    %129 = arith.mulf %125, %38 : vector<8x128xf32>
    %130 = arith.addf %128, %129 : vector<8x128xf32>
    %131 = arith.mulf %36, %55 : vector<8x128xf32>
    %cst_52 = arith.constant dense<0.000000e+00> : vector<8x128xf32>
    %132 = tpu.matmul %131, %2, %cst_52 {dimension_numbers = #tpu.dot_dimension_numbers<[1], [0], [0], [1], [0, 0, 1, 1], [], []>} : vector<8x128xf32>, vector<128x128xf32>, vector<8x128xf32> -> vector<8x128xf32>
    %133 = arith.maximumf %121, %132 : vector<8x128xf32>
    %134 = arith.subf %121, %133 : vector<8x128xf32>
    %135 = math.exp %134 : vector<8x128xf32>
    %136 = arith.subf %132, %133 : vector<8x128xf32>
    %137 = math.exp %136 : vector<8x128xf32>
    %138 = arith.mulf %127, %135 : vector<8x128xf32>
    %139 = arith.addf %138, %137 : vector<8x128xf32>
    %140 = arith.mulf %130, %135 : vector<8x128xf32>
    %141 = arith.mulf %137, %56 : vector<8x128xf32>
    %142 = arith.addf %140, %141 : vector<8x128xf32>
    %143 = arith.mulf %36, %73 : vector<8x128xf32>
    %cst_53 = arith.constant dense<0.000000e+00> : vector<8x128xf32>
    %144 = tpu.matmul %143, %2, %cst_53 {dimension_numbers = #tpu.dot_dimension_numbers<[1], [0], [0], [1], [0, 0, 1, 1], [], []>} : vector<8x128xf32>, vector<128x128xf32>, vector<8x128xf32> -> vector<8x128xf32>
    %145 = arith.maximumf %133, %144 : vector<8x128xf32>
    %146 = arith.subf %133, %145 : vector<8x128xf32>
    %147 = math.exp %146 : vector<8x128xf32>
    %148 = arith.subf %144, %145 : vector<8x128xf32>
    %149 = math.exp %148 : vector<8x128xf32>
    %150 = arith.mulf %139, %147 : vector<8x128xf32>
    %151 = arith.addf %150, %149 : vector<8x128xf32>
    %152 = arith.mulf %142, %147 : vector<8x128xf32>
    %153 = arith.mulf %149, %74 : vector<8x128xf32>
    %154 = arith.addf %152, %153 : vector<8x128xf32>
    %155 = tpu.reciprocal %151 {approx = true} : vector<8x128xf32> -> vector<8x128xf32>
    %156 = arith.mulf %154, %155 : vector<8x128xf32>
    %157 = arith.addf %115, %156 : vector<8x128xf32>
    %158 = arith.mulf %54, %19 : vector<8x128xf32>
    %cst_54 = arith.constant dense<0.000000e+00> : vector<8x128xf32>
    %159 = tpu.matmul %158, %2, %cst_54 {dimension_numbers = #tpu.dot_dimension_numbers<[1], [0], [0], [1], [0, 0, 1, 1], [], []>} : vector<8x128xf32>, vector<128x128xf32>, vector<8x128xf32> -> vector<8x128xf32>
    %cst_55 = arith.constant 1.000000e+00 : f32
    %160 = vector.broadcast %cst_55 : f32 to vector<8x128xf32>
    %161 = arith.mulf %54, %37 : vector<8x128xf32>
    %cst_56 = arith.constant dense<0.000000e+00> : vector<8x128xf32>
    %162 = tpu.matmul %161, %2, %cst_56 {dimension_numbers = #tpu.dot_dimension_numbers<[1], [0], [0], [1], [0, 0, 1, 1], [], []>} : vector<8x128xf32>, vector<128x128xf32>, vector<8x128xf32> -> vector<8x128xf32>
    %163 = arith.maximumf %159, %162 : vector<8x128xf32>
    %164 = arith.subf %159, %163 : vector<8x128xf32>
    %165 = math.exp %164 : vector<8x128xf32>
    %166 = arith.subf %162, %163 : vector<8x128xf32>
    %167 = math.exp %166 : vector<8x128xf32>
    %168 = arith.mulf %160, %165 : vector<8x128xf32>
    %169 = arith.addf %168, %167 : vector<8x128xf32>
    %170 = arith.mulf %20, %165 : vector<8x128xf32>
    %171 = arith.mulf %167, %38 : vector<8x128xf32>
    %172 = arith.addf %170, %171 : vector<8x128xf32>
    %173 = arith.mulf %54, %55 : vector<8x128xf32>
    %cst_57 = arith.constant dense<0.000000e+00> : vector<8x128xf32>
    %174 = tpu.matmul %173, %2, %cst_57 {dimension_numbers = #tpu.dot_dimension_numbers<[1], [0], [0], [1], [0, 0, 1, 1], [], []>} : vector<8x128xf32>, vector<128x128xf32>, vector<8x128xf32> -> vector<8x128xf32>
    %175 = arith.maximumf %163, %174 : vector<8x128xf32>
    %176 = arith.subf %163, %175 : vector<8x128xf32>
    %177 = math.exp %176 : vector<8x128xf32>
    %178 = arith.subf %174, %175 : vector<8x128xf32>
    %179 = math.exp %178 : vector<8x128xf32>
    %180 = arith.mulf %169, %177 : vector<8x128xf32>
    %181 = arith.addf %180, %179 : vector<8x128xf32>
    %182 = arith.mulf %172, %177 : vector<8x128xf32>
    %183 = arith.mulf %179, %56 : vector<8x128xf32>
    %184 = arith.addf %182, %183 : vector<8x128xf32>
    %185 = arith.mulf %54, %73 : vector<8x128xf32>
    %cst_58 = arith.constant dense<0.000000e+00> : vector<8x128xf32>
    %186 = tpu.matmul %185, %2, %cst_58 {dimension_numbers = #tpu.dot_dimension_numbers<[1], [0], [0], [1], [0, 0, 1, 1], [], []>} : vector<8x128xf32>, vector<128x128xf32>, vector<8x128xf32> -> vector<8x128xf32>
    %187 = arith.maximumf %175, %186 : vector<8x128xf32>
    %188 = arith.subf %175, %187 : vector<8x128xf32>
    %189 = math.exp %188 : vector<8x128xf32>
    %190 = arith.subf %186, %187 : vector<8x128xf32>
    %191 = math.exp %190 : vector<8x128xf32>
    %192 = arith.mulf %181, %189 : vector<8x128xf32>
    %193 = arith.addf %192, %191 : vector<8x128xf32>
    %194 = arith.mulf %184, %189 : vector<8x128xf32>
    %195 = arith.mulf %191, %74 : vector<8x128xf32>
    %196 = arith.addf %194, %195 : vector<8x128xf32>
    %197 = tpu.reciprocal %193 {approx = true} : vector<8x128xf32> -> vector<8x128xf32>
    %198 = arith.mulf %196, %197 : vector<8x128xf32>
    %199 = arith.addf %157, %198 : vector<8x128xf32>
    %200 = arith.mulf %72, %19 : vector<8x128xf32>
    %cst_59 = arith.constant dense<0.000000e+00> : vector<8x128xf32>
    %201 = tpu.matmul %200, %2, %cst_59 {dimension_numbers = #tpu.dot_dimension_numbers<[1], [0], [0], [1], [0, 0, 1, 1], [], []>} : vector<8x128xf32>, vector<128x128xf32>, vector<8x128xf32> -> vector<8x128xf32>
    %cst_60 = arith.constant 1.000000e+00 : f32
    %202 = vector.broadcast %cst_60 : f32 to vector<8x128xf32>
    %203 = arith.mulf %72, %37 : vector<8x128xf32>
    %cst_61 = arith.constant dense<0.000000e+00> : vector<8x128xf32>
    %204 = tpu.matmul %203, %2, %cst_61 {dimension_numbers = #tpu.dot_dimension_numbers<[1], [0], [0], [1], [0, 0, 1, 1], [], []>} : vector<8x128xf32>, vector<128x128xf32>, vector<8x128xf32> -> vector<8x128xf32>
    %205 = arith.maximumf %201, %204 : vector<8x128xf32>
    %206 = arith.subf %201, %205 : vector<8x128xf32>
    %207 = math.exp %206 : vector<8x128xf32>
    %208 = arith.subf %204, %205 : vector<8x128xf32>
    %209 = math.exp %208 : vector<8x128xf32>
    %210 = arith.mulf %202, %207 : vector<8x128xf32>
    %211 = arith.addf %210, %209 : vector<8x128xf32>
    %212 = arith.mulf %20, %207 : vector<8x128xf32>
    %213 = arith.mulf %209, %38 : vector<8x128xf32>
    %214 = arith.addf %212, %213 : vector<8x128xf32>
    %215 = arith.mulf %72, %55 : vector<8x128xf32>
    %cst_62 = arith.constant dense<0.000000e+00> : vector<8x128xf32>
    %216 = tpu.matmul %215, %2, %cst_62 {dimension_numbers = #tpu.dot_dimension_numbers<[1], [0], [0], [1], [0, 0, 1, 1], [], []>} : vector<8x128xf32>, vector<128x128xf32>, vector<8x128xf32> -> vector<8x128xf32>
    %217 = arith.maximumf %205, %216 : vector<8x128xf32>
    %218 = arith.subf %205, %217 : vector<8x128xf32>
    %219 = math.exp %218 : vector<8x128xf32>
    %220 = arith.subf %216, %217 : vector<8x128xf32>
    %221 = math.exp %220 : vector<8x128xf32>
    %222 = arith.mulf %211, %219 : vector<8x128xf32>
    %223 = arith.addf %222, %221 : vector<8x128xf32>
    %224 = arith.mulf %214, %219 : vector<8x128xf32>
    %225 = arith.mulf %221, %56 : vector<8x128xf32>
    %226 = arith.addf %224, %225 : vector<8x128xf32>
    %227 = arith.mulf %72, %73 : vector<8x128xf32>
    %cst_63 = arith.constant dense<0.000000e+00> : vector<8x128xf32>
    %228 = tpu.matmul %227, %2, %cst_63 {dimension_numbers = #tpu.dot_dimension_numbers<[1], [0], [0], [1], [0, 0, 1, 1], [], []>} : vector<8x128xf32>, vector<128x128xf32>, vector<8x128xf32> -> vector<8x128xf32>
    %229 = arith.maximumf %217, %228 : vector<8x128xf32>
    %230 = arith.subf %217, %229 : vector<8x128xf32>
    %231 = math.exp %230 : vector<8x128xf32>
    %232 = arith.subf %228, %229 : vector<8x128xf32>
    %233 = math.exp %232 : vector<8x128xf32>
    %234 = arith.mulf %223, %231 : vector<8x128xf32>
    %235 = arith.addf %234, %233 : vector<8x128xf32>
    %236 = arith.mulf %226, %231 : vector<8x128xf32>
    %237 = arith.mulf %233, %74 : vector<8x128xf32>
    %238 = arith.addf %236, %237 : vector<8x128xf32>
    %239 = tpu.reciprocal %235 {approx = true} : vector<8x128xf32> -> vector<8x128xf32>
    %240 = arith.mulf %238, %239 : vector<8x128xf32>
    %241 = arith.addf %199, %240 : vector<8x128xf32>
    %cst_64 = arith.constant 2.500000e-01 : f32
    %242 = vector.broadcast %cst_64 : f32 to vector<8x128xf32>
    %243 = arith.mulf %241, %242 : vector<8x128xf32>
    %244 = arith.truncf %243 : vector<8x128xf32> to vector<8x128xbf16>
    %c0_65 = arith.constant 0 : index
    %c0_66 = arith.constant 0 : index
    %245 = vector.load %arg16[%c0_65, %c0_66] : memref<128x128xbf16, #tpu.memory_space<vmem>>, vector<128x128xbf16>
    %cst_67 = arith.constant dense<0.000000e+00> : vector<8x128xf32>
    %246 = tpu.matmul %244, %245, %cst_67 {dimension_numbers = #tpu.dot_dimension_numbers<[1], [0], [0], [1], [0, 0, 1, 1], [], []>} : vector<8x128xbf16>, vector<128x128xbf16>, vector<8x128xf32> -> vector<8x128xf32>
    %c0_68 = arith.constant 0 : index
    %c0_69 = arith.constant 0 : index
    %247 = vector.load %arg17[%c0_68, %c0_69] : memref<1x128xf32, #tpu.memory_space<vmem>>, vector<1x128xf32>
    %248 = vector.broadcast %247 : vector<1x128xf32> to vector<8x128xf32>
    %249 = arith.addf %246, %248 : vector<8x128xf32>
    %cst_70 = arith.constant dense<0.000000e+00> : vector<8xf32>
    %250 = vector.multi_reduction <add>, %249, %cst_70 [1] : vector<8x128xf32> to vector<8xf32>
    %251 = vector.shape_cast %250 : vector<8xf32> to vector<8x1xf32>
    %cst_71 = arith.constant 1.280000e+02 : f32
    %252 = vector.broadcast %cst_71 : f32 to vector<8x1xf32>
    %253 = arith.divf %251, %252 : vector<8x1xf32>
    %254 = vector.broadcast %253 : vector<8x1xf32> to vector<8x128xf32>
    %255 = arith.subf %249, %254 : vector<8x128xf32>
    %256 = arith.mulf %255, %255 : vector<8x128xf32>
    %cst_72 = arith.constant dense<0.000000e+00> : vector<8xf32>
    %257 = vector.multi_reduction <add>, %256, %cst_72 [1] : vector<8x128xf32> to vector<8xf32>
    %258 = vector.shape_cast %257 : vector<8xf32> to vector<8x1xf32>
    %cst_73 = arith.constant 1.280000e+02 : f32
    %259 = vector.broadcast %cst_73 : f32 to vector<8x1xf32>
    %260 = arith.divf %258, %259 : vector<8x1xf32>
    %261 = vector.broadcast %253 : vector<8x1xf32> to vector<8x128xf32>
    %262 = arith.subf %249, %261 : vector<8x128xf32>
    %cst_74 = arith.constant 9.99999974E-6 : f32
    %263 = vector.broadcast %cst_74 : f32 to vector<8x1xf32>
    %264 = arith.addf %260, %263 : vector<8x1xf32>
    %265 = math.rsqrt %264 : vector<8x1xf32>
    %266 = vector.broadcast %265 : vector<8x1xf32> to vector<8x128xf32>
    %267 = arith.mulf %262, %266 : vector<8x128xf32>
    %c0_75 = arith.constant 0 : index
    %c0_76 = arith.constant 0 : index
    %268 = vector.load %arg18[%c0_75, %c0_76] : memref<1x128xf32, #tpu.memory_space<vmem>>, vector<1x128xf32>
    %269 = vector.broadcast %268 : vector<1x128xf32> to vector<8x128xf32>
    %270 = arith.mulf %267, %269 : vector<8x128xf32>
    %c0_77 = arith.constant 0 : index
    %c0_78 = arith.constant 0 : index
    %271 = vector.load %arg19[%c0_77, %c0_78] : memref<1x128xf32, #tpu.memory_space<vmem>>, vector<1x128xf32>
    %272 = vector.broadcast %271 : vector<1x128xf32> to vector<8x128xf32>
    %273 = arith.addf %270, %272 : vector<8x128xf32>
    %274 = arith.truncf %273 : vector<8x128xf32> to vector<8x128xbf16>
    %c0_79 = arith.constant 0 : index
    %c0_80 = arith.constant 0 : index
    %275 = vector.load %arg20[%c0_79, %c0_80] : memref<128x128xbf16, #tpu.memory_space<vmem>>, vector<128x128xbf16>
    %cst_81 = arith.constant dense<0.000000e+00> : vector<8x128xf32>
    %276 = tpu.matmul %274, %275, %cst_81 {dimension_numbers = #tpu.dot_dimension_numbers<[1], [0], [0], [1], [0, 0, 1, 1], [], []>} : vector<8x128xbf16>, vector<128x128xbf16>, vector<8x128xf32> -> vector<8x128xf32>
    %c0_82 = arith.constant 0 : index
    %c0_83 = arith.constant 0 : index
    %277 = vector.load %arg21[%c0_82, %c0_83] : memref<1x128xf32, #tpu.memory_space<vmem>>, vector<1x128xf32>
    %278 = vector.broadcast %277 : vector<1x128xf32> to vector<8x128xf32>
    %279 = arith.addf %276, %278 : vector<8x128xf32>
    %cst_84 = arith.constant 0.000000e+00 : f32
    %280 = vector.broadcast %cst_84 : f32 to vector<8x128xf32>
    %281 = arith.maximumf %279, %280 : vector<8x128xf32>
    %282 = arith.truncf %281 : vector<8x128xf32> to vector<8x128xbf16>
    %c0_85 = arith.constant 0 : index
    %c0_86 = arith.constant 0 : index
    %283 = vector.load %arg22[%c0_85, %c0_86] : memref<128x128xbf16, #tpu.memory_space<vmem>>, vector<128x128xbf16>
    %cst_87 = arith.constant dense<0.000000e+00> : vector<8x128xf32>
    %284 = tpu.matmul %282, %283, %cst_87 {dimension_numbers = #tpu.dot_dimension_numbers<[1], [0], [0], [1], [0, 0, 1, 1], [], []>} : vector<8x128xbf16>, vector<128x128xbf16>, vector<8x128xf32> -> vector<8x128xf32>
    %c0_88 = arith.constant 0 : index
    %c0_89 = arith.constant 0 : index
    %285 = vector.load %arg23[%c0_88, %c0_89] : memref<1x128xf32, #tpu.memory_space<vmem>>, vector<1x128xf32>
    %286 = vector.broadcast %285 : vector<1x128xf32> to vector<8x128xf32>
    %287 = arith.addf %284, %286 : vector<8x128xf32>
    %c0_90 = arith.constant 0 : index
    %c0_91 = arith.constant 0 : index
    %288 = vector.load %arg24[%c0_90, %c0_91] : memref<8x128xf32, #tpu.memory_space<vmem>>, vector<8x128xf32>
    tpu.vector_store %arg24[%c0_90, %c0_91], %287 {strides = array<i32>} : memref<8x128xf32, #tpu.memory_space<vmem>>, vector<8x128xf32>,
    return
  }
  func.func @transform_0(%arg0: i32) -> (i32, i32) {
    %c0_i32 = arith.constant 0 : i32
    %c0_i32_0 = arith.constant 0 : i32
    return %arg0, %c0_i32 : i32, i32
  }
  func.func @transform_1(%arg0: i32) -> (i32, i32) {
    %c0_i32 = arith.constant 0 : i32
    %c0_i32_0 = arith.constant 0 : i32
    return %arg0, %c0_i32 : i32, i32
  }
  func.func @transform_2(%arg0: i32) -> (i32, i32) {
    %c0_i32 = arith.constant 0 : i32
    %c0_i32_0 = arith.constant 0 : i32
    return %arg0, %c0_i32 : i32, i32
  }
  func.func @transform_3(%arg0: i32) -> (i32, i32) {
    %c0_i32 = arith.constant 0 : i32
    %c0_i32_0 = arith.constant 0 : i32
    return %arg0, %c0_i32 : i32, i32
  }
  func.func @transform_4(%arg0: i32) -> (i32, i32) {
    %c0_i32 = arith.constant 0 : i32
    %c0_i32_0 = arith.constant 0 : i32
    %c0_i32_1 = arith.constant 0 : i32
    return %c0_i32, %c0_i32_0 : i32, i32
  }
  func.func @transform_5(%arg0: i32) -> (i32, i32) {
    %c0_i32 = arith.constant 0 : i32
    %c0_i32_0 = arith.constant 0 : i32
    %c0_i32_1 = arith.constant 0 : i32
    return %c0_i32, %c0_i32_0 : i32, i32
  }
  func.func @transform_6(%arg0: i32) -> (i32, i32) {
    %c0_i32 = arith.constant 0 : i32
    %c0_i32_0 = arith.constant 0 : i32
    %c0_i32_1 = arith.constant 0 : i32
    return %c0_i32, %c0_i32_0 : i32, i32
  }
  func.func @transform_7(%arg0: i32) -> (i32, i32) {
    %c0_i32 = arith.constant 0 : i32
    %c0_i32_0 = arith.constant 0 : i32
    %c0_i32_1 = arith.constant 0 : i32
    return %c0_i32, %c0_i32_0 : i32, i32
  }
  func.func @transform_8(%arg0: i32) -> (i32, i32) {
    %c0_i32 = arith.constant 0 : i32
    %c0_i32_0 = arith.constant 0 : i32
    %c0_i32_1 = arith.constant 0 : i32
    return %c0_i32, %c0_i32_0 : i32, i32
  }
  func.func @transform_9(%arg0: i32) -> (i32, i32) {
    %c0_i32 = arith.constant 0 : i32
    %c0_i32_0 = arith.constant 0 : i32
    %c0_i32_1 = arith.constant 0 : i32
    return %c0_i32, %c0_i32_0 : i32, i32
  }
  func.func @transform_10(%arg0: i32) -> (i32, i32) {
    %c0_i32 = arith.constant 0 : i32
    %c0_i32_0 = arith.constant 0 : i32
    %c0_i32_1 = arith.constant 0 : i32
    return %c0_i32, %c0_i32_0 : i32, i32
  }
  func.func @transform_11(%arg0: i32) -> (i32, i32) {
    %c0_i32 = arith.constant 0 : i32
    %c0_i32_0 = arith.constant 0 : i32
    %c0_i32_1 = arith.constant 0 : i32
    return %c0_i32, %c0_i32_0 : i32, i32
  }
  func.func @transform_12(%arg0: i32) -> (i32, i32) {
    %c0_i32 = arith.constant 0 : i32
    %c0_i32_0 = arith.constant 0 : i32
    %c0_i32_1 = arith.constant 0 : i32
    return %c0_i32, %c0_i32_0 : i32, i32
  }
  func.func @transform_13(%arg0: i32) -> (i32, i32) {
    %c0_i32 = arith.constant 0 : i32
    %c0_i32_0 = arith.constant 0 : i32
    %c0_i32_1 = arith.constant 0 : i32
    return %c0_i32, %c0_i32_0 : i32, i32
  }
  func.func @transform_14(%arg0: i32) -> (i32, i32) {
    %c0_i32 = arith.constant 0 : i32
    %c0_i32_0 = arith.constant 0 : i32
    %c0_i32_1 = arith.constant 0 : i32
    return %c0_i32, %c0_i32_0 : i32, i32
  }
  func.func @transform_15(%arg0: i32) -> (i32, i32) {
    %c0_i32 = arith.constant 0 : i32
    %c0_i32_0 = arith.constant 0 : i32
    %c0_i32_1 = arith.constant 0 : i32
    return %c0_i32, %c0_i32_0 : i32, i32
  }
  func.func @transform_16(%arg0: i32) -> (i32, i32) {
    %c0_i32 = arith.constant 0 : i32
    %c0_i32_0 = arith.constant 0 : i32
    %c0_i32_1 = arith.constant 0 : i32
    return %c0_i32, %c0_i32_0 : i32, i32
  }
  func.func @transform_17(%arg0: i32) -> (i32, i32) {
    %c0_i32 = arith.constant 0 : i32
    %c0_i32_0 = arith.constant 0 : i32
    %c0_i32_1 = arith.constant 0 : i32
    return %c0_i32, %c0_i32_0 : i32, i32
  }
  func.func @transform_18(%arg0: i32) -> (i32, i32) {
    %c0_i32 = arith.constant 0 : i32
    %c0_i32_0 = arith.constant 0 : i32
    %c0_i32_1 = arith.constant 0 : i32
    return %c0_i32, %c0_i32_0 : i32, i32
  }
  func.func @transform_19(%arg0: i32) -> (i32, i32) {
    %c0_i32 = arith.constant 0 : i32
    %c0_i32_0 = arith.constant 0 : i32
    %c0_i32_1 = arith.constant 0 : i32
    return %c0_i32, %c0_i32_0 : i32, i32
  }
  func.func @transform_20(%arg0: i32) -> (i32, i32) {
    %c0_i32 = arith.constant 0 : i32
    %c0_i32_0 = arith.constant 0 : i32
    %c0_i32_1 = arith.constant 0 : i32
    return %c0_i32, %c0_i32_0 : i32, i32
  }
  func.func @transform_21(%arg0: i32) -> (i32, i32) {
    %c0_i32 = arith.constant 0 : i32
    %c0_i32_0 = arith.constant 0 : i32
    %c0_i32_1 = arith.constant 0 : i32
    return %c0_i32, %c0_i32_0 : i32, i32
  }
  func.func @transform_22(%arg0: i32) -> (i32, i32) {
    %c0_i32 = arith.constant 0 : i32
    %c0_i32_0 = arith.constant 0 : i32
    %c0_i32_1 = arith.constant 0 : i32
    return %c0_i32, %c0_i32_0 : i32, i32
  }
  func.func @transform_23(%arg0: i32) -> (i32, i32) {
    %c0_i32 = arith.constant 0 : i32
    %c0_i32_0 = arith.constant 0 : i32
    return %arg0, %c0_i32 : i32, i32
  }
}

</mosaic_0001>

<llo_original>
// kernel: tpu_custom_call.1
$region0: #{tpu_custom_call.1}
  #allocation0 [shape = 'u32[]', space=smem, size = 0x4, offset = 0x4, fixed_abs, tag = 'smem constant byte address 0x4 - core index']
  #allocation1 [shape = 'u32[144,128]{1,0:T(1,128)}', space=vmem, size = 0x12000, scoped, tag = 'internal scratch']
  %s0 = inlined_call_operand.vmem [shape: f32[16,16], index: 0, kind: input, shape index: {}]
  %s1 = inlined_call_operand.hbm [shape: f32[16,24], index: 1, kind: input, shape index: {}]
  %s2 = inlined_call_operand.hbm [shape: f32[16,32], index: 2, kind: input, shape index: {}]
  %s3 = inlined_call_operand.vmem [shape: f32[16,8], index: 3, kind: input, shape index: {}]
  %s4 = inlined_call_operand.hbm [shape: bf16[16,128], index: 4, kind: input, shape index: {}]
  %s5 = inlined_call_operand.hbm [shape: f32[1,128], index: 5, kind: input, shape index: {}]
  %s6 = inlined_call_operand.hbm [shape: bf16[24,128], index: 6, kind: input, shape index: {}]
  %s7 = inlined_call_operand.hbm [shape: f32[1,128], index: 7, kind: input, shape index: {}]
  %s8 = inlined_call_operand.hbm [shape: bf16[32,128], index: 8, kind: input, shape index: {}]
  %s9 = inlined_call_operand.hbm [shape: f32[1,128], index: 9, kind: input, shape index: {}]
  %s10 = inlined_call_operand.hbm [shape: bf16[8,128], index: 10, kind: input, shape index: {}]
  %s11 = inlined_call_operand.hbm [shape: f32[1,128], index: 11, kind: input, shape index: {}]
  %s12 = inlined_call_operand.hbm [shape: bf16[128,384], index: 12, kind: input, shape index: {}]
  %s13 = inlined_call_operand.hbm [shape: f32[1,384], index: 13, kind: input, shape index: {}]
  %s14 = inlined_call_operand.hbm [shape: f32[128,128], index: 14, kind: input, shape index: {}]
  %s15 = inlined_call_operand.vmem [shape: bf16[128,128], index: 15, kind: input, shape index: {}]
  %s16 = inlined_call_operand.vmem [shape: f32[1,128], index: 16, kind: input, shape index: {}]
  %s17 = inlined_call_operand.vmem [shape: f32[1,128], index: 17, kind: input, shape index: {}]
  %s18 = inlined_call_operand.vmem [shape: f32[1,128], index: 18, kind: input, shape index: {}]
  %s19 = inlined_call_operand.hbm [shape: bf16[128,128], index: 19, kind: input, shape index: {}]
  %s20 = inlined_call_operand.vmem [shape: f32[1,128], index: 20, kind: input, shape index: {}]
  %s21 = inlined_call_operand.hbm [shape: bf16[128,128], index: 21, kind: input, shape index: {}]
  %s22 = inlined_call_operand.vmem [shape: f32[1,128], index: 22, kind: input, shape index: {}]
  %s23 = inlined_call_operand.hbm [shape: f32[16,128], index: 23, kind: output, shape index: {}]
  %s24 = sld [smem:[#allocation0]]
  $region185: #{tpu_custom_call.1} parent=0
    _
  %s26 = ssub.s32 1, %s24
  %s27 = scalar_select 0, %s26, %s24
  $region1: #{tpu_custom_call.1} parent=0
    #allocation2 [shape = 'u8[8192]{0}', space=vmem, size = 0x2000, scoped, tag = 'input window, operand 1']
    #allocation3 [shape = 's32[2]{0}', space=sflag, size = 0x8, scoped, tag = 'scoped memory for tpu_custom_call.1']
    #allocation4 [shape = 's32[2]{0}', space=sflag, size = 0x8, scoped, tag = 'scoped memory for tpu_custom_call.1']
    #allocation5 [shape = 'u8[8192]{0}', space=vmem, size = 0x2000, scoped, tag = 'input window, operand 2']
    #allocation6 [shape = 's32[2]{0}', space=sflag, size = 0x8, scoped, tag = 'scoped memory for tpu_custom_call.1']
    #allocation7 [shape = 'u8[4096]{0}', space=vmem, size = 0x1000, scoped, tag = 'input window, operand 4, single buffered']
    #allocation8 [shape = 'u8[512]{0}', space=vmem, size = 0x400, scoped, tag = 'input window, operand 5, single buffered']
    #allocation9 [shape = 's32[1]{0}', space=sflag, size = 0x4, scoped, tag = 'scoped memory for tpu_custom_call.1']
    #allocation10 [shape = 'u8[6144]{0}', space=vmem, size = 0x1800, scoped, tag = 'input window, operand 6, single buffered']
    #allocation11 [shape = 'u8[512]{0}', space=vmem, size = 0x400, scoped, tag = 'input window, operand 7, single buffered']
    #allocation12 [shape = 's32[1]{0}', space=sflag, size = 0x4, scoped, tag = 'scoped memory for tpu_custom_call.1']
    #allocation13 [shape = 'u8[8192]{0}', space=vmem, size = 0x2000, scoped, tag = 'input window, operand 8, single buffered']
    #allocation14 [shape = 'u8[512]{0}', space=vmem, size = 0x400, scoped, tag = 'input window, operand 9, single buffered']
    #allocation15 [shape = 's32[1]{0}', space=sflag, size = 0x4, scoped, tag = 'scoped memory for tpu_custom_call.1']
    #allocation16 [shape = 'u8[2048]{0}', space=vmem, size = 0x800, scoped, tag = 'input window, operand 10, single buffered']
    #allocation17 [shape = 'u8[512]{0}', space=vmem, size = 0x400, scoped, tag = 'input window, operand 11, single buffered']
    #allocation18 [shape = 's32[1]{0}', space=sflag, size = 0x4, scoped, tag = 'scoped memory for tpu_custom_call.1']
    #allocation19 [shape = 'u8[98304]{0}', space=vmem, size = 0x18000, scoped, tag = 'input window, operand 12, single buffered']
    #allocation20 [shape = 'u8[1536]{0}', space=vmem, size = 0x800, scoped, tag = 'input window, operand 13, single buffered']
    #allocation21 [shape = 's32[1]{0}', space=sflag, size = 0x4, scoped, tag = 'scoped memory for tpu_custom_call.1']
    #allocation22 [shape = 'u8[65536]{0}', space=vmem, size = 0x10000, scoped, tag = 'input window, operand 14, single buffered']
    #allocation23 [shape = 'u8[32768]{0}', space=vmem, size = 0x8000, scoped, tag = 'input window, operand 19, single buffered']
    #allocation24 [shape = 's32[1]{0}', space=sflag, size = 0x4, scoped, tag = 'scoped memory for tpu_custom_call.1']
    #allocation25 [shape = 'u8[32768]{0}', space=vmem, size = 0x8000, scoped, tag = 'input window, operand 21, single buffered']
    #allocation26 [shape = 'u8[8192]{0}', space=vmem, size = 0x2000, scoped, tag = 'output window, operand 0']
    %28 = vsyncpa [#allocation3], 0
    %s29 = scalar_lea.sflag [#allocation3], 1
    %30 = vsyncpa %s29, 0
    %31 = vsyncpa [#allocation6], 0
    %s32 = scalar_lea.sflag [#allocation6], 1
    %33 = vsyncpa %s32, 0
    %34 = vsyncpa [#allocation9], 0
    %35 = vsyncpa [#allocation12], 0
    %36 = vsyncpa [#allocation15], 0
    %37 = vsyncpa [#allocation18], 0
    %38 = vsyncpa [#allocation21], 0
    %39 = vsyncpa [#allocation24], 0
    %40 = vsyncpa [#allocation4], 0
    %s41 = scalar_lea.sflag [#allocation4], 1
    %42 = vsyncpa %s41, 0
    loop: start=0, step=1, limit=4
    $region2: #{tpu_custom_call.1} parent=1 // loop_pre_header
      _
    $region3: #{tpu_custom_call.1} parent=1 // loop_header
      %s44 = sphi 0, %s48
      %p45 = scmp.ge.s32.totalorder %s44, 4
      %s54 = sphi 0, %s56
      %s57 = sphi 0, %s54
      %s58 = sphi 0, %s57
      %s74 = sphi 0, %s58
      %s80 = sphi 0, %s82
      %s83 = sphi 0, %s80
      %s84 = sphi 0, %s83
      %s100 = sphi 0, %s84
      %s106 = sphi 0, %s108
      %s109 = sphi 0, %s106
      %s110 = sphi 0, %s109
      %s126 = sphi 0, %s110
      %s132 = sphi 0, %s134
      %s135 = sphi 0, %s132
      %s136 = sphi 0, %s135
      %s152 = sphi 0, %s136
      %s156 = sphi 0, %s156
      %s158 = sphi 0, %s156
      %s159 = sphi 0, %s158
      %s173 = sphi 0, %s159
      %s177 = sphi 0, %s177
      %s179 = sphi 0, %s177
      %s180 = sphi 0, %s179
      %s194 = sphi 0, %s180
      %s198 = sphi 0, %s198
      %s200 = sphi 0, %s198
      %s201 = sphi 0, %s200
      %s215 = sphi 0, %s201
      %s219 = sphi 0, %s219
      %s221 = sphi 0, %s219
      %s222 = sphi 0, %s221
      %s236 = sphi 0, %s222
      %s240 = sphi 0, %s240
      %s242 = sphi 0, %s240
      %s243 = sphi 0, %s242
      %s257 = sphi 0, %s243
      %s261 = sphi 0, %s261
      %s263 = sphi 0, %s261
      %s264 = sphi 0, %s263
      %s278 = sphi 0, %s264
      %s282 = sphi 0, %s282
      %s284 = sphi 0, %s282
      %s285 = sphi 0, %s284
      %s299 = sphi 0, %s285
      %s303 = sphi 0, %s303
      %s305 = sphi 0, %s303
      %s306 = sphi 0, %s305
      %s320 = sphi 0, %s306
      %s324 = sphi 0, %s324
      %s326 = sphi 0, %s324
      %s327 = sphi 0, %s326
      %s341 = sphi 0, %s327
      %s345 = sphi 0, %s345
      %s347 = sphi 0, %s345
      %s348 = sphi 0, %s347
      %s362 = sphi 0, %s348
      %s366 = sphi 0, %s366
      %s368 = sphi 0, %s366
      %s369 = sphi 0, %s368
      %s383 = sphi 0, %s369
      %s387 = sphi 0, %s387
      %s389 = sphi 0, %s387
      %s390 = sphi 0, %s389
      %s404 = sphi 0, %s390
      %s408 = sphi 0, %s408
      %s410 = sphi 0, %s408
      %s411 = sphi 0, %s410
      %s425 = sphi 0, %s411
      %s429 = sphi 0, %s429
      %s431 = sphi 0, %s429
      %s432 = sphi 0, %s431
      %s446 = sphi 0, %s432
      %s450 = sphi 0, %s450
      %s452 = sphi 0, %s450
      %s453 = sphi 0, %s452
      %s467 = sphi 0, %s453
      %s471 = sphi 0, %s471
      %s473 = sphi 0, %s471
      %s474 = sphi 0, %s473
      %s488 = sphi 0, %s474
      %s492 = sphi 0, %s492
      %s494 = sphi 0, %s492
      %s495 = sphi 0, %s494
      %s509 = sphi 0, %s495
      %s513 = sphi 0, %s513
      %s515 = sphi 0, %s513
      %s516 = sphi 0, %s515
      %s530 = sphi 0, %s516
      %s534 = sphi 0, %s534
      %s536 = sphi 0, %s534
      %s537 = sphi 0, %s536
      %s551 = sphi 0, %s537
      %s557 = sphi 0, %s559
      %s560 = sphi 0, %s557
      %s561 = sphi 0, %s560
      %s577 = sphi 0, %s561
    $region4: #{tpu_custom_call.1} parent=1 // loop_header_branch
      %47 = sbr.rel (%p45) target = $region8
    $region5: #{tpu_custom_call.1} parent=1 // loop_body
      %s49 = ssub.s32 %s44, 1
      %s50 = ssub.s32 %s44, 2
      %s51 = sadd.s32 %s44, 1
      %s52 = ssub.s32 %s44, %s51
      %p53 = scmp.eq.s32.totalorder %s52, 0
      %s55 = sadd.s32 %s54, 1
      %s56 = scalar_select %p53, %s54, %s55
      %p59 = pneg %p53
      %p60 = scmp.eq.s32.totalorder %s44, 1
      %p61 = por %p59, %p60
      %p62 = scmp.ne.s32.totalorder %s54, %s57
      %p63 = scmp.eq.s32.totalorder %s44, 0
      %p64 = por %p62, %p63
      %p65 = scmp.ne.s32.totalorder %s54, %s57
      %p66 = scmp.eq.s32.totalorder %s49, 1
      %p67 = por %p65, %p66
      %p68 = scmp.ne.s32.totalorder %s57, %s58
      %p69 = scmp.eq.s32.totalorder %s49, 0
      %p70 = por %p68, %p69
      %p71 = scmp.ne.s32.totalorder %s57, %s58
      %p72 = scmp.eq.s32.totalorder %s50, 1
      %p73 = por %p71, %p72
      %p75 = scmp.ne.s32.totalorder %s58, %s74
      %p76 = scmp.eq.s32.totalorder %s50, 0
      %p77 = por %p75, %p76
      %s78 = ssub.s32 %s44, %s51
      %p79 = scmp.eq.s32.totalorder %s78, 0
      %s81 = sadd.s32 %s80, 1
      %s82 = scalar_select %p79, %s80, %s81
      %p85 = pneg %p79
      %p86 = scmp.eq.s32.totalorder %s44, 1
      %p87 = por %p85, %p86
      %p88 = scmp.ne.s32.totalorder %s80, %s83
      %p89 = scmp.eq.s32.totalorder %s44, 0
      %p90 = por %p88, %p89
      %p91 = scmp.ne.s32.totalorder %s80, %s83
      %p92 = scmp.eq.s32.totalorder %s49, 1
      %p93 = por %p91, %p92
      %p94 = scmp.ne.s32.totalorder %s83, %s84
      %p95 = scmp.eq.s32.totalorder %s49, 0
      %p96 = por %p94, %p95
      %p97 = scmp.ne.s32.totalorder %s83, %s84
      %p98 = scmp.eq.s32.totalorder %s50, 1
      %p99 = por %p97, %p98
      %p101 = scmp.ne.s32.totalorder %s84, %s100
      %p102 = scmp.eq.s32.totalorder %s50, 0
      %p103 = por %p101, %p102
      %s104 = ssub.s32 %s44, %s51
      %p105 = scmp.eq.s32.totalorder %s104, 0
      %s107 = sadd.s32 %s106, 1
      %s108 = scalar_select %p105, %s106, %s107
      %p111 = pneg %p105
      %p112 = scmp.eq.s32.totalorder %s44, 1
      %p113 = por %p111, %p112
      %p114 = scmp.ne.s32.totalorder %s106, %s109
      %p115 = scmp.eq.s32.totalorder %s44, 0
      %p116 = por %p114, %p115
      %p117 = scmp.ne.s32.totalorder %s106, %s109
      %p118 = scmp.eq.s32.totalorder %s49, 1
      %p119 = por %p117, %p118
      %p120 = scmp.ne.s32.totalorder %s109, %s110
      %p121 = scmp.eq.s32.totalorder %s49, 0
      %p122 = por %p120, %p121
      %p123 = scmp.ne.s32.totalorder %s109, %s110
      %p124 = scmp.eq.s32.totalorder %s50, 1
      %p125 = por %p123, %p124
      %p127 = scmp.ne.s32.totalorder %s110, %s126
      %p128 = scmp.eq.s32.totalorder %s50, 0
      %p129 = por %p127, %p128
      %s130 = ssub.s32 %s44, %s51
      %p131 = scmp.eq.s32.totalorder %s130, 0
      %s133 = sadd.s32 %s132, 1
      %s134 = scalar_select %p131, %s132, %s133
      %p137 = pneg %p131
      %p138 = scmp.eq.s32.totalorder %s44, 1
      %p139 = por %p137, %p138
      %p140 = scmp.ne.s32.totalorder %s132, %s135
      %p141 = scmp.eq.s32.totalorder %s44, 0
      %p142 = por %p140, %p141
      %p143 = scmp.ne.s32.totalorder %s132, %s135
      %p144 = scmp.eq.s32.totalorder %s49, 1
      %p145 = por %p143, %p144
      %p146 = scmp.ne.s32.totalorder %s135, %s136
      %p147 = scmp.eq.s32.totalorder %s49, 0
      %p148 = por %p146, %p147
      %p149 = scmp.ne.s32.totalorder %s135, %s136
      %p150 = scmp.eq.s32.totalorder %s50, 1
      %p151 = por %p149, %p150
      %p153 = scmp.ne.s32.totalorder %s136, %s152
      %p154 = scmp.eq.s32.totalorder %s50, 0
      %p155 = por %p153, %p154
      %s157 = sadd.s32 %s156, 1
      %p160 = scmp.eq.s32.totalorder %s44, 1
      %p161 = scmp.ne.s32.totalorder %s156, %s158
      %p162 = scmp.eq.s32.totalorder %s44, 0
      %p163 = por %p161, %p162
      %p164 = scmp.ne.s32.totalorder %s156, %s158
      %p165 = scmp.eq.s32.totalorder %s49, 1
      %p166 = por %p164, %p165
      %p167 = scmp.ne.s32.totalorder %s158, %s159
      %p168 = scmp.eq.s32.totalorder %s49, 0
      %p169 = por %p167, %p168
      %p170 = scmp.ne.s32.totalorder %s158, %s159
      %p171 = scmp.eq.s32.totalorder %s50, 1
      %p172 = por %p170, %p171
      %p174 = scmp.ne.s32.totalorder %s159, %s173
      %p175 = scmp.eq.s32.totalorder %s50, 0
      %p176 = por %p174, %p175
      %s178 = sadd.s32 %s177, 1
      %p181 = scmp.eq.s32.totalorder %s44, 1
      %p182 = scmp.ne.s32.totalorder %s177, %s179
      %p183 = scmp.eq.s32.totalorder %s44, 0
      %p184 = por %p182, %p183
      %p185 = scmp.ne.s32.totalorder %s177, %s179
      %p186 = scmp.eq.s32.totalorder %s49, 1
      %p187 = por %p185, %p186
      %p188 = scmp.ne.s32.totalorder %s179, %s180
      %p189 = scmp.eq.s32.totalorder %s49, 0
      %p190 = por %p188, %p189
      %p191 = scmp.ne.s32.totalorder %s179, %s180
      %p192 = scmp.eq.s32.totalorder %s50, 1
      %p193 = por %p191, %p192
      %p195 = scmp.ne.s32.totalorder %s180, %s194
      %p196 = scmp.eq.s32.totalorder %s50, 0
      %p197 = por %p195, %p196
      %s199 = sadd.s32 %s198, 1
      %p202 = scmp.eq.s32.totalorder %s44, 1
      %p203 = scmp.ne.s32.totalorder %s198, %s200
      %p204 = scmp.eq.s32.totalorder %s44, 0
      %p205 = por %p203, %p204
      %p206 = scmp.ne.s32.totalorder %s198, %s200
      %p207 = scmp.eq.s32.totalorder %s49, 1
      %p208 = por %p206, %p207
      %p209 = scmp.ne.s32.totalorder %s200, %s201
      %p210 = scmp.eq.s32.totalorder %s49, 0
      %p211 = por %p209, %p210
      %p212 = scmp.ne.s32.totalorder %s200, %s201
      %p213 = scmp.eq.s32.totalorder %s50, 1
      %p214 = por %p212, %p213
      %p216 = scmp.ne.s32.totalorder %s201, %s215
      %p217 = scmp.eq.s32.totalorder %s50, 0
      %p218 = por %p216, %p217
      %s220 = sadd.s32 %s219, 1
      %p223 = scmp.eq.s32.totalorder %s44, 1
      %p224 = scmp.ne.s32.totalorder %s219, %s221
      %p225 = scmp.eq.s32.totalorder %s44, 0
      %p226 = por %p224, %p225
      %p227 = scmp.ne.s32.totalorder %s219, %s221
      %p228 = scmp.eq.s32.totalorder %s49, 1
      %p229 = por %p227, %p228
      %p230 = scmp.ne.s32.totalorder %s221, %s222
      %p231 = scmp.eq.s32.totalorder %s49, 0
      %p232 = por %p230, %p231
      %p233 = scmp.ne.s32.totalorder %s221, %s222
      %p234 = scmp.eq.s32.totalorder %s50, 1
      %p235 = por %p233, %p234
      %p237 = scmp.ne.s32.totalorder %s222, %s236
      %p238 = scmp.eq.s32.totalorder %s50, 0
      %p239 = por %p237, %p238
      %s241 = sadd.s32 %s240, 1
      %p244 = scmp.eq.s32.totalorder %s44, 1
      %p245 = scmp.ne.s32.totalorder %s240, %s242
      %p246 = scmp.eq.s32.totalorder %s44, 0
      %p247 = por %p245, %p246
      %p248 = scmp.ne.s32.totalorder %s240, %s242
      %p249 = scmp.eq.s32.totalorder %s49, 1
      %p250 = por %p248, %p249
      %p251 = scmp.ne.s32.totalorder %s242, %s243
      %p252 = scmp.eq.s32.totalorder %s49, 0
      %p253 = por %p251, %p252
      %p254 = scmp.ne.s32.totalorder %s242, %s243
      %p255 = scmp.eq.s32.totalorder %s50, 1
      %p256 = por %p254, %p255
      %p258 = scmp.ne.s32.totalorder %s243, %s257
      %p259 = scmp.eq.s32.totalorder %s50, 0
      %p260 = por %p258, %p259
      %s262 = sadd.s32 %s261, 1
      %p265 = scmp.eq.s32.totalorder %s44, 1
      %p266 = scmp.ne.s32.totalorder %s261, %s263
      %p267 = scmp.eq.s32.totalorder %s44, 0
      %p268 = por %p266, %p267
      %p269 = scmp.ne.s32.totalorder %s261, %s263
      %p270 = scmp.eq.s32.totalorder %s49, 1
      %p271 = por %p269, %p270
      %p272 = scmp.ne.s32.totalorder %s263, %s264
      %p273 = scmp.eq.s32.totalorder %s49, 0
      %p274 = por %p272, %p273
      %p275 = scmp.ne.s32.totalorder %s263, %s264
      %p276 = scmp.eq.s32.totalorder %s50, 1
      %p277 = por %p275, %p276
      %p279 = scmp.ne.s32.totalorder %s264, %s278
      %p280 = scmp.eq.s32.totalorder %s50, 0
      %p281 = por %p279, %p280
      %s283 = sadd.s32 %s282, 1
      %p286 = scmp.eq.s32.totalorder %s44, 1
      %p287 = scmp.ne.s32.totalorder %s282, %s284
      %p288 = scmp.eq.s32.totalorder %s44, 0
      %p289 = por %p287, %p288
      %p290 = scmp.ne.s32.totalorder %s282, %s284
      %p291 = scmp.eq.s32.totalorder %s49, 1
      %p292 = por %p290, %p291
      %p293 = scmp.ne.s32.totalorder %s284, %s285
      %p294 = scmp.eq.s32.totalorder %s49, 0
      %p295 = por %p293, %p294
      %p296 = scmp.ne.s32.totalorder %s284, %s285
      %p297 = scmp.eq.s32.totalorder %s50, 1
      %p298 = por %p296, %p297
      %p300 = scmp.ne.s32.totalorder %s285, %s299
      %p301 = scmp.eq.s32.totalorder %s50, 0
      %p302 = por %p300, %p301
      %s304 = sadd.s32 %s303, 1
      %p307 = scmp.eq.s32.totalorder %s44, 1
      %p308 = scmp.ne.s32.totalorder %s303, %s305
      %p309 = scmp.eq.s32.totalorder %s44, 0
      %p310 = por %p308, %p309
      %p311 = scmp.ne.s32.totalorder %s303, %s305
      %p312 = scmp.eq.s32.totalorder %s49, 1
      %p313 = por %p311, %p312
      %p314 = scmp.ne.s32.totalorder %s305, %s306
      %p315 = scmp.eq.s32.totalorder %s49, 0
      %p316 = por %p314, %p315
      %p317 = scmp.ne.s32.totalorder %s305, %s306
      %p318 = scmp.eq.s32.totalorder %s50, 1
      %p319 = por %p317, %p318
      %p321 = scmp.ne.s32.totalorder %s306, %s320
      %p322 = scmp.eq.s32.totalorder %s50, 0
      %p323 = por %p321, %p322
      %s325 = sadd.s32 %s324, 1
      %p328 = scmp.eq.s32.totalorder %s44, 1
      %p329 = scmp.ne.s32.totalorder %s324, %s326
      %p330 = scmp.eq.s32.totalorder %s44, 0
      %p331 = por %p329, %p330
      %p332 = scmp.ne.s32.totalorder %s324, %s326
      %p333 = scmp.eq.s32.totalorder %s49, 1
      %p334 = por %p332, %p333
      %p335 = scmp.ne.s32.totalorder %s326, %s327
      %p336 = scmp.eq.s32.totalorder %s49, 0
      %p337 = por %p335, %p336
      %p338 = scmp.ne.s32.totalorder %s326, %s327
      %p339 = scmp.eq.s32.totalorder %s50, 1
      %p340 = por %p338, %p339
      %p342 = scmp.ne.s32.totalorder %s327, %s341
      %p343 = scmp.eq.s32.totalorder %s50, 0
      %p344 = por %p342, %p343
      %s346 = sadd.s32 %s345, 1
      %p349 = scmp.eq.s32.totalorder %s44, 1
      %p350 = scmp.ne.s32.totalorder %s345, %s347
      %p351 = scmp.eq.s32.totalorder %s44, 0
      %p352 = por %p350, %p351
      %p353 = scmp.ne.s32.totalorder %s345, %s347
      %p354 = scmp.eq.s32.totalorder %s49, 1
      %p355 = por %p353, %p354
      %p356 = scmp.ne.s32.totalorder %s347, %s348
      %p357 = scmp.eq.s32.totalorder %s49, 0
      %p358 = por %p356, %p357
      %p359 = scmp.ne.s32.totalorder %s347, %s348
      %p360 = scmp.eq.s32.totalorder %s50, 1
      %p361 = por %p359, %p360
      %p363 = scmp.ne.s32.totalorder %s348, %s362
      %p364 = scmp.eq.s32.totalorder %s50, 0
      %p365 = por %p363, %p364
      %s367 = sadd.s32 %s366, 1
      %p370 = scmp.eq.s32.totalorder %s44, 1
      %p371 = scmp.ne.s32.totalorder %s366, %s368
      %p372 = scmp.eq.s32.totalorder %s44, 0
      %p373 = por %p371, %p372
      %p374 = scmp.ne.s32.totalorder %s366, %s368
      %p375 = scmp.eq.s32.totalorder %s49, 1
      %p376 = por %p374, %p375
      %p377 = scmp.ne.s32.totalorder %s368, %s369
      %p378 = scmp.eq.s32.totalorder %s49, 0
      %p379 = por %p377, %p378
      %p380 = scmp.ne.s32.totalorder %s368, %s369
      %p381 = scmp.eq.s32.totalorder %s50, 1
      %p382 = por %p380, %p381
      %p384 = scmp.ne.s32.totalorder %s369, %s383
      %p385 = scmp.eq.s32.totalorder %s50, 0
      %p386 = por %p384, %p385
      %s388 = sadd.s32 %s387, 1
      %p391 = scmp.eq.s32.totalorder %s44, 1
      %p392 = scmp.ne.s32.totalorder %s387, %s389
      %p393 = scmp.eq.s32.totalorder %s44, 0
      %p394 = por %p392, %p393
      %p395 = scmp.ne.s32.totalorder %s387, %s389
      %p396 = scmp.eq.s32.totalorder %s49, 1
      %p397 = por %p395, %p396
      %p398 = scmp.ne.s32.totalorder %s389, %s390
      %p399 = scmp.eq.s32.totalorder %s49, 0
      %p400 = por %p398, %p399
      %p401 = scmp.ne.s32.totalorder %s389, %s390
      %p402 = scmp.eq.s32.totalorder %s50, 1
      %p403 = por %p401, %p402
      %p405 = scmp.ne.s32.totalorder %s390, %s404
      %p406 = scmp.eq.s32.totalorder %s50, 0
      %p407 = por %p405, %p406
      %s409 = sadd.s32 %s408, 1
      %p412 = scmp.eq.s32.totalorder %s44, 1
      %p413 = scmp.ne.s32.totalorder %s408, %s410
      %p414 = scmp.eq.s32.totalorder %s44, 0
      %p415 = por %p413, %p414
      %p416 = scmp.ne.s32.totalorder %s408, %s410
      %p417 = scmp.eq.s32.totalorder %s49, 1
      %p418 = por %p416, %p417
      %p419 = scmp.ne.s32.totalorder %s410, %s411
      %p420 = scmp.eq.s32.totalorder %s49, 0
      %p421 = por %p419, %p420
      %p422 = scmp.ne.s32.totalorder %s410, %s411
      %p423 = scmp.eq.s32.totalorder %s50, 1
      %p424 = por %p422, %p423
      %p426 = scmp.ne.s32.totalorder %s411, %s425
      %p427 = scmp.eq.s32.totalorder %s50, 0
      %p428 = por %p426, %p427
      %s430 = sadd.s32 %s429, 1
      %p433 = scmp.eq.s32.totalorder %s44, 1
      %p434 = scmp.ne.s32.totalorder %s429, %s431
      %p435 = scmp.eq.s32.totalorder %s44, 0
      %p436 = por %p434, %p435
      %p437 = scmp.ne.s32.totalorder %s429, %s431
      %p438 = scmp.eq.s32.totalorder %s49, 1
      %p439 = por %p437, %p438
      %p440 = scmp.ne.s32.totalorder %s431, %s432
      %p441 = scmp.eq.s32.totalorder %s49, 0
      %p442 = por %p440, %p441
      %p443 = scmp.ne.s32.totalorder %s431, %s432
      %p444 = scmp.eq.s32.totalorder %s50, 1
      %p445 = por %p443, %p444
      %p447 = scmp.ne.s32.totalorder %s432, %s446
      %p448 = scmp.eq.s32.totalorder %s50, 0
      %p449 = por %p447, %p448
      %s451 = sadd.s32 %s450, 1
      %p454 = scmp.eq.s32.totalorder %s44, 1
      %p455 = scmp.ne.s32.totalorder %s450, %s452
      %p456 = scmp.eq.s32.totalorder %s44, 0
      %p457 = por %p455, %p456
      %p458 = scmp.ne.s32.totalorder %s450, %s452
      %p459 = scmp.eq.s32.totalorder %s49, 1
      %p460 = por %p458, %p459
      %p461 = scmp.ne.s32.totalorder %s452, %s453
      %p462 = scmp.eq.s32.totalorder %s49, 0
      %p463 = por %p461, %p462
      %p464 = scmp.ne.s32.totalorder %s452, %s453
      %p465 = scmp.eq.s32.totalorder %s50, 1
      %p466 = por %p464, %p465
      %p468 = scmp.ne.s32.totalorder %s453, %s467
      %p469 = scmp.eq.s32.totalorder %s50, 0
      %p470 = por %p468, %p469
      %s472 = sadd.s32 %s471, 1
      %p475 = scmp.eq.s32.totalorder %s44, 1
      %p476 = scmp.ne.s32.totalorder %s471, %s473
      %p477 = scmp.eq.s32.totalorder %s44, 0
      %p478 = por %p476, %p477
      %p479 = scmp.ne.s32.totalorder %s471, %s473
      %p480 = scmp.eq.s32.totalorder %s49, 1
      %p481 = por %p479, %p480
      %p482 = scmp.ne.s32.totalorder %s473, %s474
      %p483 = scmp.eq.s32.totalorder %s49, 0
      %p484 = por %p482, %p483
      %p485 = scmp.ne.s32.totalorder %s473, %s474
      %p486 = scmp.eq.s32.totalorder %s50, 1
      %p487 = por %p485, %p486
      %p489 = scmp.ne.s32.totalorder %s474, %s488
      %p490 = scmp.eq.s32.totalorder %s50, 0
      %p491 = por %p489, %p490
      %s493 = sadd.s32 %s492, 1
      %p496 = scmp.eq.s32.totalorder %s44, 1
      %p497 = scmp.ne.s32.totalorder %s492, %s494
      %p498 = scmp.eq.s32.totalorder %s44, 0
      %p499 = por %p497, %p498
      %p500 = scmp.ne.s32.totalorder %s492, %s494
      %p501 = scmp.eq.s32.totalorder %s49, 1
      %p502 = por %p500, %p501
      %p503 = scmp.ne.s32.totalorder %s494, %s495
      %p504 = scmp.eq.s32.totalorder %s49, 0
      %p505 = por %p503, %p504
      %p506 = scmp.ne.s32.totalorder %s494, %s495
      %p507 = scmp.eq.s32.totalorder %s50, 1
      %p508 = por %p506, %p507
      %p510 = scmp.ne.s32.totalorder %s495, %s509
      %p511 = scmp.eq.s32.totalorder %s50, 0
      %p512 = por %p510, %p511
      %s514 = sadd.s32 %s513, 1
      %p517 = scmp.eq.s32.totalorder %s44, 1
      %p518 = scmp.ne.s32.totalorder %s513, %s515
      %p519 = scmp.eq.s32.totalorder %s44, 0
      %p520 = por %p518, %p519
      %p521 = scmp.ne.s32.totalorder %s513, %s515
      %p522 = scmp.eq.s32.totalorder %s49, 1
      %p523 = por %p521, %p522
      %p524 = scmp.ne.s32.totalorder %s515, %s516
      %p525 = scmp.eq.s32.totalorder %s49, 0
      %p526 = por %p524, %p525
      %p527 = scmp.ne.s32.totalorder %s515, %s516
      %p528 = scmp.eq.s32.totalorder %s50, 1
      %p529 = por %p527, %p528
      %p531 = scmp.ne.s32.totalorder %s516, %s530
      %p532 = scmp.eq.s32.totalorder %s50, 0
      %p533 = por %p531, %p532
      %s535 = sadd.s32 %s534, 1
      %p538 = scmp.eq.s32.totalorder %s44, 1
      %p539 = scmp.ne.s32.totalorder %s534, %s536
      %p540 = scmp.eq.s32.totalorder %s44, 0
      %p541 = por %p539, %p540
      %p542 = scmp.ne.s32.totalorder %s534, %s536
      %p543 = scmp.eq.s32.totalorder %s49, 1
      %p544 = por %p542, %p543
      %p545 = scmp.ne.s32.totalorder %s536, %s537
      %p546 = scmp.eq.s32.totalorder %s49, 0
      %p547 = por %p545, %p546
      %p548 = scmp.ne.s32.totalorder %s536, %s537
      %p549 = scmp.eq.s32.totalorder %s50, 1
      %p550 = por %p548, %p549
      %p552 = scmp.ne.s32.totalorder %s537, %s551
      %p553 = scmp.eq.s32.totalorder %s50, 0
      %p554 = por %p552, %p553
      %s555 = ssub.s32 %s44, %s51
      %p556 = scmp.eq.s32.totalorder %s555, 0
      %s558 = sadd.s32 %s557, 1
      %s559 = scalar_select %p556, %s557, %s558
      %p562 = pneg %p556
      %p563 = scmp.eq.s32.totalorder %s44, 1
      %p564 = por %p562, %p563
      %p565 = scmp.ne.s32.totalorder %s557, %s560
      %p566 = scmp.eq.s32.totalorder %s44, 0
      %p567 = por %p565, %p566
      %p568 = scmp.ne.s32.totalorder %s557, %s560
      %p569 = scmp.eq.s32.totalorder %s49, 1
      %p570 = por %p568, %p569
      %p571 = scmp.ne.s32.totalorder %s560, %s561
      %p572 = scmp.eq.s32.totalorder %s49, 0
      %p573 = por %p571, %p572
      %p574 = scmp.ne.s32.totalorder %s560, %s561
      %p575 = scmp.eq.s32.totalorder %s50, 1
      %p576 = por %p574, %p575
      %p578 = scmp.ne.s32.totalorder %s561, %s577
      %p579 = scmp.eq.s32.totalorder %s50, 0
      %p580 = por %p578, %p579
      %p581 = scmp.le.s32.totalorder 1, %s44
      %p582 = scmp.lt.s32.totalorder %s44, 3
      %p583 = pnand %p581, %p582
      %p584 = pneg %p583
      // Predicated region
      $region9: #{tpu_custom_call.1} parent=5 // pred_check
        _
      $region10: #{tpu_custom_call.1} parent=5 // pred_check_branch
        %586 = sbr.rel (%p583) target = $region12
      $region11: #{tpu_custom_call.1} parent=5 // pred_region
        %s587 = ssub.s32 %s44, 1
        // Predicated region
        $region13: #{tpu_custom_call.1} parent=11 // pred_check
          %p588 = pneg %p169
        $region14: #{tpu_custom_call.1} parent=11 // pred_check_branch
          %590 = sbr.rel (%p588) target = $region16
        $region15: #{tpu_custom_call.1} parent=11 // pred_region
          %s592 = ssub.s32 128, 128
          %593 = vsyncadd [#allocation6], %s592
          %s594 = sshll.u32 [#allocation7], 4
          %s595 = int_to_ptr.vmem [resolvable:$true] %s594
          %600 = dma.hbm_to_vmem [thread:$0]  %s4, 128, %s595, [#allocation6], 64, 64, 4
        $region16: #{tpu_custom_call.1} parent=11 // pred_fallthru
          _
        // Predicated region
        $region17: #{tpu_custom_call.1} parent=11 // pred_check
          %p601 = pneg %p190
        $region18: #{tpu_custom_call.1} parent=11 // pred_check_branch
          %603 = sbr.rel (%p601) target = $region20
        $region19: #{tpu_custom_call.1} parent=11 // pred_region
          %s605 = ssub.s32 16, 16
          %606 = vsyncadd [#allocation9], %s605
          %s608 = sshll.u32 [#allocation8], 4
          %s609 = int_to_ptr.vmem [resolvable:$true] %s608
          %611 = dma.hbm_to_vmem [thread:$0]  %s5, 16, %s609, [#allocation9]
        $region20: #{tpu_custom_call.1} parent=11 // pred_fallthru
          _
        // Predicated region
        $region21: #{tpu_custom_call.1} parent=11 // pred_check
          %p612 = pneg %p211
        $region22: #{tpu_custom_call.1} parent=11 // pred_check_branch
          %614 = sbr.rel (%p612) target = $region24
        $region23: #{tpu_custom_call.1} parent=11 // pred_region
          %s616 = ssub.s32 192, 192
          %617 = vsyncadd [#allocation9], %s616
          %s618 = sshll.u32 [#allocation10], 4
          %s619 = int_to_ptr.vmem [resolvable:$true] %s618
          %624 = dma.hbm_to_vmem [thread:$0]  %s6, 192, %s619, [#allocation9], 64, 64, 4
        $region24: #{tpu_custom_call.1} parent=11 // pred_fallthru
          _
        // Predicated region
        $region25: #{tpu_custom_call.1} parent=11 // pred_check
          %p625 = pneg %p232
        $region26: #{tpu_custom_call.1} parent=11 // pred_check_branch
          %627 = sbr.rel (%p625) target = $region28
        $region27: #{tpu_custom_call.1} parent=11 // pred_region
          %s629 = ssub.s32 16, 16
          %630 = vsyncadd [#allocation12], %s629
          %s632 = sshll.u32 [#allocation11], 4
          %s633 = int_to_ptr.vmem [resolvable:$true] %s632
          %635 = dma.hbm_to_vmem [thread:$0]  %s7, 16, %s633, [#allocation12]
        $region28: #{tpu_custom_call.1} parent=11 // pred_fallthru
          _
        // Predicated region
        $region29: #{tpu_custom_call.1} parent=11 // pred_check
          %p636 = pneg %p253
        $region30: #{tpu_custom_call.1} parent=11 // pred_check_branch
          %638 = sbr.rel (%p636) target = $region32
        $region31: #{tpu_custom_call.1} parent=11 // pred_region
          %s640 = ssub.s32 256, 256
          %641 = vsyncadd [#allocation12], %s640
          %s642 = sshll.u32 [#allocation13], 4
          %s643 = int_to_ptr.vmem [resolvable:$true] %s642
          %648 = dma.hbm_to_vmem [thread:$0]  %s8, 256, %s643, [#allocation12], 64, 64, 4
        $region32: #{tpu_custom_call.1} parent=11 // pred_fallthru
          _
        // Predicated region
        $region33: #{tpu_custom_call.1} parent=11 // pred_check
          %p649 = pneg %p274
        $region34: #{tpu_custom_call.1} parent=11 // pred_check_branch
          %651 = sbr.rel (%p649) target = $region36
        $region35: #{tpu_custom_call.1} parent=11 // pred_region
          %s653 = ssub.s32 16, 16
          %654 = vsyncadd [#allocation15], %s653
          %s656 = sshll.u32 [#allocation14], 4
          %s657 = int_to_ptr.vmem [resolvable:$true] %s656
          %659 = dma.hbm_to_vmem [thread:$0]  %s9, 16, %s657, [#allocation15]
        $region36: #{tpu_custom_call.1} parent=11 // pred_fallthru
          _
        // Predicated region
        $region37: #{tpu_custom_call.1} parent=11 // pred_check
          %p660 = pneg %p295
        $region38: #{tpu_custom_call.1} parent=11 // pred_check_branch
          %662 = sbr.rel (%p660) target = $region40
        $region39: #{tpu_custom_call.1} parent=11 // pred_region
          %s664 = ssub.s32 64, 64
          %665 = vsyncadd [#allocation15], %s664
          %s667 = sshll.u32 [#allocation16], 4
          %s668 = int_to_ptr.vmem [resolvable:$true] %s667
          %670 = dma.hbm_to_vmem [thread:$0]  %s10, 64, %s668, [#allocation15]
        $region40: #{tpu_custom_call.1} parent=11 // pred_fallthru
          _
        // Predicated region
        $region41: #{tpu_custom_call.1} parent=11 // pred_check
          %p671 = pneg %p316
        $region42: #{tpu_custom_call.1} parent=11 // pred_check_branch
          %673 = sbr.rel (%p671) target = $region44
        $region43: #{tpu_custom_call.1} parent=11 // pred_region
          %s675 = ssub.s32 16, 16
          %676 = vsyncadd [#allocation18], %s675
          %s678 = sshll.u32 [#allocation17], 4
          %s679 = int_to_ptr.vmem [resolvable:$true] %s678
          %681 = dma.hbm_to_vmem [thread:$0]  %s11, 16, %s679, [#allocation18]
        $region44: #{tpu_custom_call.1} parent=11 // pred_fallthru
          _
        // Predicated region
        $region45: #{tpu_custom_call.1} parent=11 // pred_check
          %p682 = pneg %p337
        $region46: #{tpu_custom_call.1} parent=11 // pred_check_branch
          %684 = sbr.rel (%p682) target = $region48
        $region47: #{tpu_custom_call.1} parent=11 // pred_region
          %s686 = ssub.s32 3072, 3072
          %687 = vsyncadd [#allocation18], %s686
          %s688 = sshll.u32 [#allocation19], 4
          %s689 = int_to_ptr.vmem [resolvable:$true] %s688
          %694 = dma.hbm_to_vmem [thread:$0]  %s12, 3072, %s689, [#allocation18], 192, 192, 12
        $region48: #{tpu_custom_call.1} parent=11 // pred_fallthru
          _
        // Predicated region
        $region49: #{tpu_custom_call.1} parent=11 // pred_check
          %p695 = pneg %p358
        $region50: #{tpu_custom_call.1} parent=11 // pred_check_branch
          %697 = sbr.rel (%p695) target = $region52
        $region51: #{tpu_custom_call.1} parent=11 // pred_region
          %s699 = ssub.s32 48, 48
          %700 = vsyncadd [#allocation21], %s699
          %s702 = sshll.u32 [#allocation20], 4
          %s703 = int_to_ptr.vmem [resolvable:$true] %s702
          %705 = dma.hbm_to_vmem [thread:$0]  %s13, 48, %s703, [#allocation21]
        $region52: #{tpu_custom_call.1} parent=11 // pred_fallthru
          _
        // Predicated region
        $region53: #{tpu_custom_call.1} parent=11 // pred_check
          %p706 = pneg %p379
        $region54: #{tpu_custom_call.1} parent=11 // pred_check_branch
          %708 = sbr.rel (%p706) target = $region56
        $region55: #{tpu_custom_call.1} parent=11 // pred_region
          %s710 = ssub.s32 2048, 2048
          %711 = vsyncadd [#allocation21], %s710
          %s712 = sshll.u32 [#allocation22], 4
          %s713 = int_to_ptr.vmem [resolvable:$true] %s712
          %718 = dma.hbm_to_vmem [thread:$0]  %s14, 2048, %s713, [#allocation21], 128, 128, 8
        $region56: #{tpu_custom_call.1} parent=11 // pred_fallthru
          _
        // Predicated region
        $region57: #{tpu_custom_call.1} parent=11 // pred_check
          %p719 = pneg %p400
        $region58: #{tpu_custom_call.1} parent=11 // pred_check_branch
          %721 = sbr.rel (%p719) target = $region60
        $region59: #{tpu_custom_call.1} parent=11 // pred_region
          _
        $region60: #{tpu_custom_call.1} parent=11 // pred_fallthru
          _
        // Predicated region
        $region61: #{tpu_custom_call.1} parent=11 // pred_check
          %p722 = pneg %p421
        $region62: #{tpu_custom_call.1} parent=11 // pred_check_branch
          %724 = sbr.rel (%p722) target = $region64
        $region63: #{tpu_custom_call.1} parent=11 // pred_region
          _
        $region64: #{tpu_custom_call.1} parent=11 // pred_fallthru
          _
        // Predicated region
        $region65: #{tpu_custom_call.1} parent=11 // pred_check
          %p725 = pneg %p442
        $region66: #{tpu_custom_call.1} parent=11 // pred_check_branch
          %727 = sbr.rel (%p725) target = $region68
        $region67: #{tpu_custom_call.1} parent=11 // pred_region
          _
        $region68: #{tpu_custom_call.1} parent=11 // pred_fallthru
          _
        // Predicated region
        $region69: #{tpu_custom_call.1} parent=11 // pred_check
          %p728 = pneg %p463
        $region70: #{tpu_custom_call.1} parent=11 // pred_check_branch
          %730 = sbr.rel (%p728) target = $region72
        $region71: #{tpu_custom_call.1} parent=11 // pred_region
          _
        $region72: #{tpu_custom_call.1} parent=11 // pred_fallthru
          _
        // Predicated region
        $region73: #{tpu_custom_call.1} parent=11 // pred_check
          %p731 = pneg %p484
        $region74: #{tpu_custom_call.1} parent=11 // pred_check_branch
          %733 = sbr.rel (%p731) target = $region76
        $region75: #{tpu_custom_call.1} parent=11 // pred_region
          %s735 = ssub.s32 1024, 1024
          %736 = vsyncadd [#allocation24], %s735
          %s737 = sshll.u32 [#allocation23], 4
          %s738 = int_to_ptr.vmem [resolvable:$true] %s737
          %743 = dma.hbm_to_vmem [thread:$0]  %s19, 1024, %s738, [#allocation24], 64, 64, 4
        $region76: #{tpu_custom_call.1} parent=11 // pred_fallthru
          _
        // Predicated region
        $region77: #{tpu_custom_call.1} parent=11 // pred_check
          %p744 = pneg %p505
        $region78: #{tpu_custom_call.1} parent=11 // pred_check_branch
          %746 = sbr.rel (%p744) target = $region80
        $region79: #{tpu_custom_call.1} parent=11 // pred_region
          _
        $region80: #{tpu_custom_call.1} parent=11 // pred_fallthru
          _
        // Predicated region
        $region81: #{tpu_custom_call.1} parent=11 // pred_check
          %p747 = pneg %p526
        $region82: #{tpu_custom_call.1} parent=11 // pred_check_branch
          %749 = sbr.rel (%p747) target = $region84
        $region83: #{tpu_custom_call.1} parent=11 // pred_region
          %s751 = ssub.s32 1024, 1024
          %752 = vsyncadd [#allocation24], %s751
          %s753 = sshll.u32 [#allocation25], 4
          %s754 = int_to_ptr.vmem [resolvable:$true] %s753
          %759 = dma.hbm_to_vmem [thread:$0]  %s21, 1024, %s754, [#allocation24], 64, 64, 4
        $region84: #{tpu_custom_call.1} parent=11 // pred_fallthru
          _
        // Predicated region
        $region85: #{tpu_custom_call.1} parent=11 // pred_check
          %p760 = pneg %p547
        $region86: #{tpu_custom_call.1} parent=11 // pred_check_branch
          %762 = sbr.rel (%p760) target = $region88
        $region87: #{tpu_custom_call.1} parent=11 // pred_region
          _
        $region88: #{tpu_custom_call.1} parent=11 // pred_fallthru
          _
      $region12: #{tpu_custom_call.1} parent=5 // pred_fallthru
        _
      %p763 = scmp.lt.s32.totalorder %s44, 2
      // Predicated region
      $region89: #{tpu_custom_call.1} parent=5 // pred_check
        %p764 = pneg %p763
      $region90: #{tpu_custom_call.1} parent=5 // pred_check_branch
        %766 = sbr.rel (%p764) target = $region92
      $region91: #{tpu_custom_call.1} parent=5 // pred_region
        // Predicated region
        $region93: #{tpu_custom_call.1} parent=91 // pred_check
          %p767 = pneg %p64
        $region94: #{tpu_custom_call.1} parent=91 // pred_check_branch
          %769 = sbr.rel (%p767) target = $region96
        $region95: #{tpu_custom_call.1} parent=91 // pred_region
          %p770 = scmp.lt.s32.totalorder %s44, 1
          %s771 = scalar_select %p770, %s44, 1
          %s772 = smul.addr %s771, 8
          %s773 = scalar_lea.vmem %s0, %s772
        $region96: #{tpu_custom_call.1} parent=91 // pred_fallthru
          _
        // Predicated region
        $region97: #{tpu_custom_call.1} parent=91 // pred_check
          %p774 = pneg %p90
        $region98: #{tpu_custom_call.1} parent=91 // pred_check_branch
          %776 = sbr.rel (%p774) target = $region100
        $region99: #{tpu_custom_call.1} parent=91 // pred_region
          %s777 = sand.u32 %s80, 1
          %s778 = scalar_lea.sflag [#allocation3], %s777
          %s779 = sand.u32 %s80, 1
          %s780 = smul.addr %s779, 8
          %s781 = scalar_lea.vmem [#allocation2], %s780
          %s783 = ssub.s32 128, 128
          %784 = vsyncadd %s778, %s783
          %s785 = smul.addr %s44, 128
          %s786 = scalar_lea.hbm %s1, %s785
          %s788 = sshll.u32 %s781, 4
          %s789 = int_to_ptr.vmem [resolvable:$true] %s788
          %791 = dma.hbm_to_vmem [thread:$0]  %s786, 128, %s789, %s778
        $region100: #{tpu_custom_call.1} parent=91 // pred_fallthru
          _
        // Predicated region
        $region101: #{tpu_custom_call.1} parent=91 // pred_check
          %p792 = pneg %p116
        $region102: #{tpu_custom_call.1} parent=91 // pred_check_branch
          %794 = sbr.rel (%p792) target = $region104
        $region103: #{tpu_custom_call.1} parent=91 // pred_region
          %s795 = sand.u32 %s44, 1
          %s796 = scalar_lea.sflag [#allocation6], %s795
          %s797 = sand.u32 %s106, 1
          %s798 = smul.addr %s797, 8
          %s799 = scalar_lea.vmem [#allocation5], %s798
          %s801 = ssub.s32 128, 128
          %802 = vsyncadd %s796, %s801
          %s803 = smul.addr %s44, 128
          %s804 = scalar_lea.hbm %s2, %s803
          %s806 = sshll.u32 %s799, 4
          %s807 = int_to_ptr.vmem [resolvable:$true] %s806
          %809 = dma.hbm_to_vmem [thread:$0]  %s804, 128, %s807, %s796
        $region104: #{tpu_custom_call.1} parent=91 // pred_fallthru
          _
        // Predicated region
        $region105: #{tpu_custom_call.1} parent=91 // pred_check
          %p810 = pneg %p142
        $region106: #{tpu_custom_call.1} parent=91 // pred_check_branch
          %812 = sbr.rel (%p810) target = $region108
        $region107: #{tpu_custom_call.1} parent=91 // pred_region
          %p813 = scmp.lt.s32.totalorder %s44, 1
          %s814 = scalar_select %p813, %s44, 1
          %s815 = smul.addr %s814, 8
          %s816 = scalar_lea.vmem %s3, %s815
        $region108: #{tpu_custom_call.1} parent=91 // pred_fallthru
          _
      $region92: #{tpu_custom_call.1} parent=5 // pred_fallthru
        _
      %p817 = scmp.le.s32.totalorder 1, %s44
      %p818 = scmp.lt.s32.totalorder %s44, 3
      %p819 = pnand %p817, %p818
      %p820 = pneg %p819
      // Predicated region
      $region109: #{tpu_custom_call.1} parent=5 // pred_check
        _
      $region110: #{tpu_custom_call.1} parent=5 // pred_check_branch
        %822 = sbr.rel (%p819) target = $region112
      $region111: #{tpu_custom_call.1} parent=5 // pred_region
        %s823 = ssub.s32 %s44, 1
        %s824 = sand.u32 %s83, 1
        %s825 = scalar_lea.sflag [#allocation3], %s824
        %s826 = sand.u32 %s83, 1
        %s827 = smul.addr %s826, 8
        %s828 = scalar_lea.vmem [#allocation2], %s827
        // Predicated region
        $region113: #{tpu_custom_call.1} parent=111 // pred_check
          %p829 = pneg %p96
        $region114: #{tpu_custom_call.1} parent=111 // pred_check_branch
          %831 = sbr.rel (%p829) target = $region116
        $region115: #{tpu_custom_call.1} parent=111 // pred_region
          %832 = dma.done %s825, 128
        $region116: #{tpu_custom_call.1} parent=111 // pred_fallthru
          _
        %s833 = sand.u32 %s49, 1
        %s834 = scalar_lea.sflag [#allocation6], %s833
        %s835 = sand.u32 %s109, 1
        %s836 = smul.addr %s835, 8
        %s837 = scalar_lea.vmem [#allocation5], %s836
        // Predicated region
        $region117: #{tpu_custom_call.1} parent=111 // pred_check
          %p838 = pneg %p122
        $region118: #{tpu_custom_call.1} parent=111 // pred_check_branch
          %840 = sbr.rel (%p838) target = $region120
        $region119: #{tpu_custom_call.1} parent=111 // pred_region
          %841 = dma.done %s834, 128
        $region120: #{tpu_custom_call.1} parent=111 // pred_fallthru
          _
        // Predicated region
        $region121: #{tpu_custom_call.1} parent=111 // pred_check
          %p842 = pneg %p169
        $region122: #{tpu_custom_call.1} parent=111 // pred_check_branch
          %844 = sbr.rel (%p842) target = $region124
        $region123: #{tpu_custom_call.1} parent=111 // pred_region
          %845 = dma.done [#allocation6], 128
        $region124: #{tpu_custom_call.1} parent=111 // pred_fallthru
          _
        // Predicated region
        $region125: #{tpu_custom_call.1} parent=111 // pred_check
          %p846 = pneg %p190
        $region126: #{tpu_custom_call.1} parent=111 // pred_check_branch
          %848 = sbr.rel (%p846) target = $region128
        $region127: #{tpu_custom_call.1} parent=111 // pred_region
          %849 = dma.done [#allocation9], 16
        $region128: #{tpu_custom_call.1} parent=111 // pred_fallthru
          _
        // Predicated region
        $region129: #{tpu_custom_call.1} parent=111 // pred_check
          %p850 = pneg %p211
        $region130: #{tpu_custom_call.1} parent=111 // pred_check_branch
          %852 = sbr.rel (%p850) target = $region132
        $region131: #{tpu_custom_call.1} parent=111 // pred_region
          %853 = dma.done [#allocation9], 192
        $region132: #{tpu_custom_call.1} parent=111 // pred_fallthru
          _
        // Predicated region
        $region133: #{tpu_custom_call.1} parent=111 // pred_check
          %p854 = pneg %p232
        $region134: #{tpu_custom_call.1} parent=111 // pred_check_branch
          %856 = sbr.rel (%p854) target = $region136
        $region135: #{tpu_custom_call.1} parent=111 // pred_region
          %857 = dma.done [#allocation12], 16
        $region136: #{tpu_custom_call.1} parent=111 // pred_fallthru
          _
        // Predicated region
        $region137: #{tpu_custom_call.1} parent=111 // pred_check
          %p858 = pneg %p253
        $region138: #{tpu_custom_call.1} parent=111 // pred_check_branch
          %860 = sbr.rel (%p858) target = $region140
        $region139: #{tpu_custom_call.1} parent=111 // pred_region
          %861 = dma.done [#allocation12], 256
        $region140: #{tpu_custom_call.1} parent=111 // pred_fallthru
          _
        // Predicated region
        $region141: #{tpu_custom_call.1} parent=111 // pred_check
          %p862 = pneg %p274
        $region142: #{tpu_custom_call.1} parent=111 // pred_check_branch
          %864 = sbr.rel (%p862) target = $region144
        $region143: #{tpu_custom_call.1} parent=111 // pred_region
          %865 = dma.done [#allocation15], 16
        $region144: #{tpu_custom_call.1} parent=111 // pred_fallthru
          _
        // Predicated region
        $region145: #{tpu_custom_call.1} parent=111 // pred_check
          %p866 = pneg %p295
        $region146: #{tpu_custom_call.1} parent=111 // pred_check_branch
          %868 = sbr.rel (%p866) target = $region148
        $region147: #{tpu_custom_call.1} parent=111 // pred_region
          %869 = dma.done [#allocation15], 64
        $region148: #{tpu_custom_call.1} parent=111 // pred_fallthru
          _
        // Predicated region
        $region149: #{tpu_custom_call.1} parent=111 // pred_check
          %p870 = pneg %p316
        $region150: #{tpu_custom_call.1} parent=111 // pred_check_branch
          %872 = sbr.rel (%p870) target = $region152
        $region151: #{tpu_custom_call.1} parent=111 // pred_region
          %873 = dma.done [#allocation18], 16
        $region152: #{tpu_custom_call.1} parent=111 // pred_fallthru
          _
        // Predicated region
        $region153: #{tpu_custom_call.1} parent=111 // pred_check
          %p874 = pneg %p337
        $region154: #{tpu_custom_call.1} parent=111 // pred_check_branch
          %876 = sbr.rel (%p874) target = $region156
        $region155: #{tpu_custom_call.1} parent=111 // pred_region
          %877 = dma.done [#allocation18], 3072
        $region156: #{tpu_custom_call.1} parent=111 // pred_fallthru
          _
        // Predicated region
        $region157: #{tpu_custom_call.1} parent=111 // pred_check
          %p878 = pneg %p358
        $region158: #{tpu_custom_call.1} parent=111 // pred_check_branch
          %880 = sbr.rel (%p878) target = $region160
        $region159: #{tpu_custom_call.1} parent=111 // pred_region
          %881 = dma.done [#allocation21], 48
        $region160: #{tpu_custom_call.1} parent=111 // pred_fallthru
          _
        // Predicated region
        $region161: #{tpu_custom_call.1} parent=111 // pred_check
          %p882 = pneg %p379
        $region162: #{tpu_custom_call.1} parent=111 // pred_check_branch
          %884 = sbr.rel (%p882) target = $region164
        $region163: #{tpu_custom_call.1} parent=111 // pred_region
          %885 = dma.done [#allocation21], 2048
        $region164: #{tpu_custom_call.1} parent=111 // pred_fallthru
          _
        // Predicated region
        $region165: #{tpu_custom_call.1} parent=111 // pred_check
          %p886 = pneg %p484
        $region166: #{tpu_custom_call.1} parent=111 // pred_check_branch
          %888 = sbr.rel (%p886) target = $region168
        $region167: #{tpu_custom_call.1} parent=111 // pred_region
          %889 = dma.done [#allocation24], 1024
        $region168: #{tpu_custom_call.1} parent=111 // pred_fallthru
          _
        // Predicated region
        $region169: #{tpu_custom_call.1} parent=111 // pred_check
          %p890 = pneg %p526
        $region170: #{tpu_custom_call.1} parent=111 // pred_check_branch
          %892 = sbr.rel (%p890) target = $region172
        $region171: #{tpu_custom_call.1} parent=111 // pred_region
          %893 = dma.done [#allocation24], 1024
        $region172: #{tpu_custom_call.1} parent=111 // pred_fallthru
          _
        %p894 = scmp.lt.s32.totalorder %s49, 1
        %s895 = scalar_select %p894, %s49, 1
        %s896 = smul.addr %s895, 8
        %s897 = scalar_lea.vmem %s0, %s896
        %p898 = pneg %p70
        %p899 = pneg %p67
        %s900 = sand.u32 %s83, 1
        %s901 = scalar_lea.sflag [#allocation3], %s900
        %s902 = sand.u32 %s83, 1
        %s903 = smul.addr %s902, 8
        %s904 = scalar_lea.vmem [#allocation2], %s903
        %p905 = pneg %p96
        %p906 = pneg %p93
        %s907 = sand.u32 %s49, 1
        %s908 = scalar_lea.sflag [#allocation6], %s907
        %s909 = sand.u32 %s109, 1
        %s910 = smul.addr %s909, 8
        %s911 = scalar_lea.vmem [#allocation5], %s910
        %p912 = pneg %p122
        %p913 = pneg %p119
        %p914 = scmp.lt.s32.totalorder %s49, 1
        %s915 = scalar_select %p914, %s49, 1
        %s916 = smul.addr %s915, 8
        %s917 = scalar_lea.vmem %s3, %s916
        %p918 = pneg %p148
        %p919 = pneg %p145
        %p920 = pneg %p169
        %p921 = pneg %p166
        %p922 = pneg %p190
        %p923 = pneg %p187
        %p924 = pneg %p211
        %p925 = pneg %p208
        %p926 = pneg %p232
        %p927 = pneg %p229
        %p928 = pneg %p253
        %p929 = pneg %p250
        %p930 = pneg %p274
        %p931 = pneg %p271
        %p932 = pneg %p295
        %p933 = pneg %p292
        %p934 = pneg %p316
        %p935 = pneg %p313
        %p936 = pneg %p337
        %p937 = pneg %p334
        %p938 = pneg %p358
        %p939 = pneg %p355
        %p940 = pneg %p379
        %p941 = pneg %p376
        %p942 = pneg %p400
        %p943 = pneg %p397
        %p944 = pneg %p421
        %p945 = pneg %p418
        %p946 = pneg %p442
        %p947 = pneg %p439
        %p948 = pneg %p463
        %p949 = pneg %p460
        %p950 = pneg %p484
        %p951 = pneg %p481
        %p952 = pneg %p505
        %p953 = pneg %p502
        %p954 = pneg %p526
        %p955 = pneg %p523
        %p956 = pneg %p547
        %p957 = pneg %p544
        %p958 = pneg %p573
        %p959 = pneg %p570
        %s960 = sand.u32 %s560, 1
        %s961 = scalar_lea.sflag [#allocation4], %s960
        %s962 = sand.u32 %s560, 1
        %s963 = smul.addr %s962, 8
        %s964 = scalar_lea.vmem [#allocation26], %s963
        %p965 = scmp.lt.s32.totalorder %s49, 1
        %s966 = scalar_select %p965, %s49, 1
        %s967 = smul.addr %s966, 8
        %s968 = scalar_lea.vmem %s0, %s967
        %p969 = scmp.lt.s32.totalorder %s49, 1
        %s970 = scalar_select %p969, %s49, 1
        %s971 = smul.addr %s970, 8
        %s972 = scalar_lea.vmem %s3, %s971
        %v974 = vld [vmem:[#allocation19] sm:$0xff]
        %v975 = vld [vmem:[#allocation19 + $0x8] sm:$0xf]
        %v976 = vld [vmem:[#allocation19 + $0xc] sm:$0xff]
        %v977 = vld [vmem:[#allocation19 + $0x14] sm:$0xf]
        %v978 = vld [vmem:[#allocation19 + $0x18] sm:$0xff]
        %v979 = vld [vmem:[#allocation19 + $0x20] sm:$0xf]
        %v980 = vld [vmem:[#allocation19 + $0x24] sm:$0xff]
        %v981 = vld [vmem:[#allocation19 + $0x2c] sm:$0xf]
        %v982 = vld [vmem:[#allocation19 + $0x30] sm:$0xff]
        %v983 = vld [vmem:[#allocation19 + $0x38] sm:$0xf]
        %v984 = vld [vmem:[#allocation19 + $0x3c] sm:$0xff]
        %v985 = vld [vmem:[#allocation19 + $0x44] sm:$0xf]
        %v986 = vld [vmem:[#allocation19 + $0x48] sm:$0xff]
        %v987 = vld [vmem:[#allocation19 + $0x50] sm:$0xf]
        %v988 = vld [vmem:[#allocation19 + $0x54] sm:$0xff]
        %v989 = vld [vmem:[#allocation19 + $0x5c] sm:$0xf]
        %v990 = vld [vmem:[#allocation19 + $0x60] sm:$0xff]
        %v991 = vld [vmem:[#allocation19 + $0x68] sm:$0xf]
        %v992 = vld [vmem:[#allocation19 + $0x6c] sm:$0xff]
        %v993 = vld [vmem:[#allocation19 + $0x74] sm:$0xf]
        %v994 = vld [vmem:[#allocation19 + $0x78] sm:$0xff]
        %v995 = vld [vmem:[#allocation19 + $0x80] sm:$0xf]
        %v996 = vld [vmem:[#allocation19 + $0x84] sm:$0xff]
        %v997 = vld [vmem:[#allocation19 + $0x8c] sm:$0xf]
        %v998 = vld [vmem:[#allocation19 + $0x90] sm:$0xff]
        %v999 = vld [vmem:[#allocation19 + $0x98] sm:$0xf]
        %v1000 = vld [vmem:[#allocation19 + $0x9c] sm:$0xff]
        %v1001 = vld [vmem:[#allocation19 + $0xa4] sm:$0xf]
        %v1002 = vld [vmem:[#allocation19 + $0xa8] sm:$0xff]
        %v1003 = vld [vmem:[#allocation19 + $0xb0] sm:$0xf]
        %v1004 = vld [vmem:[#allocation19 + $0xb4] sm:$0xff]
        %v1005 = vld [vmem:[#allocation19 + $0xbc] sm:$0xf]
        %v1006 = vld [vmem:[#allocation20] sm:$0x7]
        %v1007 = vld [vmem:[#allocation22] sm:$0xff]
        %v1008 = vld [vmem:[#allocation22 + $0x8] sm:$0xff]
        %v1009 = vld [vmem:[#allocation22 + $0x10] sm:$0xff]
        %v1010 = vld [vmem:[#allocation22 + $0x18] sm:$0xff]
        %v1011 = vld [vmem:[#allocation22 + $0x20] sm:$0xff]
        %v1012 = vld [vmem:[#allocation22 + $0x28] sm:$0xff]
        %v1013 = vld [vmem:[#allocation22 + $0x30] sm:$0xff]
        %v1014 = vld [vmem:[#allocation22 + $0x38] sm:$0xff]
        %v1015 = vld [vmem:[#allocation22 + $0x40] sm:$0xff]
        %v1016 = vld [vmem:[#allocation22 + $0x48] sm:$0xff]
        %v1017 = vld [vmem:[#allocation22 + $0x50] sm:$0xff]
        %v1018 = vld [vmem:[#allocation22 + $0x58] sm:$0xff]
        %v1019 = vld [vmem:[#allocation22 + $0x60] sm:$0xff]
        %v1020 = vld [vmem:[#allocation22 + $0x68] sm:$0xff]
        %v1021 = vld [vmem:[#allocation22 + $0x70] sm:$0xff]
        %v1022 = vld [vmem:[#allocation22 + $0x78] sm:$0xff]
        %v1023 = vld [vmem:[%s968] sm:$0xff]
        %v1024 = vpack.c.bf16 %v1023, %v1023
        %v1025 = vld [vmem:[#allocation7] sm:$0xf]
        %v1026 = vld [vmem:[#allocation7 + $0x4] sm:$0xf]
        %v1027 = vld [vmem:[#allocation8] sm:$0x1]
        %v1029 = vlaneseq
        %v1030 = vshrl.u32 %v1029, 7
        %v1031 = vsub.s32 0, %v1030
        %v1032 = vrot.slane %v1027, %v1031
        %v1036 = vunpack.c.l.b16 %v1025
        %v1037 = vunpack.c.l.b16 %v1026
        %v1038 = vpack.c.b16 %v1037, %v1036
        %vm1040 = vcmask 130048
        %v1042 = vsel %vm1040, %v1024, 0
        %1044 = vmatprep.subr.bf16.mxu0 0
        %1045 = vmatpush1.bf16.msra.mxu0 %v1038
        %1046 = vmatprep.subr.bf16.mxu0 0
        %1047 = vmatpush1.bf16.msra.mxu0 0
        %1048 = vmatprep.subr.bf16.mxu0 0
        %1049 = vmatpush1.bf16.msra.mxu0 0
        %1050 = vmatprep.subr.bf16.mxu0 0
        %1051 = vmatpush1.bf16.msra.mxu0 0
        %1052 = vmatprep.subr.bf16.mxu0 0
        %1053 = vmatpush1.bf16.msra.mxu0 0
        %1054 = vmatprep.subr.bf16.mxu0 0
        %1055 = vmatpush1.bf16.msra.mxu0 0
        %1056 = vmatprep.subr.bf16.mxu0 0
        %1057 = vmatpush1.bf16.msra.mxu0 0
        %1058 = vmatprep.subr.bf16.mxu0 0
        %1059 = vmatpush1.bf16.msra.mxu0 0
        %1060 = vmatprep.subr.bf16.mxu0 0
        %1061 = vmatpush1.bf16.msra.mxu0 0
        %1062 = vmatprep.subr.bf16.mxu0 0
        %1063 = vmatpush1.bf16.msra.mxu0 0
        %1064 = vmatprep.subr.bf16.mxu0 0
        %1065 = vmatpush1.bf16.msra.mxu0 0
        %1066 = vmatprep.subr.bf16.mxu0 0
        %1067 = vmatpush1.bf16.msra.mxu0 0
        %1068 = vmatprep.subr.bf16.mxu0 0
        %1069 = vmatpush1.bf16.msra.mxu0 0
        %1070 = vmatprep.subr.bf16.mxu0 0
        %1071 = vmatpush1.bf16.msra.mxu0 0
        %1072 = vmatprep.subr.bf16.mxu0 0
        %1073 = vmatpush1.bf16.msra.mxu0 0
        %1074 = vmatprep.subr.bf16.mxu0 0
        %1075 = vmatpush1.bf16.msra.mxu0 0
        %1076 = vmatprep.mubr.bf16.mxu0 0
        %1077 = vmatmul.mubr.bf16.gmra.mrb[0].mxu0 %v1042
        %v1078 = vpop.f32.mrb[0].mxu0
        %v1079 = vadd.f32 %v1032, %v1078
        %v1080 = vpop.f32.mrb[0].mxu0
        %v1081 = vpop.f32.mrb[0].mxu0
        %v1082 = vpop.f32.mrb[0].mxu0
        %1083 = vdwg.mxu0
        %v1084 = vmax.f32 %v1079, 0.0
        %v1085 = vpack.c.bf16 %v1084, %v1084
        %v1087 = vlaneseq
        %v1088 = vshrl.u32 %v1087, 7
        %v1089 = vsub.s32 0, %v1088
        %v1090 = vrot.slane %v1006, %v1089
        %v1091 = vlaneseq
        %v1092 = vshrl.u32 %v1091, 7
        %v1093 = vsub.s32 1, %v1092
        %v1094 = vrot.slane %v1006, %v1093
        %v1095 = vlaneseq
        %v1096 = vshrl.u32 %v1095, 7
        %v1097 = vsub.s32 2, %v1096
        %v1098 = vrot.slane %v1006, %v1097
        %v1134 = vunpack.c.l.b16 %v974
        %v1135 = vunpack.c.h.b16 %v974
        %v1136 = vunpack.c.l.b16 %v975
        %v1137 = vunpack.c.l.b16 %v976
        %v1138 = vunpack.c.h.b16 %v976
        %v1139 = vunpack.c.l.b16 %v977
        %v1140 = vunpack.c.l.b16 %v978
        %v1141 = vunpack.c.h.b16 %v978
        %v1142 = vunpack.c.l.b16 %v979
        %v1143 = vunpack.c.l.b16 %v980
        %v1144 = vunpack.c.h.b16 %v980
        %v1145 = vunpack.c.l.b16 %v981
        %v1146 = vunpack.c.l.b16 %v982
        %v1147 = vunpack.c.h.b16 %v982
        %v1148 = vunpack.c.l.b16 %v983
        %v1149 = vunpack.c.l.b16 %v984
        %v1150 = vunpack.c.h.b16 %v984
        %v1151 = vunpack.c.l.b16 %v985
        %v1152 = vunpack.c.l.b16 %v986
        %v1153 = vunpack.c.h.b16 %v986
        %v1154 = vunpack.c.l.b16 %v987
        %v1155 = vunpack.c.l.b16 %v988
        %v1156 = vunpack.c.h.b16 %v988
        %v1157 = vunpack.c.l.b16 %v989
        %v1158 = vunpack.c.l.b16 %v990
        %v1159 = vunpack.c.h.b16 %v990
        %v1160 = vunpack.c.l.b16 %v991
        %v1161 = vunpack.c.l.b16 %v992
        %v1162 = vunpack.c.h.b16 %v992
        %v1163 = vunpack.c.l.b16 %v993
        %v1164 = vunpack.c.l.b16 %v994
        %v1165 = vunpack.c.h.b16 %v994
        %v1166 = vunpack.c.l.b16 %v995
        %v1167 = vunpack.c.l.b16 %v996
        %v1168 = vunpack.c.h.b16 %v996
        %v1169 = vunpack.c.l.b16 %v997
        %v1170 = vunpack.c.l.b16 %v998
        %v1171 = vunpack.c.h.b16 %v998
        %v1172 = vunpack.c.l.b16 %v999
        %v1173 = vunpack.c.l.b16 %v1000
        %v1174 = vunpack.c.h.b16 %v1000
        %v1175 = vunpack.c.l.b16 %v1001
        %v1176 = vunpack.c.l.b16 %v1002
        %v1177 = vunpack.c.h.b16 %v1002
        %v1178 = vunpack.c.l.b16 %v1003
        %v1179 = vunpack.c.l.b16 %v1004
        %v1180 = vunpack.c.h.b16 %v1004
        %v1181 = vunpack.c.l.b16 %v1005
        %v1182 = vpack.c.b16 %v1137, %v1134
        %v1183 = vpack.c.b16 %v1138, %v1135
        %v1184 = vpack.c.b16 %v1139, %v1136
        %v1185 = vpack.c.b16 %v1143, %v1140
        %v1186 = vpack.c.b16 %v1144, %v1141
        %v1187 = vpack.c.b16 %v1145, %v1142
        %v1188 = vpack.c.b16 %v1149, %v1146
        %v1189 = vpack.c.b16 %v1150, %v1147
        %v1190 = vpack.c.b16 %v1151, %v1148
        %v1191 = vpack.c.b16 %v1155, %v1152
        %v1192 = vpack.c.b16 %v1156, %v1153
        %v1193 = vpack.c.b16 %v1157, %v1154
        %v1194 = vpack.c.b16 %v1161, %v1158
        %v1195 = vpack.c.b16 %v1162, %v1159
        %v1196 = vpack.c.b16 %v1163, %v1160
        %v1197 = vpack.c.b16 %v1167, %v1164
        %v1198 = vpack.c.b16 %v1168, %v1165
        %v1199 = vpack.c.b16 %v1169, %v1166
        %v1200 = vpack.c.b16 %v1173, %v1170
        %v1201 = vpack.c.b16 %v1174, %v1171
        %v1202 = vpack.c.b16 %v1175, %v1172
        %v1203 = vpack.c.b16 %v1179, %v1176
        %v1204 = vpack.c.b16 %v1180, %v1177
        %v1205 = vpack.c.b16 %v1181, %v1178
        %1230 = vmatprep.subr.bf16.mxu0 %v1183
        %1231 = vmatpush1.bf16.msra.mxu0 %v1182
        %1232 = vmatprep.subr.bf16.mxu0 %v1186
        %1233 = vmatpush1.bf16.msra.mxu0 %v1185
        %1234 = vmatprep.subr.bf16.mxu0 %v1189
        %1235 = vmatpush1.bf16.msra.mxu0 %v1188
        %1236 = vmatprep.subr.bf16.mxu0 %v1192
        %1237 = vmatpush1.bf16.msra.mxu0 %v1191
        %1238 = vmatprep.subr.bf16.mxu0 %v1195
        %1239 = vmatpush1.bf16.msra.mxu0 %v1194
        %1240 = vmatprep.subr.bf16.mxu0 %v1198
        %1241 = vmatpush1.bf16.msra.mxu0 %v1197
        %1242 = vmatprep.subr.bf16.mxu0 %v1201
        %1243 = vmatpush1.bf16.msra.mxu0 %v1200
        %1244 = vmatprep.subr.bf16.mxu0 %v1204
        %1245 = vmatpush1.bf16.msra.mxu0 %v1203
        %1246 = vmatprep.subr.bf16.mxu0 0
        %1247 = vmatpush1.bf16.msra.mxu0 0
        %1248 = vmatprep.subr.bf16.mxu0 0
        %1249 = vmatpush1.bf16.msra.mxu0 0
        %1250 = vmatprep.subr.bf16.mxu0 0
        %1251 = vmatpush1.bf16.msra.mxu0 0
        %1252 = vmatprep.subr.bf16.mxu0 0
        %1253 = vmatpush1.bf16.msra.mxu0 0
        %1254 = vmatprep.subr.bf16.mxu0 0
        %1255 = vmatpush1.bf16.msra.mxu0 0
        %1256 = vmatprep.subr.bf16.mxu0 0
        %1257 = vmatpush1.bf16.msra.mxu0 0
        %1258 = vmatprep.subr.bf16.mxu0 0
        %1259 = vmatpush1.bf16.msra.mxu0 0
        %1260 = vmatprep.subr.bf16.mxu0 0
        %1261 = vmatpush1.bf16.msra.mxu0 0
        %1262 = vmatprep.mubr.bf16.mxu0 0
        %1263 = vmatmul.mubr.bf16.gmra.mrb[0].mxu0 %v1085
        %v1264 = vpop.f32.mrb[0].mxu0
        %v1265 = vadd.f32 %v1090, %v1264
        %v1266 = vpop.f32.mrb[0].mxu0
        %v1267 = vadd.f32 %v1094, %v1266
        %v1268 = vpop.f32.mrb[0].mxu0
        %v1269 = vpop.f32.mrb[0].mxu0
        %1270 = vdwg.mxu0
        %1271 = vmatprep.subr.bf16.mxu0 0
        %1272 = vmatpush1.bf16.msra.mxu0 %v1184
        %1273 = vmatprep.subr.bf16.mxu0 0
        %1274 = vmatpush1.bf16.msra.mxu0 %v1187
        %1275 = vmatprep.subr.bf16.mxu0 0
        %1276 = vmatpush1.bf16.msra.mxu0 %v1190
        %1277 = vmatprep.subr.bf16.mxu0 0
        %1278 = vmatpush1.bf16.msra.mxu0 %v1193
        %1279 = vmatprep.subr.bf16.mxu0 0
        %1280 = vmatpush1.bf16.msra.mxu0 %v1196
        %1281 = vmatprep.subr.bf16.mxu0 0
        %1282 = vmatpush1.bf16.msra.mxu0 %v1199
        %1283 = vmatprep.subr.bf16.mxu0 0
        %1284 = vmatpush1.bf16.msra.mxu0 %v1202
        %1285 = vmatprep.subr.bf16.mxu0 0
        %1286 = vmatpush1.bf16.msra.mxu0 %v1205
        %1287 = vmatprep.subr.bf16.mxu0 0
        %1288 = vmatpush1.bf16.msra.mxu0 0
        %1289 = vmatprep.subr.bf16.mxu0 0
        %1290 = vmatpush1.bf16.msra.mxu0 0
        %1291 = vmatprep.subr.bf16.mxu0 0
        %1292 = vmatpush1.bf16.msra.mxu0 0
        %1293 = vmatprep.subr.bf16.mxu0 0
        %1294 = vmatpush1.bf16.msra.mxu0 0
        %1295 = vmatprep.subr.bf16.mxu0 0
        %1296 = vmatpush1.bf16.msra.mxu0 0
        %1297 = vmatprep.subr.bf16.mxu0 0
        %1298 = vmatpush1.bf16.msra.mxu0 0
        %1299 = vmatprep.subr.bf16.mxu0 0
        %1300 = vmatpush1.bf16.msra.mxu0 0
        %1301 = vmatprep.subr.bf16.mxu0 0
        %1302 = vmatpush1.bf16.msra.mxu0 0
        %1303 = vmatprep.mubr.bf16.mxu0 0
        %1304 = vmatmul.mubr.bf16.gmra.mrb[0].mxu0 %v1085
        %v1305 = vpop.f32.mrb[0].mxu0
        %v1306 = vadd.f32 %v1098, %v1305
        %v1307 = vpop.f32.mrb[0].mxu0
        %v1308 = vpop.f32.mrb[0].mxu0
        %v1309 = vpop.f32.mrb[0].mxu0
        %1310 = vdwg.mxu0
        %v1311 = vmul.f32 %v1265, 0.25
        %v1312 = vld [vmem:[%s828] sm:$0xff]
        %v1313 = vpack.c.bf16 %v1312, %v1312
        %v1314 = vld [vmem:[#allocation10] sm:$0xf]
        %v1315 = vld [vmem:[#allocation10 + $0x4] sm:$0xf]
        %v1316 = vld [vmem:[#allocation10 + $0x8] sm:$0xf]
        %v1317 = vld [vmem:[#allocation11] sm:$0x1]
        %v1319 = vlaneseq
        %v1320 = vshrl.u32 %v1319, 7
        %v1321 = vsub.s32 0, %v1320
        %v1322 = vrot.slane %v1317, %v1321
        %v1327 = vunpack.c.l.b16 %v1314
        %v1328 = vunpack.c.l.b16 %v1315
        %v1329 = vunpack.c.l.b16 %v1316
        %v1330 = vpack.c.b16 %v1328, %v1327
        %v1331 = vpack.c.b16 %v1329, %v1329
        %vm1333 = vcmask 195584
        %v1335 = vsel %vm1333, %v1313, 0
        %vm1337 = vcmask 1043456
        %v1339 = vsel %vm1337, %v1331, 0
        %1341 = vmatprep.subr.bf16.mxu0 0
        %1342 = vmatpush1.bf16.msra.mxu0 %v1330
        %1343 = vmatprep.subr.bf16.mxu0 0
        %1344 = vmatpush1.bf16.msra.mxu0 %v1339
        %1345 = vmatprep.subr.bf16.mxu0 0
        %1346 = vmatpush1.bf16.msra.mxu0 0
        %1347 = vmatprep.subr.bf16.mxu0 0
        %1348 = vmatpush1.bf16.msra.mxu0 0
        %1349 = vmatprep.subr.bf16.mxu0 0
        %1350 = vmatpush1.bf16.msra.mxu0 0
        %1351 = vmatprep.subr.bf16.mxu0 0
        %1352 = vmatpush1.bf16.msra.mxu0 0
        %1353 = vmatprep.subr.bf16.mxu0 0
        %1354 = vmatpush1.bf16.msra.mxu0 0
        %1355 = vmatprep.subr.bf16.mxu0 0
        %1356 = vmatpush1.bf16.msra.mxu0 0
        %1357 = vmatprep.subr.bf16.mxu0 0
        %1358 = vmatpush1.bf16.msra.mxu0 0
        %1359 = vmatprep.subr.bf16.mxu0 0
        %1360 = vmatpush1.bf16.msra.mxu0 0
        %1361 = vmatprep.subr.bf16.mxu0 0
        %1362 = vmatpush1.bf16.msra.mxu0 0
        %1363 = vmatprep.subr.bf16.mxu0 0
        %1364 = vmatpush1.bf16.msra.mxu0 0
        %1365 = vmatprep.subr.bf16.mxu0 0
        %1366 = vmatpush1.bf16.msra.mxu0 0
        %1367 = vmatprep.subr.bf16.mxu0 0
        %1368 = vmatpush1.bf16.msra.mxu0 0
        %1369 = vmatprep.subr.bf16.mxu0 0
        %1370 = vmatpush1.bf16.msra.mxu0 0
        %1371 = vmatprep.subr.bf16.mxu0 0
        %1372 = vmatpush1.bf16.msra.mxu0 0
        %1373 = vmatprep.mubr.bf16.mxu0 0
        %1374 = vmatmul.mubr.bf16.gmra.mrb[0].mxu0 %v1335
        %v1375 = vpop.f32.mrb[0].mxu0
        %v1376 = vadd.f32 %v1322, %v1375
        %v1377 = vpop.f32.mrb[0].mxu0
        %v1378 = vpop.f32.mrb[0].mxu0
        %v1379 = vpop.f32.mrb[0].mxu0
        %1380 = vdwg.mxu0
        %v1381 = vmax.f32 %v1376, 0.0
        %v1382 = vpack.c.bf16 %v1381, %v1381
        %1383 = vmatprep.subr.bf16.mxu0 %v1183
        %1384 = vmatpush1.bf16.msra.mxu0 %v1182
        %1385 = vmatprep.subr.bf16.mxu0 %v1186
        %1386 = vmatpush1.bf16.msra.mxu0 %v1185
        %1387 = vmatprep.subr.bf16.mxu0 %v1189
        %1388 = vmatpush1.bf16.msra.mxu0 %v1188
        %1389 = vmatprep.subr.bf16.mxu0 %v1192
        %1390 = vmatpush1.bf16.msra.mxu0 %v1191
        %1391 = vmatprep.subr.bf16.mxu0 %v1195
        %1392 = vmatpush1.bf16.msra.mxu0 %v1194
        %1393 = vmatprep.subr.bf16.mxu0 %v1198
        %1394 = vmatpush1.bf16.msra.mxu0 %v1197
        %1395 = vmatprep.subr.bf16.mxu0 %v1201
        %1396 = vmatpush1.bf16.msra.mxu0 %v1200
        %1397 = vmatprep.subr.bf16.mxu0 %v1204
        %1398 = vmatpush1.bf16.msra.mxu0 %v1203
        %1399 = vmatprep.subr.bf16.mxu0 0
        %1400 = vmatpush1.bf16.msra.mxu0 0
        %1401 = vmatprep.subr.bf16.mxu0 0
        %1402 = vmatpush1.bf16.msra.mxu0 0
        %1403 = vmatprep.subr.bf16.mxu0 0
        %1404 = vmatpush1.bf16.msra.mxu0 0
        %1405 = vmatprep.subr.bf16.mxu0 0
        %1406 = vmatpush1.bf16.msra.mxu0 0
        %1407 = vmatprep.subr.bf16.mxu0 0
        %1408 = vmatpush1.bf16.msra.mxu0 0
        %1409 = vmatprep.subr.bf16.mxu0 0
        %1410 = vmatpush1.bf16.msra.mxu0 0
        %1411 = vmatprep.subr.bf16.mxu0 0
        %1412 = vmatpush1.bf16.msra.mxu0 0
        %1413 = vmatprep.subr.bf16.mxu0 0
        %1414 = vmatpush1.bf16.msra.mxu0 0
        %1415 = vmatprep.mubr.bf16.mxu0 0
        %1416 = vmatmul.mubr.bf16.gmra.mrb[0].mxu0 %v1382
        %v1417 = vpop.f32.mrb[0].mxu0
        %v1418 = vadd.f32 %v1090, %v1417
        %v1419 = vpop.f32.mrb[0].mxu0
        %v1420 = vadd.f32 %v1094, %v1419
        %v1421 = vpop.f32.mrb[0].mxu0
        %v1422 = vpop.f32.mrb[0].mxu0
        %1423 = vdwg.mxu0
        %1424 = vmatprep.subr.bf16.mxu0 0
        %1425 = vmatpush1.bf16.msra.mxu0 %v1184
        %1426 = vmatprep.subr.bf16.mxu0 0
        %1427 = vmatpush1.bf16.msra.mxu0 %v1187
        %1428 = vmatprep.subr.bf16.mxu0 0
        %1429 = vmatpush1.bf16.msra.mxu0 %v1190
        %1430 = vmatprep.subr.bf16.mxu0 0
        %1431 = vmatpush1.bf16.msra.mxu0 %v1193
        %1432 = vmatprep.subr.bf16.mxu0 0
        %1433 = vmatpush1.bf16.msra.mxu0 %v1196
        %1434 = vmatprep.subr.bf16.mxu0 0
        %1435 = vmatpush1.bf16.msra.mxu0 %v1199
        %1436 = vmatprep.subr.bf16.mxu0 0
        %1437 = vmatpush1.bf16.msra.mxu0 %v1202
        %1438 = vmatprep.subr.bf16.mxu0 0
        %1439 = vmatpush1.bf16.msra.mxu0 %v1205
        %1440 = vmatprep.subr.bf16.mxu0 0
        %1441 = vmatpush1.bf16.msra.mxu0 0
        %1442 = vmatprep.subr.bf16.mxu0 0
        %1443 = vmatpush1.bf16.msra.mxu0 0
        %1444 = vmatprep.subr.bf16.mxu0 0
        %1445 = vmatpush1.bf16.msra.mxu0 0
        %1446 = vmatprep.subr.bf16.mxu0 0
        %1447 = vmatpush1.bf16.msra.mxu0 0
        %1448 = vmatprep.subr.bf16.mxu0 0
        %1449 = vmatpush1.bf16.msra.mxu0 0
        %1450 = vmatprep.subr.bf16.mxu0 0
        %1451 = vmatpush1.bf16.msra.mxu0 0
        %1452 = vmatprep.subr.bf16.mxu0 0
        %1453 = vmatpush1.bf16.msra.mxu0 0
        %1454 = vmatprep.subr.bf16.mxu0 0
        %1455 = vmatpush1.bf16.msra.mxu0 0
        %1456 = vmatprep.mubr.bf16.mxu0 0
        %1457 = vmatmul.mubr.bf16.gmra.mrb[0].mxu0 %v1382
        %v1458 = vpop.f32.mrb[0].mxu0
        %v1459 = vadd.f32 %v1098, %v1458
        %v1460 = vpop.f32.mrb[0].mxu0
        %v1461 = vpop.f32.mrb[0].mxu0
        %v1462 = vpop.f32.mrb[0].mxu0
        %1463 = vdwg.mxu0
        %v1464 = vmul.f32 %v1418, 0.25
        %v1465 = vld [vmem:[%s837] sm:$0xff]
        %v1466 = vpack.c.bf16 %v1465, %v1465
        %v1467 = vld [vmem:[#allocation13] sm:$0xf]
        %v1468 = vld [vmem:[#allocation13 + $0x4] sm:$0xf]
        %v1469 = vld [vmem:[#allocation13 + $0x8] sm:$0xf]
        %v1470 = vld [vmem:[#allocation13 + $0xc] sm:$0xf]
        %v1471 = vld [vmem:[#allocation14] sm:$0x1]
        %v1473 = vlaneseq
        %v1474 = vshrl.u32 %v1473, 7
        %v1475 = vsub.s32 0, %v1474
        %v1476 = vrot.slane %v1471, %v1475
        %v1482 = vunpack.c.l.b16 %v1467
        %v1483 = vunpack.c.l.b16 %v1468
        %v1484 = vunpack.c.l.b16 %v1469
        %v1485 = vunpack.c.l.b16 %v1470
        %v1486 = vpack.c.b16 %v1483, %v1482
        %v1487 = vpack.c.b16 %v1485, %v1484
        %vm1490 = vcmask 261120
        %v1492 = vsel %vm1490, %v1466, 0
        %1494 = vmatprep.subr.bf16.mxu0 0
        %1495 = vmatpush1.bf16.msra.mxu0 %v1486
        %1496 = vmatprep.subr.bf16.mxu0 0
        %1497 = vmatpush1.bf16.msra.mxu0 %v1487
        %1498 = vmatprep.subr.bf16.mxu0 0
        %1499 = vmatpush1.bf16.msra.mxu0 0
        %1500 = vmatprep.subr.bf16.mxu0 0
        %1501 = vmatpush1.bf16.msra.mxu0 0
        %1502 = vmatprep.subr.bf16.mxu0 0
        %1503 = vmatpush1.bf16.msra.mxu0 0
        %1504 = vmatprep.subr.bf16.mxu0 0
        %1505 = vmatpush1.bf16.msra.mxu0 0
        %1506 = vmatprep.subr.bf16.mxu0 0
        %1507 = vmatpush1.bf16.msra.mxu0 0
        %1508 = vmatprep.subr.bf16.mxu0 0
        %1509 = vmatpush1.bf16.msra.mxu0 0
        %1510 = vmatprep.subr.bf16.mxu0 0
        %1511 = vmatpush1.bf16.msra.mxu0 0
        %1512 = vmatprep.subr.bf16.mxu0 0
        %1513 = vmatpush1.bf16.msra.mxu0 0
        %1514 = vmatprep.subr.bf16.mxu0 0
        %1515 = vmatpush1.bf16.msra.mxu0 0
        %1516 = vmatprep.subr.bf16.mxu0 0
        %1517 = vmatpush1.bf16.msra.mxu0 0
        %1518 = vmatprep.subr.bf16.mxu0 0
        %1519 = vmatpush1.bf16.msra.mxu0 0
        %1520 = vmatprep.subr.bf16.mxu0 0
        %1521 = vmatpush1.bf16.msra.mxu0 0
        %1522 = vmatprep.subr.bf16.mxu0 0
        %1523 = vmatpush1.bf16.msra.mxu0 0
        %1524 = vmatprep.subr.bf16.mxu0 0
        %1525 = vmatpush1.bf16.msra.mxu0 0
        %1526 = vmatprep.mubr.bf16.mxu0 0
        %1527 = vmatmul.mubr.bf16.gmra.mrb[0].mxu0 %v1492
        %v1528 = vpop.f32.mrb[0].mxu0
        %v1529 = vadd.f32 %v1476, %v1528
        %v1530 = vpop.f32.mrb[0].mxu0
        %v1531 = vpop.f32.mrb[0].mxu0
        %v1532 = vpop.f32.mrb[0].mxu0
        %1533 = vdwg.mxu0
        %v1534 = vmax.f32 %v1529, 0.0
        %v1535 = vpack.c.bf16 %v1534, %v1534
        %1536 = vmatprep.subr.bf16.mxu0 %v1183
        %1537 = vmatpush1.bf16.msra.mxu0 %v1182
        %1538 = vmatprep.subr.bf16.mxu0 %v1186
        %1539 = vmatpush1.bf16.msra.mxu0 %v1185
        %1540 = vmatprep.subr.bf16.mxu0 %v1189
        %1541 = vmatpush1.bf16.msra.mxu0 %v1188
        %1542 = vmatprep.subr.bf16.mxu0 %v1192
        %1543 = vmatpush1.bf16.msra.mxu0 %v1191
        %1544 = vmatprep.subr.bf16.mxu0 %v1195
        %1545 = vmatpush1.bf16.msra.mxu0 %v1194
        %1546 = vmatprep.subr.bf16.mxu0 %v1198
        %1547 = vmatpush1.bf16.msra.mxu0 %v1197
        %1548 = vmatprep.subr.bf16.mxu0 %v1201
        %1549 = vmatpush1.bf16.msra.mxu0 %v1200
        %1550 = vmatprep.subr.bf16.mxu0 %v1204
        %1551 = vmatpush1.bf16.msra.mxu0 %v1203
        %1552 = vmatprep.subr.bf16.mxu0 0
        %1553 = vmatpush1.bf16.msra.mxu0 0
        %1554 = vmatprep.subr.bf16.mxu0 0
        %1555 = vmatpush1.bf16.msra.mxu0 0
        %1556 = vmatprep.subr.bf16.mxu0 0
        %1557 = vmatpush1.bf16.msra.mxu0 0
        %1558 = vmatprep.subr.bf16.mxu0 0
        %1559 = vmatpush1.bf16.msra.mxu0 0
        %1560 = vmatprep.subr.bf16.mxu0 0
        %1561 = vmatpush1.bf16.msra.mxu0 0
        %1562 = vmatprep.subr.bf16.mxu0 0
        %1563 = vmatpush1.bf16.msra.mxu0 0
        %1564 = vmatprep.subr.bf16.mxu0 0
        %1565 = vmatpush1.bf16.msra.mxu0 0
        %1566 = vmatprep.subr.bf16.mxu0 0
        %1567 = vmatpush1.bf16.msra.mxu0 0
        %1568 = vmatprep.mubr.bf16.mxu0 0
        %1569 = vmatmul.mubr.bf16.gmra.mrb[0].mxu0 %v1535
        %v1570 = vpop.f32.mrb[0].mxu0
        %v1571 = vadd.f32 %v1090, %v1570
        %v1572 = vpop.f32.mrb[0].mxu0
        %v1573 = vadd.f32 %v1094, %v1572
        %v1574 = vpop.f32.mrb[0].mxu0
        %v1575 = vpop.f32.mrb[0].mxu0
        %1576 = vdwg.mxu0
        %1577 = vmatprep.subr.bf16.mxu0 0
        %1578 = vmatpush1.bf16.msra.mxu0 %v1184
        %1579 = vmatprep.subr.bf16.mxu0 0
        %1580 = vmatpush1.bf16.msra.mxu0 %v1187
        %1581 = vmatprep.subr.bf16.mxu0 0
        %1582 = vmatpush1.bf16.msra.mxu0 %v1190
        %1583 = vmatprep.subr.bf16.mxu0 0
        %1584 = vmatpush1.bf16.msra.mxu0 %v1193
        %1585 = vmatprep.subr.bf16.mxu0 0
        %1586 = vmatpush1.bf16.msra.mxu0 %v1196
        %1587 = vmatprep.subr.bf16.mxu0 0
        %1588 = vmatpush1.bf16.msra.mxu0 %v1199
        %1589 = vmatprep.subr.bf16.mxu0 0
        %1590 = vmatpush1.bf16.msra.mxu0 %v1202
        %1591 = vmatprep.subr.bf16.mxu0 0
        %1592 = vmatpush1.bf16.msra.mxu0 %v1205
        %1593 = vmatprep.subr.bf16.mxu0 0
        %1594 = vmatpush1.bf16.msra.mxu0 0
        %1595 = vmatprep.subr.bf16.mxu0 0
        %1596 = vmatpush1.bf16.msra.mxu0 0
        %1597 = vmatprep.subr.bf16.mxu0 0
        %1598 = vmatpush1.bf16.msra.mxu0 0
        %1599 = vmatprep.subr.bf16.mxu0 0
        %1600 = vmatpush1.bf16.msra.mxu0 0
        %1601 = vmatprep.subr.bf16.mxu0 0
        %1602 = vmatpush1.bf16.msra.mxu0 0
        %1603 = vmatprep.subr.bf16.mxu0 0
        %1604 = vmatpush1.bf16.msra.mxu0 0
        %1605 = vmatprep.subr.bf16.mxu0 0
        %1606 = vmatpush1.bf16.msra.mxu0 0
        %1607 = vmatprep.subr.bf16.mxu0 0
        %1608 = vmatpush1.bf16.msra.mxu0 0
        %1609 = vmatprep.mubr.bf16.mxu0 0
        %1610 = vmatmul.mubr.bf16.gmra.mrb[0].mxu0 %v1535
        %v1611 = vpop.f32.mrb[0].mxu0
        %v1612 = vadd.f32 %v1098, %v1611
        %v1613 = vpop.f32.mrb[0].mxu0
        %v1614 = vpop.f32.mrb[0].mxu0
        %v1615 = vpop.f32.mrb[0].mxu0
        %1616 = vdwg.mxu0
        %v1617 = vmul.f32 %v1571, 0.25
        %v1618 = vld [vmem:[%s972] sm:$0xff]
        %v1619 = vpack.c.bf16 %v1618, %v1618
        %v1620 = vld [vmem:[#allocation16] sm:$0xf]
        %v1621 = vld [vmem:[#allocation17] sm:$0x1]
        %v1623 = vlaneseq
        %v1624 = vshrl.u32 %v1623, 7
        %v1625 = vsub.s32 0, %v1624
        %v1626 = vrot.slane %v1621, %v1625
        %vm1628 = vcmask 64512
        %v1630 = vsel %vm1628, %v1619, 0
        %v1633 = vsel %vm1337, %v1620, 0
        %1635 = vmatprep.subr.bf16.mxu0 0
        %1636 = vmatpush1.bf16.msra.mxu0 %v1633
        %1637 = vmatprep.subr.bf16.mxu0 0
        %1638 = vmatpush1.bf16.msra.mxu0 0
        %1639 = vmatprep.subr.bf16.mxu0 0
        %1640 = vmatpush1.bf16.msra.mxu0 0
        %1641 = vmatprep.subr.bf16.mxu0 0
        %1642 = vmatpush1.bf16.msra.mxu0 0
        %1643 = vmatprep.subr.bf16.mxu0 0
        %1644 = vmatpush1.bf16.msra.mxu0 0
        %1645 = vmatprep.subr.bf16.mxu0 0
        %1646 = vmatpush1.bf16.msra.mxu0 0
        %1647 = vmatprep.subr.bf16.mxu0 0
        %1648 = vmatpush1.bf16.msra.mxu0 0
        %1649 = vmatprep.subr.bf16.mxu0 0
        %1650 = vmatpush1.bf16.msra.mxu0 0
        %1651 = vmatprep.subr.bf16.mxu0 0
        %1652 = vmatpush1.bf16.msra.mxu0 0
        %1653 = vmatprep.subr.bf16.mxu0 0
        %1654 = vmatpush1.bf16.msra.mxu0 0
        %1655 = vmatprep.subr.bf16.mxu0 0
        %1656 = vmatpush1.bf16.msra.mxu0 0
        %1657 = vmatprep.subr.bf16.mxu0 0
        %1658 = vmatpush1.bf16.msra.mxu0 0
        %1659 = vmatprep.subr.bf16.mxu0 0
        %1660 = vmatpush1.bf16.msra.mxu0 0
        %1661 = vmatprep.subr.bf16.mxu0 0
        %1662 = vmatpush1.bf16.msra.mxu0 0
        %1663 = vmatprep.subr.bf16.mxu0 0
        %1664 = vmatpush1.bf16.msra.mxu0 0
        %1665 = vmatprep.subr.bf16.mxu0 0
        %1666 = vmatpush1.bf16.msra.mxu0 0
        %1667 = vmatprep.mubr.bf16.mxu0 0
        %1668 = vmatmul.mubr.bf16.gmra.mrb[0].mxu0 %v1630
        %v1669 = vpop.f32.mrb[0].mxu0
        %v1670 = vadd.f32 %v1626, %v1669
        %v1671 = vpop.f32.mrb[0].mxu0
        %v1672 = vpop.f32.mrb[0].mxu0
        %v1673 = vpop.f32.mrb[0].mxu0
        %1674 = vdwg.mxu0
        %v1675 = vmax.f32 %v1670, 0.0
        %v1676 = vpack.c.bf16 %v1675, %v1675
        %1677 = vmatprep.subr.bf16.mxu0 %v1183
        %1678 = vmatpush1.bf16.msra.mxu0 %v1182
        %1679 = vmatprep.subr.bf16.mxu0 %v1186
        %1680 = vmatpush1.bf16.msra.mxu0 %v1185
        %1681 = vmatprep.subr.bf16.mxu0 %v1189
        %1682 = vmatpush1.bf16.msra.mxu0 %v1188
        %1683 = vmatprep.subr.bf16.mxu0 %v1192
        %1684 = vmatpush1.bf16.msra.mxu0 %v1191
        %1685 = vmatprep.subr.bf16.mxu0 %v1195
        %1686 = vmatpush1.bf16.msra.mxu0 %v1194
        %1687 = vmatprep.subr.bf16.mxu0 %v1198
        %1688 = vmatpush1.bf16.msra.mxu0 %v1197
        %1689 = vmatprep.subr.bf16.mxu0 %v1201
        %1690 = vmatpush1.bf16.msra.mxu0 %v1200
        %1691 = vmatprep.subr.bf16.mxu0 %v1204
        %1692 = vmatpush1.bf16.msra.mxu0 %v1203
        %1693 = vmatprep.subr.bf16.mxu0 0
        %1694 = vmatpush1.bf16.msra.mxu0 0
        %1695 = vmatprep.subr.bf16.mxu0 0
        %1696 = vmatpush1.bf16.msra.mxu0 0
        %1697 = vmatprep.subr.bf16.mxu0 0
        %1698 = vmatpush1.bf16.msra.mxu0 0
        %1699 = vmatprep.subr.bf16.mxu0 0
        %1700 = vmatpush1.bf16.msra.mxu0 0
        %1701 = vmatprep.subr.bf16.mxu0 0
        %1702 = vmatpush1.bf16.msra.mxu0 0
        %1703 = vmatprep.subr.bf16.mxu0 0
        %1704 = vmatpush1.bf16.msra.mxu0 0
        %1705 = vmatprep.subr.bf16.mxu0 0
        %1706 = vmatpush1.bf16.msra.mxu0 0
        %1707 = vmatprep.subr.bf16.mxu0 0
        %1708 = vmatpush1.bf16.msra.mxu0 0
        %1709 = vmatprep.mubr.bf16.mxu0 0
        %1710 = vmatmul.mubr.bf16.gmra.mrb[0].mxu0 %v1676
        %v1711 = vpop.f32.mrb[0].mxu0
        %v1712 = vadd.f32 %v1090, %v1711
        %v1713 = vpop.f32.mrb[0].mxu0
        %v1714 = vadd.f32 %v1094, %v1713
        %v1715 = vpop.f32.mrb[0].mxu0
        %v1716 = vpop.f32.mrb[0].mxu0
        %1717 = vdwg.mxu0
        %1718 = vmatprep.subr.bf16.mxu0 0
        %1719 = vmatpush1.bf16.msra.mxu0 %v1184
        %1720 = vmatprep.subr.bf16.mxu0 0
        %1721 = vmatpush1.bf16.msra.mxu0 %v1187
        %1722 = vmatprep.subr.bf16.mxu0 0
        %1723 = vmatpush1.bf16.msra.mxu0 %v1190
        %1724 = vmatprep.subr.bf16.mxu0 0
        %1725 = vmatpush1.bf16.msra.mxu0 %v1193
        %1726 = vmatprep.subr.bf16.mxu0 0
        %1727 = vmatpush1.bf16.msra.mxu0 %v1196
        %1728 = vmatprep.subr.bf16.mxu0 0
        %1729 = vmatpush1.bf16.msra.mxu0 %v1199
        %1730 = vmatprep.subr.bf16.mxu0 0
        %1731 = vmatpush1.bf16.msra.mxu0 %v1202
        %1732 = vmatprep.subr.bf16.mxu0 0
        %1733 = vmatpush1.bf16.msra.mxu0 %v1205
        %1734 = vmatprep.subr.bf16.mxu0 0
        %1735 = vmatpush1.bf16.msra.mxu0 0
        %1736 = vmatprep.subr.bf16.mxu0 0
        %1737 = vmatpush1.bf16.msra.mxu0 0
        %1738 = vmatprep.subr.bf16.mxu0 0
        %1739 = vmatpush1.bf16.msra.mxu0 0
        %1740 = vmatprep.subr.bf16.mxu0 0
        %1741 = vmatpush1.bf16.msra.mxu0 0
        %1742 = vmatprep.subr.bf16.mxu0 0
        %1743 = vmatpush1.bf16.msra.mxu0 0
        %1744 = vmatprep.subr.bf16.mxu0 0
        %1745 = vmatpush1.bf16.msra.mxu0 0
        %1746 = vmatprep.subr.bf16.mxu0 0
        %1747 = vmatpush1.bf16.msra.mxu0 0
        %1748 = vmatprep.subr.bf16.mxu0 0
        %1749 = vmatpush1.bf16.msra.mxu0 0
        %1750 = vmatprep.mubr.bf16.mxu0 0
        %1751 = vmatmul.mubr.bf16.gmra.mrb[0].mxu0 %v1676
        %v1752 = vpop.f32.mrb[0].mxu0
        %v1753 = vadd.f32 %v1098, %v1752
        %v1754 = vpop.f32.mrb[0].mxu0
        %v1755 = vpop.f32.mrb[0].mxu0
        %v1756 = vpop.f32.mrb[0].mxu0
        %1757 = vdwg.mxu0
        %v1758 = vmul.f32 %v1712, 0.25
        %v1759 = vmul.f32 %v1311, %v1267
        %1760 = vmatprep.subr.mxu0 0.0
        %1761 = vmatpush1.msra.mxu0 %v1007
        %1762 = vmatprep.subr.mxu0 0.0
        %1763 = vmatpush1.msra.mxu0 %v1008
        %1764 = vmatprep.subr.mxu0 0.0
        %1765 = vmatpush1.msra.mxu0 %v1009
        %1766 = vmatprep.subr.mxu0 0.0
        %1767 = vmatpush1.msra.mxu0 %v1010
        %1768 = vmatprep.subr.mxu0 0.0
        %1769 = vmatpush1.msra.mxu0 %v1011
        %1770 = vmatprep.subr.mxu0 0.0
        %1771 = vmatpush1.msra.mxu0 %v1012
        %1772 = vmatprep.subr.mxu0 0.0
        %1773 = vmatpush1.msra.mxu0 %v1013
        %1774 = vmatprep.subr.mxu0 0.0
        %1775 = vmatpush1.msra.mxu0 %v1014
        %1776 = vmatprep.subr.mxu0 0.0
        %1777 = vmatpush1.msra.mxu0 %v1015
        %1778 = vmatprep.subr.mxu0 0.0
        %1779 = vmatpush1.msra.mxu0 %v1016
        %1780 = vmatprep.subr.mxu0 0.0
        %1781 = vmatpush1.msra.mxu0 %v1017
        %1782 = vmatprep.subr.mxu0 0.0
        %1783 = vmatpush1.msra.mxu0 %v1018
        %1784 = vmatprep.subr.mxu0 0.0
        %1785 = vmatpush1.msra.mxu0 %v1019
        %1786 = vmatprep.subr.mxu0 0.0
        %1787 = vmatpush1.msra.mxu0 %v1020
        %1788 = vmatprep.subr.mxu0 0.0
        %1789 = vmatpush1.msra.mxu0 %v1021
        %1790 = vmatprep.subr.mxu0 0.0
        %1791 = vmatpush1.msra.mxu0 %v1022
        %1792 = vmatprep.subr.mxu0 0.0
        %1793 = vmatpush1.msra.mxu0 0.0
        %1794 = vmatprep.subr.mxu0 0.0
        %1795 = vmatpush1.msra.mxu0 0.0
        %1796 = vmatprep.subr.mxu0 0.0
        %1797 = vmatpush1.msra.mxu0 0.0
        %1798 = vmatprep.subr.mxu0 0.0
        %1799 = vmatpush1.msra.mxu0 0.0
        %1800 = vmatprep.subr.mxu0 0.0
        %1801 = vmatpush1.msra.mxu0 0.0
        %1802 = vmatprep.subr.mxu0 0.0
        %1803 = vmatpush1.msra.mxu0 0.0
        %1804 = vmatprep.subr.mxu0 0.0
        %1805 = vmatpush1.msra.mxu0 0.0
        %1806 = vmatprep.subr.mxu0 0.0
        %1807 = vmatpush1.msra.mxu0 0.0
        %1808 = vmatprep.subr.mxu0 0.0
        %1809 = vmatpush1.msra.mxu0 0.0
        %1810 = vmatprep.subr.mxu0 0.0
        %1811 = vmatpush1.msra.mxu0 0.0
        %1812 = vmatprep.subr.mxu0 0.0
        %1813 = vmatpush1.msra.mxu0 0.0
        %1814 = vmatprep.subr.mxu0 0.0
        %1815 = vmatpush1.msra.mxu0 0.0
        %1816 = vmatprep.subr.mxu0 0.0
        %1817 = vmatpush1.msra.mxu0 0.0
        %1818 = vmatprep.subr.mxu0 0.0
        %1819 = vmatpush1.msra.mxu0 0.0
        %1820 = vmatprep.subr.mxu0 0.0
        %1821 = vmatpush1.msra.mxu0 0.0
        %1822 = vmatprep.subr.mxu0 0.0
        %1823 = vmatpush1.msra.mxu0 0.0
        %1824 = vmatprep.mubr.f32.mxu0 0.0
        %1825 = vmatmul.mubr.f32.gmra.mrb[0].mxu0 %v1759
        %v1826 = vpop.f32.mrb[0].mxu0
        %v1827 = vadd.f32 0.0, %v1826
        %v1828 = vpop.f32.mrb[0].mxu0
        %1829 = vdwg.mxu0
        %v1830 = vmul.f32 %v1311, %v1420
        %1831 = vmatprep.subr.mxu0 0.0
        %1832 = vmatpush1.msra.mxu0 %v1007
        %1833 = vmatprep.subr.mxu0 0.0
        %1834 = vmatpush1.msra.mxu0 %v1008
        %1835 = vmatprep.subr.mxu0 0.0
        %1836 = vmatpush1.msra.mxu0 %v1009
        %1837 = vmatprep.subr.mxu0 0.0
        %1838 = vmatpush1.msra.mxu0 %v1010
        %1839 = vmatprep.subr.mxu0 0.0
        %1840 = vmatpush1.msra.mxu0 %v1011
        %1841 = vmatprep.subr.mxu0 0.0
        %1842 = vmatpush1.msra.mxu0 %v1012
        %1843 = vmatprep.subr.mxu0 0.0
        %1844 = vmatpush1.msra.mxu0 %v1013
        %1845 = vmatprep.subr.mxu0 0.0
        %1846 = vmatpush1.msra.mxu0 %v1014
        %1847 = vmatprep.subr.mxu0 0.0
        %1848 = vmatpush1.msra.mxu0 %v1015
        %1849 = vmatprep.subr.mxu0 0.0
        %1850 = vmatpush1.msra.mxu0 %v1016
        %1851 = vmatprep.subr.mxu0 0.0
        %1852 = vmatpush1.msra.mxu0 %v1017
        %1853 = vmatprep.subr.mxu0 0.0
        %1854 = vmatpush1.msra.mxu0 %v1018
        %1855 = vmatprep.subr.mxu0 0.0
        %1856 = vmatpush1.msra.mxu0 %v1019
        %1857 = vmatprep.subr.mxu0 0.0
        %1858 = vmatpush1.msra.mxu0 %v1020
        %1859 = vmatprep.subr.mxu0 0.0
        %1860 = vmatpush1.msra.mxu0 %v1021
        %1861 = vmatprep.subr.mxu0 0.0
        %1862 = vmatpush1.msra.mxu0 %v1022
        %1863 = vmatprep.subr.mxu0 0.0
        %1864 = vmatpush1.msra.mxu0 0.0
        %1865 = vmatprep.subr.mxu0 0.0
        %1866 = vmatpush1.msra.mxu0 0.0
        %1867 = vmatprep.subr.mxu0 0.0
        %1868 = vmatpush1.msra.mxu0 0.0
        %1869 = vmatprep.subr.mxu0 0.0
        %1870 = vmatpush1.msra.mxu0 0.0
        %1871 = vmatprep.subr.mxu0 0.0
        %1872 = vmatpush1.msra.mxu0 0.0
        %1873 = vmatprep.subr.mxu0 0.0
        %1874 = vmatpush1.msra.mxu0 0.0
        %1875 = vmatprep.subr.mxu0 0.0
        %1876 = vmatpush1.msra.mxu0 0.0
        %1877 = vmatprep.subr.mxu0 0.0
        %1878 = vmatpush1.msra.mxu0 0.0
        %1879 = vmatprep.subr.mxu0 0.0
        %1880 = vmatpush1.msra.mxu0 0.0
        %1881 = vmatprep.subr.mxu0 0.0
        %1882 = vmatpush1.msra.mxu0 0.0
        %1883 = vmatprep.subr.mxu0 0.0
        %1884 = vmatpush1.msra.mxu0 0.0
        %1885 = vmatprep.subr.mxu0 0.0
        %1886 = vmatpush1.msra.mxu0 0.0
        %1887 = vmatprep.subr.mxu0 0.0
        %1888 = vmatpush1.msra.mxu0 0.0
        %1889 = vmatprep.subr.mxu0 0.0
        %1890 = vmatpush1.msra.mxu0 0.0
        %1891 = vmatprep.subr.mxu0 0.0
        %1892 = vmatpush1.msra.mxu0 0.0
        %1893 = vmatprep.subr.mxu0 0.0
        %1894 = vmatpush1.msra.mxu0 0.0
        %1895 = vmatprep.mubr.f32.mxu0 0.0
        %1896 = vmatmul.mubr.f32.gmra.mrb[0].mxu0 %v1830
        %v1897 = vpop.f32.mrb[0].mxu0
        %v1898 = vadd.f32 0.0, %v1897
        %v1899 = vpop.f32.mrb[0].mxu0
        %1900 = vdwg.mxu0
        %v1901 = vmax.f32 %v1827, %v1898
        %v1902 = vsub.f32 %v1827, %v1901
        %v1903 = vmul.f32 %v1902, 1.442695
        %v1904 = vpow.pop %v1903
        %v1905 = vsub.f32 %v1898, %v1901
        %v1906 = vmul.f32 %v1905, 1.442695
        %v1907 = vpow.pop %v1906
        %v1908 = vadd.f32 %v1904, %v1907
        %v1909 = vmul.f32 %v1306, %v1904
        %v1910 = vmul.f32 %v1907, %v1459
        %v1911 = vadd.f32 %v1909, %v1910
        %v1912 = vmul.f32 %v1311, %v1573
        %1913 = vmatprep.subr.mxu0 0.0
        %1914 = vmatpush1.msra.mxu0 %v1007
        %1915 = vmatprep.subr.mxu0 0.0
        %1916 = vmatpush1.msra.mxu0 %v1008
        %1917 = vmatprep.subr.mxu0 0.0
        %1918 = vmatpush1.msra.mxu0 %v1009
        %1919 = vmatprep.subr.mxu0 0.0
        %1920 = vmatpush1.msra.mxu0 %v1010
        %1921 = vmatprep.subr.mxu0 0.0
        %1922 = vmatpush1.msra.mxu0 %v1011
        %1923 = vmatprep.subr.mxu0 0.0
        %1924 = vmatpush1.msra.mxu0 %v1012
        %1925 = vmatprep.subr.mxu0 0.0
        %1926 = vmatpush1.msra.mxu0 %v1013
        %1927 = vmatprep.subr.mxu0 0.0
        %1928 = vmatpush1.msra.mxu0 %v1014
        %1929 = vmatprep.subr.mxu0 0.0
        %1930 = vmatpush1.msra.mxu0 %v1015
        %1931 = vmatprep.subr.mxu0 0.0
        %1932 = vmatpush1.msra.mxu0 %v1016
        %1933 = vmatprep.subr.mxu0 0.0
        %1934 = vmatpush1.msra.mxu0 %v1017
        %1935 = vmatprep.subr.mxu0 0.0
        %1936 = vmatpush1.msra.mxu0 %v1018
        %1937 = vmatprep.subr.mxu0 0.0
        %1938 = vmatpush1.msra.mxu0 %v1019
        %1939 = vmatprep.subr.mxu0 0.0
        %1940 = vmatpush1.msra.mxu0 %v1020
        %1941 = vmatprep.subr.mxu0 0.0
        %1942 = vmatpush1.msra.mxu0 %v1021
        %1943 = vmatprep.subr.mxu0 0.0
        %1944 = vmatpush1.msra.mxu0 %v1022
        %1945 = vmatprep.subr.mxu0 0.0
        %1946 = vmatpush1.msra.mxu0 0.0
        %1947 = vmatprep.subr.mxu0 0.0
        %1948 = vmatpush1.msra.mxu0 0.0
        %1949 = vmatprep.subr.mxu0 0.0
        %1950 = vmatpush1.msra.mxu0 0.0
        %1951 = vmatprep.subr.mxu0 0.0
        %1952 = vmatpush1.msra.mxu0 0.0
        %1953 = vmatprep.subr.mxu0 0.0
        %1954 = vmatpush1.msra.mxu0 0.0
        %1955 = vmatprep.subr.mxu0 0.0
        %1956 = vmatpush1.msra.mxu0 0.0
        %1957 = vmatprep.subr.mxu0 0.0
        %1958 = vmatpush1.msra.mxu0 0.0
        %1959 = vmatprep.subr.mxu0 0.0
        %1960 = vmatpush1.msra.mxu0 0.0
        %1961 = vmatprep.subr.mxu0 0.0
        %1962 = vmatpush1.msra.mxu0 0.0
        %1963 = vmatprep.subr.mxu0 0.0
        %1964 = vmatpush1.msra.mxu0 0.0
        %1965 = vmatprep.subr.mxu0 0.0
        %1966 = vmatpush1.msra.mxu0 0.0
        %1967 = vmatprep.subr.mxu0 0.0
        %1968 = vmatpush1.msra.mxu0 0.0
        %1969 = vmatprep.subr.mxu0 0.0
        %1970 = vmatpush1.msra.mxu0 0.0
        %1971 = vmatprep.subr.mxu0 0.0
        %1972 = vmatpush1.msra.mxu0 0.0
        %1973 = vmatprep.subr.mxu0 0.0
        %1974 = vmatpush1.msra.mxu0 0.0
        %1975 = vmatprep.subr.mxu0 0.0
        %1976 = vmatpush1.msra.mxu0 0.0
        %1977 = vmatprep.mubr.f32.mxu0 0.0
        %1978 = vmatmul.mubr.f32.gmra.mrb[0].mxu0 %v1912
        %v1979 = vpop.f32.mrb[0].mxu0
        %v1980 = vadd.f32 0.0, %v1979
        %v1981 = vpop.f32.mrb[0].mxu0
        %1982 = vdwg.mxu0
        %v1983 = vmax.f32 %v1901, %v1980
        %v1984 = vsub.f32 %v1901, %v1983
        %v1985 = vmul.f32 %v1984, 1.442695
        %v1986 = vpow.pop %v1985
        %v1987 = vsub.f32 %v1980, %v1983
        %v1988 = vmul.f32 %v1987, 1.442695
        %v1989 = vpow.pop %v1988
        %v1990 = vmul.f32 %v1908, %v1986
        %v1991 = vadd.f32 %v1990, %v1989
        %v1992 = vmul.f32 %v1911, %v1986
        %v1993 = vmul.f32 %v1989, %v1612
        %v1994 = vadd.f32 %v1992, %v1993
        %v1995 = vmul.f32 %v1311, %v1714
        %1996 = vmatprep.subr.mxu0 0.0
        %1997 = vmatpush1.msra.mxu0 %v1007
        %1998 = vmatprep.subr.mxu0 0.0
        %1999 = vmatpush1.msra.mxu0 %v1008
        %2000 = vmatprep.subr.mxu0 0.0
        %2001 = vmatpush1.msra.mxu0 %v1009
        %2002 = vmatprep.subr.mxu0 0.0
        %2003 = vmatpush1.msra.mxu0 %v1010
        %2004 = vmatprep.subr.mxu0 0.0
        %2005 = vmatpush1.msra.mxu0 %v1011
        %2006 = vmatprep.subr.mxu0 0.0
        %2007 = vmatpush1.msra.mxu0 %v1012
        %2008 = vmatprep.subr.mxu0 0.0
        %2009 = vmatpush1.msra.mxu0 %v1013
        %2010 = vmatprep.subr.mxu0 0.0
        %2011 = vmatpush1.msra.mxu0 %v1014
        %2012 = vmatprep.subr.mxu0 0.0
        %2013 = vmatpush1.msra.mxu0 %v1015
        %2014 = vmatprep.subr.mxu0 0.0
        %2015 = vmatpush1.msra.mxu0 %v1016
        %2016 = vmatprep.subr.mxu0 0.0
        %2017 = vmatpush1.msra.mxu0 %v1017
        %2018 = vmatprep.subr.mxu0 0.0
        %2019 = vmatpush1.msra.mxu0 %v1018
        %2020 = vmatprep.subr.mxu0 0.0
        %2021 = vmatpush1.msra.mxu0 %v1019
        %2022 = vmatprep.subr.mxu0 0.0
        %2023 = vmatpush1.msra.mxu0 %v1020
        %2024 = vmatprep.subr.mxu0 0.0
        %2025 = vmatpush1.msra.mxu0 %v1021
        %2026 = vmatprep.subr.mxu0 0.0
        %2027 = vmatpush1.msra.mxu0 %v1022
        %2028 = vmatprep.subr.mxu0 0.0
        %2029 = vmatpush1.msra.mxu0 0.0
        %2030 = vmatprep.subr.mxu0 0.0
        %2031 = vmatpush1.msra.mxu0 0.0
        %2032 = vmatprep.subr.mxu0 0.0
        %2033 = vmatpush1.msra.mxu0 0.0
        %2034 = vmatprep.subr.mxu0 0.0
        %2035 = vmatpush1.msra.mxu0 0.0
        %2036 = vmatprep.subr.mxu0 0.0
        %2037 = vmatpush1.msra.mxu0 0.0
        %2038 = vmatprep.subr.mxu0 0.0
        %2039 = vmatpush1.msra.mxu0 0.0
        %2040 = vmatprep.subr.mxu0 0.0
        %2041 = vmatpush1.msra.mxu0 0.0
        %2042 = vmatprep.subr.mxu0 0.0
        %2043 = vmatpush1.msra.mxu0 0.0
        %2044 = vmatprep.subr.mxu0 0.0
        %2045 = vmatpush1.msra.mxu0 0.0
        %2046 = vmatprep.subr.mxu0 0.0
        %2047 = vmatpush1.msra.mxu0 0.0
        %2048 = vmatprep.subr.mxu0 0.0
        %2049 = vmatpush1.msra.mxu0 0.0
        %2050 = vmatprep.subr.mxu0 0.0
        %2051 = vmatpush1.msra.mxu0 0.0
        %2052 = vmatprep.subr.mxu0 0.0
        %2053 = vmatpush1.msra.mxu0 0.0
        %2054 = vmatprep.subr.mxu0 0.0
        %2055 = vmatpush1.msra.mxu0 0.0
        %2056 = vmatprep.subr.mxu0 0.0
        %2057 = vmatpush1.msra.mxu0 0.0
        %2058 = vmatprep.subr.mxu0 0.0
        %2059 = vmatpush1.msra.mxu0 0.0
        %2060 = vmatprep.mubr.f32.mxu0 0.0
        %2061 = vmatmul.mubr.f32.gmra.mrb[0].mxu0 %v1995
        %v2062 = vpop.f32.mrb[0].mxu0
        %v2063 = vadd.f32 0.0, %v2062
        %v2064 = vpop.f32.mrb[0].mxu0
        %2065 = vdwg.mxu0
        %v2066 = vmax.f32 %v1983, %v2063
        %v2067 = vsub.f32 %v1983, %v2066
        %v2068 = vmul.f32 %v2067, 1.442695
        %v2069 = vpow.pop %v2068
        %v2070 = vsub.f32 %v2063, %v2066
        %v2071 = vmul.f32 %v2070, 1.442695
        %v2072 = vpow.pop %v2071
        %v2073 = vmul.f32 %v1991, %v2069
        %v2074 = vadd.f32 %v2073, %v2072
        %v2075 = vmul.f32 %v1994, %v2069
        %v2076 = vmul.f32 %v2072, %v1753
        %v2077 = vadd.f32 %v2075, %v2076
        %v2078 = vrcp.pop %v2074
        %v2079 = vmul.f32 %v2077, %v2078
        %v2080 = vmul.f32 %v1464, %v1267
        %2081 = vmatprep.subr.mxu0 0.0
        %2082 = vmatpush1.msra.mxu0 %v1007
        %2083 = vmatprep.subr.mxu0 0.0
        %2084 = vmatpush1.msra.mxu0 %v1008
        %2085 = vmatprep.subr.mxu0 0.0
        %2086 = vmatpush1.msra.mxu0 %v1009
        %2087 = vmatprep.subr.mxu0 0.0
        %2088 = vmatpush1.msra.mxu0 %v1010
        %2089 = vmatprep.subr.mxu0 0.0
        %2090 = vmatpush1.msra.mxu0 %v1011
        %2091 = vmatprep.subr.mxu0 0.0
        %2092 = vmatpush1.msra.mxu0 %v1012
        %2093 = vmatprep.subr.mxu0 0.0
        %2094 = vmatpush1.msra.mxu0 %v1013
        %2095 = vmatprep.subr.mxu0 0.0
        %2096 = vmatpush1.msra.mxu0 %v1014
        %2097 = vmatprep.subr.mxu0 0.0
        %2098 = vmatpush1.msra.mxu0 %v1015
        %2099 = vmatprep.subr.mxu0 0.0
        %2100 = vmatpush1.msra.mxu0 %v1016
        %2101 = vmatprep.subr.mxu0 0.0
        %2102 = vmatpush1.msra.mxu0 %v1017
        %2103 = vmatprep.subr.mxu0 0.0
        %2104 = vmatpush1.msra.mxu0 %v1018
        %2105 = vmatprep.subr.mxu0 0.0
        %2106 = vmatpush1.msra.mxu0 %v1019
        %2107 = vmatprep.subr.mxu0 0.0
        %2108 = vmatpush1.msra.mxu0 %v1020
        %2109 = vmatprep.subr.mxu0 0.0
        %2110 = vmatpush1.msra.mxu0 %v1021
        %2111 = vmatprep.subr.mxu0 0.0
        %2112 = vmatpush1.msra.mxu0 %v1022
        %2113 = vmatprep.subr.mxu0 0.0
        %2114 = vmatpush1.msra.mxu0 0.0
        %2115 = vmatprep.subr.mxu0 0.0
        %2116 = vmatpush1.msra.mxu0 0.0
        %2117 = vmatprep.subr.mxu0 0.0
        %2118 = vmatpush1.msra.mxu0 0.0
        %2119 = vmatprep.subr.mxu0 0.0
        %2120 = vmatpush1.msra.mxu0 0.0
        %2121 = vmatprep.subr.mxu0 0.0
        %2122 = vmatpush1.msra.mxu0 0.0
        %2123 = vmatprep.subr.mxu0 0.0
        %2124 = vmatpush1.msra.mxu0 0.0
        %2125 = vmatprep.subr.mxu0 0.0
        %2126 = vmatpush1.msra.mxu0 0.0
        %2127 = vmatprep.subr.mxu0 0.0
        %2128 = vmatpush1.msra.mxu0 0.0
        %2129 = vmatprep.subr.mxu0 0.0
        %2130 = vmatpush1.msra.mxu0 0.0
        %2131 = vmatprep.subr.mxu0 0.0
        %2132 = vmatpush1.msra.mxu0 0.0
        %2133 = vmatprep.subr.mxu0 0.0
        %2134 = vmatpush1.msra.mxu0 0.0
        %2135 = vmatprep.subr.mxu0 0.0
        %2136 = vmatpush1.msra.mxu0 0.0
        %2137 = vmatprep.subr.mxu0 0.0
        %2138 = vmatpush1.msra.mxu0 0.0
        %2139 = vmatprep.subr.mxu0 0.0
        %2140 = vmatpush1.msra.mxu0 0.0
        %2141 = vmatprep.subr.mxu0 0.0
        %2142 = vmatpush1.msra.mxu0 0.0
        %2143 = vmatprep.subr.mxu0 0.0
        %2144 = vmatpush1.msra.mxu0 0.0
        %2145 = vmatprep.mubr.f32.mxu0 0.0
        %2146 = vmatmul.mubr.f32.gmra.mrb[0].mxu0 %v2080
        %v2147 = vpop.f32.mrb[0].mxu0
        %v2148 = vadd.f32 0.0, %v2147
        %v2149 = vpop.f32.mrb[0].mxu0
        %2150 = vdwg.mxu0
        %v2151 = vmul.f32 %v1464, %v1420
        %2152 = vmatprep.subr.mxu0 0.0
        %2153 = vmatpush1.msra.mxu0 %v1007
        %2154 = vmatprep.subr.mxu0 0.0
        %2155 = vmatpush1.msra.mxu0 %v1008
        %2156 = vmatprep.subr.mxu0 0.0
        %2157 = vmatpush1.msra.mxu0 %v1009
        %2158 = vmatprep.subr.mxu0 0.0
        %2159 = vmatpush1.msra.mxu0 %v1010
        %2160 = vmatprep.subr.mxu0 0.0
        %2161 = vmatpush1.msra.mxu0 %v1011
        %2162 = vmatprep.subr.mxu0 0.0
        %2163 = vmatpush1.msra.mxu0 %v1012
        %2164 = vmatprep.subr.mxu0 0.0
        %2165 = vmatpush1.msra.mxu0 %v1013
        %2166 = vmatprep.subr.mxu0 0.0
        %2167 = vmatpush1.msra.mxu0 %v1014
        %2168 = vmatprep.subr.mxu0 0.0
        %2169 = vmatpush1.msra.mxu0 %v1015
        %2170 = vmatprep.subr.mxu0 0.0
        %2171 = vmatpush1.msra.mxu0 %v1016
        %2172 = vmatprep.subr.mxu0 0.0
        %2173 = vmatpush1.msra.mxu0 %v1017
        %2174 = vmatprep.subr.mxu0 0.0
        %2175 = vmatpush1.msra.mxu0 %v1018
        %2176 = vmatprep.subr.mxu0 0.0
        %2177 = vmatpush1.msra.mxu0 %v1019
        %2178 = vmatprep.subr.mxu0 0.0
        %2179 = vmatpush1.msra.mxu0 %v1020
        %2180 = vmatprep.subr.mxu0 0.0
        %2181 = vmatpush1.msra.mxu0 %v1021
        %2182 = vmatprep.subr.mxu0 0.0
        %2183 = vmatpush1.msra.mxu0 %v1022
        %2184 = vmatprep.subr.mxu0 0.0
        %2185 = vmatpush1.msra.mxu0 0.0
        %2186 = vmatprep.subr.mxu0 0.0
        %2187 = vmatpush1.msra.mxu0 0.0
        %2188 = vmatprep.subr.mxu0 0.0
        %2189 = vmatpush1.msra.mxu0 0.0
        %2190 = vmatprep.subr.mxu0 0.0
        %2191 = vmatpush1.msra.mxu0 0.0
        %2192 = vmatprep.subr.mxu0 0.0
        %2193 = vmatpush1.msra.mxu0 0.0
        %2194 = vmatprep.subr.mxu0 0.0
        %2195 = vmatpush1.msra.mxu0 0.0
        %2196 = vmatprep.subr.mxu0 0.0
        %2197 = vmatpush1.msra.mxu0 0.0
        %2198 = vmatprep.subr.mxu0 0.0
        %2199 = vmatpush1.msra.mxu0 0.0
        %2200 = vmatprep.subr.mxu0 0.0
        %2201 = vmatpush1.msra.mxu0 0.0
        %2202 = vmatprep.subr.mxu0 0.0
        %2203 = vmatpush1.msra.mxu0 0.0
        %2204 = vmatprep.subr.mxu0 0.0
        %2205 = vmatpush1.msra.mxu0 0.0
        %2206 = vmatprep.subr.mxu0 0.0
        %2207 = vmatpush1.msra.mxu0 0.0
        %2208 = vmatprep.subr.mxu0 0.0
        %2209 = vmatpush1.msra.mxu0 0.0
        %2210 = vmatprep.subr.mxu0 0.0
        %2211 = vmatpush1.msra.mxu0 0.0
        %2212 = vmatprep.subr.mxu0 0.0
        %2213 = vmatpush1.msra.mxu0 0.0
        %2214 = vmatprep.subr.mxu0 0.0
        %2215 = vmatpush1.msra.mxu0 0.0
        %2216 = vmatprep.mubr.f32.mxu0 0.0
        %2217 = vmatmul.mubr.f32.gmra.mrb[0].mxu0 %v2151
        %v2218 = vpop.f32.mrb[0].mxu0
        %v2219 = vadd.f32 0.0, %v2218
        %v2220 = vpop.f32.mrb[0].mxu0
        %2221 = vdwg.mxu0
        %v2222 = vmax.f32 %v2148, %v2219
        %v2223 = vsub.f32 %v2148, %v2222
        %v2224 = vmul.f32 %v2223, 1.442695
        %v2225 = vpow.pop %v2224
        %v2226 = vsub.f32 %v2219, %v2222
        %v2227 = vmul.f32 %v2226, 1.442695
        %v2228 = vpow.pop %v2227
        %v2229 = vadd.f32 %v2225, %v2228
        %v2230 = vmul.f32 %v1306, %v2225
        %v2231 = vmul.f32 %v2228, %v1459
        %v2232 = vadd.f32 %v2230, %v2231
        %v2233 = vmul.f32 %v1464, %v1573
        %2234 = vmatprep.subr.mxu0 0.0
        %2235 = vmatpush1.msra.mxu0 %v1007
        %2236 = vmatprep.subr.mxu0 0.0
        %2237 = vmatpush1.msra.mxu0 %v1008
        %2238 = vmatprep.subr.mxu0 0.0
        %2239 = vmatpush1.msra.mxu0 %v1009
        %2240 = vmatprep.subr.mxu0 0.0
        %2241 = vmatpush1.msra.mxu0 %v1010
        %2242 = vmatprep.subr.mxu0 0.0
        %2243 = vmatpush1.msra.mxu0 %v1011
        %2244 = vmatprep.subr.mxu0 0.0
        %2245 = vmatpush1.msra.mxu0 %v1012
        %2246 = vmatprep.subr.mxu0 0.0
        %2247 = vmatpush1.msra.mxu0 %v1013
        %2248 = vmatprep.subr.mxu0 0.0
        %2249 = vmatpush1.msra.mxu0 %v1014
        %2250 = vmatprep.subr.mxu0 0.0
        %2251 = vmatpush1.msra.mxu0 %v1015
        %2252 = vmatprep.subr.mxu0 0.0
        %2253 = vmatpush1.msra.mxu0 %v1016
        %2254 = vmatprep.subr.mxu0 0.0
        %2255 = vmatpush1.msra.mxu0 %v1017
        %2256 = vmatprep.subr.mxu0 0.0
        %2257 = vmatpush1.msra.mxu0 %v1018
        %2258 = vmatprep.subr.mxu0 0.0
        %2259 = vmatpush1.msra.mxu0 %v1019
        %2260 = vmatprep.subr.mxu0 0.0
        %2261 = vmatpush1.msra.mxu0 %v1020
        %2262 = vmatprep.subr.mxu0 0.0
        %2263 = vmatpush1.msra.mxu0 %v1021
        %2264 = vmatprep.subr.mxu0 0.0
        %2265 = vmatpush1.msra.mxu0 %v1022
        %2266 = vmatprep.subr.mxu0 0.0
        %2267 = vmatpush1.msra.mxu0 0.0
        %2268 = vmatprep.subr.mxu0 0.0
        %2269 = vmatpush1.msra.mxu0 0.0
        %2270 = vmatprep.subr.mxu0 0.0
        %2271 = vmatpush1.msra.mxu0 0.0
        %2272 = vmatprep.subr.mxu0 0.0
        %2273 = vmatpush1.msra.mxu0 0.0
        %2274 = vmatprep.subr.mxu0 0.0
        %2275 = vmatpush1.msra.mxu0 0.0
        %2276 = vmatprep.subr.mxu0 0.0
        %2277 = vmatpush1.msra.mxu0 0.0
        %2278 = vmatprep.subr.mxu0 0.0
        %2279 = vmatpush1.msra.mxu0 0.0
        %2280 = vmatprep.subr.mxu0 0.0
        %2281 = vmatpush1.msra.mxu0 0.0
        %2282 = vmatprep.subr.mxu0 0.0
        %2283 = vmatpush1.msra.mxu0 0.0
        %2284 = vmatprep.subr.mxu0 0.0
        %2285 = vmatpush1.msra.mxu0 0.0
        %2286 = vmatprep.subr.mxu0 0.0
        %2287 = vmatpush1.msra.mxu0 0.0
        %2288 = vmatprep.subr.mxu0 0.0
        %2289 = vmatpush1.msra.mxu0 0.0
        %2290 = vmatprep.subr.mxu0 0.0
        %2291 = vmatpush1.msra.mxu0 0.0
        %2292 = vmatprep.subr.mxu0 0.0
        %2293 = vmatpush1.msra.mxu0 0.0
        %2294 = vmatprep.subr.mxu0 0.0
        %2295 = vmatpush1.msra.mxu0 0.0
        %2296 = vmatprep.subr.mxu0 0.0
        %2297 = vmatpush1.msra.mxu0 0.0
        %2298 = vmatprep.mubr.f32.mxu0 0.0
        %2299 = vmatmul.mubr.f32.gmra.mrb[0].mxu0 %v2233
        %v2300 = vpop.f32.mrb[0].mxu0
        %v2301 = vadd.f32 0.0, %v2300
        %v2302 = vpop.f32.mrb[0].mxu0
        %2303 = vdwg.mxu0
        %v2304 = vmax.f32 %v2222, %v2301
        %v2305 = vsub.f32 %v2222, %v2304
        %v2306 = vmul.f32 %v2305, 1.442695
        %v2307 = vpow.pop %v2306
        %v2308 = vsub.f32 %v2301, %v2304
        %v2309 = vmul.f32 %v2308, 1.442695
        %v2310 = vpow.pop %v2309
        %v2311 = vmul.f32 %v2229, %v2307
        %v2312 = vadd.f32 %v2311, %v2310
        %v2313 = vmul.f32 %v2232, %v2307
        %v2314 = vmul.f32 %v2310, %v1612
        %v2315 = vadd.f32 %v2313, %v2314
        %v2316 = vmul.f32 %v1464, %v1714
        %2317 = vmatprep.subr.mxu0 0.0
        %2318 = vmatpush1.msra.mxu0 %v1007
        %2319 = vmatprep.subr.mxu0 0.0
        %2320 = vmatpush1.msra.mxu0 %v1008
        %2321 = vmatprep.subr.mxu0 0.0
        %2322 = vmatpush1.msra.mxu0 %v1009
        %2323 = vmatprep.subr.mxu0 0.0
        %2324 = vmatpush1.msra.mxu0 %v1010
        %2325 = vmatprep.subr.mxu0 0.0
        %2326 = vmatpush1.msra.mxu0 %v1011
        %2327 = vmatprep.subr.mxu0 0.0
        %2328 = vmatpush1.msra.mxu0 %v1012
        %2329 = vmatprep.subr.mxu0 0.0
        %2330 = vmatpush1.msra.mxu0 %v1013
        %2331 = vmatprep.subr.mxu0 0.0
        %2332 = vmatpush1.msra.mxu0 %v1014
        %2333 = vmatprep.subr.mxu0 0.0
        %2334 = vmatpush1.msra.mxu0 %v1015
        %2335 = vmatprep.subr.mxu0 0.0
        %2336 = vmatpush1.msra.mxu0 %v1016
        %2337 = vmatprep.subr.mxu0 0.0
        %2338 = vmatpush1.msra.mxu0 %v1017
        %2339 = vmatprep.subr.mxu0 0.0
        %2340 = vmatpush1.msra.mxu0 %v1018
        %2341 = vmatprep.subr.mxu0 0.0
        %2342 = vmatpush1.msra.mxu0 %v1019
        %2343 = vmatprep.subr.mxu0 0.0
        %2344 = vmatpush1.msra.mxu0 %v1020
        %2345 = vmatprep.subr.mxu0 0.0
        %2346 = vmatpush1.msra.mxu0 %v1021
        %2347 = vmatprep.subr.mxu0 0.0
        %2348 = vmatpush1.msra.mxu0 %v1022
        %2349 = vmatprep.subr.mxu0 0.0
        %2350 = vmatpush1.msra.mxu0 0.0
        %2351 = vmatprep.subr.mxu0 0.0
        %2352 = vmatpush1.msra.mxu0 0.0
        %2353 = vmatprep.subr.mxu0 0.0
        %2354 = vmatpush1.msra.mxu0 0.0
        %2355 = vmatprep.subr.mxu0 0.0
        %2356 = vmatpush1.msra.mxu0 0.0
        %2357 = vmatprep.subr.mxu0 0.0
        %2358 = vmatpush1.msra.mxu0 0.0
        %2359 = vmatprep.subr.mxu0 0.0
        %2360 = vmatpush1.msra.mxu0 0.0
        %2361 = vmatprep.subr.mxu0 0.0
        %2362 = vmatpush1.msra.mxu0 0.0
        %2363 = vmatprep.subr.mxu0 0.0
        %2364 = vmatpush1.msra.mxu0 0.0
        %2365 = vmatprep.subr.mxu0 0.0
        %2366 = vmatpush1.msra.mxu0 0.0
        %2367 = vmatprep.subr.mxu0 0.0
        %2368 = vmatpush1.msra.mxu0 0.0
        %2369 = vmatprep.subr.mxu0 0.0
        %2370 = vmatpush1.msra.mxu0 0.0
        %2371 = vmatprep.subr.mxu0 0.0
        %2372 = vmatpush1.msra.mxu0 0.0
        %2373 = vmatprep.subr.mxu0 0.0
        %2374 = vmatpush1.msra.mxu0 0.0
        %2375 = vmatprep.subr.mxu0 0.0
        %2376 = vmatpush1.msra.mxu0 0.0
        %2377 = vmatprep.subr.mxu0 0.0
        %2378 = vmatpush1.msra.mxu0 0.0
        %2379 = vmatprep.subr.mxu0 0.0
        %2380 = vmatpush1.msra.mxu0 0.0
        %2381 = vmatprep.mubr.f32.mxu0 0.0
        %2382 = vmatmul.mubr.f32.gmra.mrb[0].mxu0 %v2316
        %v2383 = vpop.f32.mrb[0].mxu0
        %v2384 = vadd.f32 0.0, %v2383
        %v2385 = vpop.f32.mrb[0].mxu0
        %2386 = vdwg.mxu0
        %v2387 = vmax.f32 %v2304, %v2384
        %v2388 = vsub.f32 %v2304, %v2387
        %v2389 = vmul.f32 %v2388, 1.442695
        %v2390 = vpow.pop %v2389
        %v2391 = vsub.f32 %v2384, %v2387
        %v2392 = vmul.f32 %v2391, 1.442695
        %v2393 = vpow.pop %v2392
        %v2394 = vmul.f32 %v2312, %v2390
        %v2395 = vadd.f32 %v2394, %v2393
        %v2396 = vmul.f32 %v2315, %v2390
        %v2397 = vmul.f32 %v2393, %v1753
        %v2398 = vadd.f32 %v2396, %v2397
        %v2399 = vrcp.pop %v2395
        %v2400 = vmul.f32 %v2398, %v2399
        %v2401 = vadd.f32 %v2079, %v2400
        %v2402 = vmul.f32 %v1617, %v1267
        %2403 = vmatprep.subr.mxu0 0.0
        %2404 = vmatpush1.msra.mxu0 %v1007
        %2405 = vmatprep.subr.mxu0 0.0
        %2406 = vmatpush1.msra.mxu0 %v1008
        %2407 = vmatprep.subr.mxu0 0.0
        %2408 = vmatpush1.msra.mxu0 %v1009
        %2409 = vmatprep.subr.mxu0 0.0
        %2410 = vmatpush1.msra.mxu0 %v1010
        %2411 = vmatprep.subr.mxu0 0.0
        %2412 = vmatpush1.msra.mxu0 %v1011
        %2413 = vmatprep.subr.mxu0 0.0
        %2414 = vmatpush1.msra.mxu0 %v1012
        %2415 = vmatprep.subr.mxu0 0.0
        %2416 = vmatpush1.msra.mxu0 %v1013
        %2417 = vmatprep.subr.mxu0 0.0
        %2418 = vmatpush1.msra.mxu0 %v1014
        %2419 = vmatprep.subr.mxu0 0.0
        %2420 = vmatpush1.msra.mxu0 %v1015
        %2421 = vmatprep.subr.mxu0 0.0
        %2422 = vmatpush1.msra.mxu0 %v1016
        %2423 = vmatprep.subr.mxu0 0.0
        %2424 = vmatpush1.msra.mxu0 %v1017
        %2425 = vmatprep.subr.mxu0 0.0
        %2426 = vmatpush1.msra.mxu0 %v1018
        %2427 = vmatprep.subr.mxu0 0.0
        %2428 = vmatpush1.msra.mxu0 %v1019
        %2429 = vmatprep.subr.mxu0 0.0
        %2430 = vmatpush1.msra.mxu0 %v1020
        %2431 = vmatprep.subr.mxu0 0.0
        %2432 = vmatpush1.msra.mxu0 %v1021
        %2433 = vmatprep.subr.mxu0 0.0
        %2434 = vmatpush1.msra.mxu0 %v1022
        %2435 = vmatprep.subr.mxu0 0.0
        %2436 = vmatpush1.msra.mxu0 0.0
        %2437 = vmatprep.subr.mxu0 0.0
        %2438 = vmatpush1.msra.mxu0 0.0
        %2439 = vmatprep.subr.mxu0 0.0
        %2440 = vmatpush1.msra.mxu0 0.0
        %2441 = vmatprep.subr.mxu0 0.0
        %2442 = vmatpush1.msra.mxu0 0.0
        %2443 = vmatprep.subr.mxu0 0.0
        %2444 = vmatpush1.msra.mxu0 0.0
        %2445 = vmatprep.subr.mxu0 0.0
        %2446 = vmatpush1.msra.mxu0 0.0
        %2447 = vmatprep.subr.mxu0 0.0
        %2448 = vmatpush1.msra.mxu0 0.0
        %2449 = vmatprep.subr.mxu0 0.0
        %2450 = vmatpush1.msra.mxu0 0.0
        %2451 = vmatprep.subr.mxu0 0.0
        %2452 = vmatpush1.msra.mxu0 0.0
        %2453 = vmatprep.subr.mxu0 0.0
        %2454 = vmatpush1.msra.mxu0 0.0
        %2455 = vmatprep.subr.mxu0 0.0
        %2456 = vmatpush1.msra.mxu0 0.0
        %2457 = vmatprep.subr.mxu0 0.0
        %2458 = vmatpush1.msra.mxu0 0.0
        %2459 = vmatprep.subr.mxu0 0.0
        %2460 = vmatpush1.msra.mxu0 0.0
        %2461 = vmatprep.subr.mxu0 0.0
        %2462 = vmatpush1.msra.mxu0 0.0
        %2463 = vmatprep.subr.mxu0 0.0
        %2464 = vmatpush1.msra.mxu0 0.0
        %2465 = vmatprep.subr.mxu0 0.0
        %2466 = vmatpush1.msra.mxu0 0.0
        %2467 = vmatprep.mubr.f32.mxu0 0.0
        %2468 = vmatmul.mubr.f32.gmra.mrb[0].mxu0 %v2402
        %v2469 = vpop.f32.mrb[0].mxu0
        %v2470 = vadd.f32 0.0, %v2469
        %v2471 = vpop.f32.mrb[0].mxu0
        %2472 = vdwg.mxu0
        %v2473 = vmul.f32 %v1617, %v1420
        %2474 = vmatprep.subr.mxu0 0.0
        %2475 = vmatpush1.msra.mxu0 %v1007
        %2476 = vmatprep.subr.mxu0 0.0
        %2477 = vmatpush1.msra.mxu0 %v1008
        %2478 = vmatprep.subr.mxu0 0.0
        %2479 = vmatpush1.msra.mxu0 %v1009
        %2480 = vmatprep.subr.mxu0 0.0
        %2481 = vmatpush1.msra.mxu0 %v1010
        %2482 = vmatprep.subr.mxu0 0.0
        %2483 = vmatpush1.msra.mxu0 %v1011
        %2484 = vmatprep.subr.mxu0 0.0
        %2485 = vmatpush1.msra.mxu0 %v1012
        %2486 = vmatprep.subr.mxu0 0.0
        %2487 = vmatpush1.msra.mxu0 %v1013
        %2488 = vmatprep.subr.mxu0 0.0
        %2489 = vmatpush1.msra.mxu0 %v1014
        %2490 = vmatprep.subr.mxu0 0.0
        %2491 = vmatpush1.msra.mxu0 %v1015
        %2492 = vmatprep.subr.mxu0 0.0
        %2493 = vmatpush1.msra.mxu0 %v1016
        %2494 = vmatprep.subr.mxu0 0.0
        %2495 = vmatpush1.msra.mxu0 %v1017
        %2496 = vmatprep.subr.mxu0 0.0
        %2497 = vmatpush1.msra.mxu0 %v1018
        %2498 = vmatprep.subr.mxu0 0.0
        %2499 = vmatpush1.msra.mxu0 %v1019
        %2500 = vmatprep.subr.mxu0 0.0
        %2501 = vmatpush1.msra.mxu0 %v1020
        %2502 = vmatprep.subr.mxu0 0.0
        %2503 = vmatpush1.msra.mxu0 %v1021
        %2504 = vmatprep.subr.mxu0 0.0
        %2505 = vmatpush1.msra.mxu0 %v1022
        %2506 = vmatprep.subr.mxu0 0.0
        %2507 = vmatpush1.msra.mxu0 0.0
        %2508 = vmatprep.subr.mxu0 0.0
        %2509 = vmatpush1.msra.mxu0 0.0
        %2510 = vmatprep.subr.mxu0 0.0
        %2511 = vmatpush1.msra.mxu0 0.0
        %2512 = vmatprep.subr.mxu0 0.0
        %2513 = vmatpush1.msra.mxu0 0.0
        %2514 = vmatprep.subr.mxu0 0.0
        %2515 = vmatpush1.msra.mxu0 0.0
        %2516 = vmatprep.subr.mxu0 0.0
        %2517 = vmatpush1.msra.mxu0 0.0
        %2518 = vmatprep.subr.mxu0 0.0
        %2519 = vmatpush1.msra.mxu0 0.0
        %2520 = vmatprep.subr.mxu0 0.0
        %2521 = vmatpush1.msra.mxu0 0.0
        %2522 = vmatprep.subr.mxu0 0.0
        %2523 = vmatpush1.msra.mxu0 0.0
        %2524 = vmatprep.subr.mxu0 0.0
        %2525 = vmatpush1.msra.mxu0 0.0
        %2526 = vmatprep.subr.mxu0 0.0
        %2527 = vmatpush1.msra.mxu0 0.0
        %2528 = vmatprep.subr.mxu0 0.0
        %2529 = vmatpush1.msra.mxu0 0.0
        %2530 = vmatprep.subr.mxu0 0.0
        %2531 = vmatpush1.msra.mxu0 0.0
        %2532 = vmatprep.subr.mxu0 0.0
        %2533 = vmatpush1.msra.mxu0 0.0
        %2534 = vmatprep.subr.mxu0 0.0
        %2535 = vmatpush1.msra.mxu0 0.0
        %2536 = vmatprep.subr.mxu0 0.0
        %2537 = vmatpush1.msra.mxu0 0.0
        %2538 = vmatprep.mubr.f32.mxu0 0.0
        %2539 = vmatmul.mubr.f32.gmra.mrb[0].mxu0 %v2473
        %v2540 = vpop.f32.mrb[0].mxu0
        %v2541 = vadd.f32 0.0, %v2540
        %v2542 = vpop.f32.mrb[0].mxu0
        %2543 = vdwg.mxu0
        %v2544 = vmax.f32 %v2470, %v2541
        %v2545 = vsub.f32 %v2470, %v2544
        %v2546 = vmul.f32 %v2545, 1.442695
        %v2547 = vpow.pop %v2546
        %v2548 = vsub.f32 %v2541, %v2544
        %v2549 = vmul.f32 %v2548, 1.442695
        %v2550 = vpow.pop %v2549
        %v2551 = vadd.f32 %v2547, %v2550
        %v2552 = vmul.f32 %v1306, %v2547
        %v2553 = vmul.f32 %v2550, %v1459
        %v2554 = vadd.f32 %v2552, %v2553
        %v2555 = vmul.f32 %v1617, %v1573
        %2556 = vmatprep.subr.mxu0 0.0
        %2557 = vmatpush1.msra.mxu0 %v1007
        %2558 = vmatprep.subr.mxu0 0.0
        %2559 = vmatpush1.msra.mxu0 %v1008
        %2560 = vmatprep.subr.mxu0 0.0
        %2561 = vmatpush1.msra.mxu0 %v1009
        %2562 = vmatprep.subr.mxu0 0.0
        %2563 = vmatpush1.msra.mxu0 %v1010
        %2564 = vmatprep.subr.mxu0 0.0
        %2565 = vmatpush1.msra.mxu0 %v1011
        %2566 = vmatprep.subr.mxu0 0.0
        %2567 = vmatpush1.msra.mxu0 %v1012
        %2568 = vmatprep.subr.mxu0 0.0
        %2569 = vmatpush1.msra.mxu0 %v1013
        %2570 = vmatprep.subr.mxu0 0.0
        %2571 = vmatpush1.msra.mxu0 %v1014
        %2572 = vmatprep.subr.mxu0 0.0
        %2573 = vmatpush1.msra.mxu0 %v1015
        %2574 = vmatprep.subr.mxu0 0.0
        %2575 = vmatpush1.msra.mxu0 %v1016
        %2576 = vmatprep.subr.mxu0 0.0
        %2577 = vmatpush1.msra.mxu0 %v1017
        %2578 = vmatprep.subr.mxu0 0.0
        %2579 = vmatpush1.msra.mxu0 %v1018
        %2580 = vmatprep.subr.mxu0 0.0
        %2581 = vmatpush1.msra.mxu0 %v1019
        %2582 = vmatprep.subr.mxu0 0.0
        %2583 = vmatpush1.msra.mxu0 %v1020
        %2584 = vmatprep.subr.mxu0 0.0
        %2585 = vmatpush1.msra.mxu0 %v1021
        %2586 = vmatprep.subr.mxu0 0.0
        %2587 = vmatpush1.msra.mxu0 %v1022
        %2588 = vmatprep.subr.mxu0 0.0
        %2589 = vmatpush1.msra.mxu0 0.0
        %2590 = vmatprep.subr.mxu0 0.0
        %2591 = vmatpush1.msra.mxu0 0.0
        %2592 = vmatprep.subr.mxu0 0.0
        %2593 = vmatpush1.msra.mxu0 0.0
        %2594 = vmatprep.subr.mxu0 0.0
        %2595 = vmatpush1.msra.mxu0 0.0
        %2596 = vmatprep.subr.mxu0 0.0
        %2597 = vmatpush1.msra.mxu0 0.0
        %2598 = vmatprep.subr.mxu0 0.0
        %2599 = vmatpush1.msra.mxu0 0.0
        %2600 = vmatprep.subr.mxu0 0.0
        %2601 = vmatpush1.msra.mxu0 0.0
        %2602 = vmatprep.subr.mxu0 0.0
        %2603 = vmatpush1.msra.mxu0 0.0
        %2604 = vmatprep.subr.mxu0 0.0
        %2605 = vmatpush1.msra.mxu0 0.0
        %2606 = vmatprep.subr.mxu0 0.0
        %2607 = vmatpush1.msra.mxu0 0.0
        %2608 = vmatprep.subr.mxu0 0.0
        %2609 = vmatpush1.msra.mxu0 0.0
        %2610 = vmatprep.subr.mxu0 0.0
        %2611 = vmatpush1.msra.mxu0 0.0
        %2612 = vmatprep.subr.mxu0 0.0
        %2613 = vmatpush1.msra.mxu0 0.0
        %2614 = vmatprep.subr.mxu0 0.0
        %2615 = vmatpush1.msra.mxu0 0.0
        %2616 = vmatprep.subr.mxu0 0.0
        %2617 = vmatpush1.msra.mxu0 0.0
        %2618 = vmatprep.subr.mxu0 0.0
        %2619 = vmatpush1.msra.mxu0 0.0
        %2620 = vmatprep.mubr.f32.mxu0 0.0
        %2621 = vmatmul.mubr.f32.gmra.mrb[0].mxu0 %v2555
        %v2622 = vpop.f32.mrb[0].mxu0
        %v2623 = vadd.f32 0.0, %v2622
        %v2624 = vpop.f32.mrb[0].mxu0
        %2625 = vdwg.mxu0
        %v2626 = vmax.f32 %v2544, %v2623
        %v2627 = vsub.f32 %v2544, %v2626
        %v2628 = vmul.f32 %v2627, 1.442695
        %v2629 = vpow.pop %v2628
        %v2630 = vsub.f32 %v2623, %v2626
        %v2631 = vmul.f32 %v2630, 1.442695
        %v2632 = vpow.pop %v2631
        %v2633 = vmul.f32 %v2551, %v2629
        %v2634 = vadd.f32 %v2633, %v2632
        %v2635 = vmul.f32 %v2554, %v2629
        %v2636 = vmul.f32 %v2632, %v1612
        %v2637 = vadd.f32 %v2635, %v2636
        %v2638 = vmul.f32 %v1617, %v1714
        %2639 = vmatprep.subr.mxu0 0.0
        %2640 = vmatpush1.msra.mxu0 %v1007
        %2641 = vmatprep.subr.mxu0 0.0
        %2642 = vmatpush1.msra.mxu0 %v1008
        %2643 = vmatprep.subr.mxu0 0.0
        %2644 = vmatpush1.msra.mxu0 %v1009
        %2645 = vmatprep.subr.mxu0 0.0
        %2646 = vmatpush1.msra.mxu0 %v1010
        %2647 = vmatprep.subr.mxu0 0.0
        %2648 = vmatpush1.msra.mxu0 %v1011
        %2649 = vmatprep.subr.mxu0 0.0
        %2650 = vmatpush1.msra.mxu0 %v1012
        %2651 = vmatprep.subr.mxu0 0.0
        %2652 = vmatpush1.msra.mxu0 %v1013
        %2653 = vmatprep.subr.mxu0 0.0
        %2654 = vmatpush1.msra.mxu0 %v1014
        %2655 = vmatprep.subr.mxu0 0.0
        %2656 = vmatpush1.msra.mxu0 %v1015
        %2657 = vmatprep.subr.mxu0 0.0
        %2658 = vmatpush1.msra.mxu0 %v1016
        %2659 = vmatprep.subr.mxu0 0.0
        %2660 = vmatpush1.msra.mxu0 %v1017
        %2661 = vmatprep.subr.mxu0 0.0
        %2662 = vmatpush1.msra.mxu0 %v1018
        %2663 = vmatprep.subr.mxu0 0.0
        %2664 = vmatpush1.msra.mxu0 %v1019
        %2665 = vmatprep.subr.mxu0 0.0
        %2666 = vmatpush1.msra.mxu0 %v1020
        %2667 = vmatprep.subr.mxu0 0.0
        %2668 = vmatpush1.msra.mxu0 %v1021
        %2669 = vmatprep.subr.mxu0 0.0
        %2670 = vmatpush1.msra.mxu0 %v1022
        %2671 = vmatprep.subr.mxu0 0.0
        %2672 = vmatpush1.msra.mxu0 0.0
        %2673 = vmatprep.subr.mxu0 0.0
        %2674 = vmatpush1.msra.mxu0 0.0
        %2675 = vmatprep.subr.mxu0 0.0
        %2676 = vmatpush1.msra.mxu0 0.0
        %2677 = vmatprep.subr.mxu0 0.0
        %2678 = vmatpush1.msra.mxu0 0.0
        %2679 = vmatprep.subr.mxu0 0.0
        %2680 = vmatpush1.msra.mxu0 0.0
        %2681 = vmatprep.subr.mxu0 0.0
        %2682 = vmatpush1.msra.mxu0 0.0
        %2683 = vmatprep.subr.mxu0 0.0
        %2684 = vmatpush1.msra.mxu0 0.0
        %2685 = vmatprep.subr.mxu0 0.0
        %2686 = vmatpush1.msra.mxu0 0.0
        %2687 = vmatprep.subr.mxu0 0.0
        %2688 = vmatpush1.msra.mxu0 0.0
        %2689 = vmatprep.subr.mxu0 0.0
        %2690 = vmatpush1.msra.mxu0 0.0
        %2691 = vmatprep.subr.mxu0 0.0
        %2692 = vmatpush1.msra.mxu0 0.0
        %2693 = vmatprep.subr.mxu0 0.0
        %2694 = vmatpush1.msra.mxu0 0.0
        %2695 = vmatprep.subr.mxu0 0.0
        %2696 = vmatpush1.msra.mxu0 0.0
        %2697 = vmatprep.subr.mxu0 0.0
        %2698 = vmatpush1.msra.mxu0 0.0
        %2699 = vmatprep.subr.mxu0 0.0
        %2700 = vmatpush1.msra.mxu0 0.0
        %2701 = vmatprep.subr.mxu0 0.0
        %2702 = vmatpush1.msra.mxu0 0.0
        %2703 = vmatprep.mubr.f32.mxu0 0.0
        %2704 = vmatmul.mubr.f32.gmra.mrb[0].mxu0 %v2638
        %v2705 = vpop.f32.mrb[0].mxu0
        %v2706 = vadd.f32 0.0, %v2705
        %v2707 = vpop.f32.mrb[0].mxu0
        %2708 = vdwg.mxu0
        %v2709 = vmax.f32 %v2626, %v2706
        %v2710 = vsub.f32 %v2626, %v2709
        %v2711 = vmul.f32 %v2710, 1.442695
        %v2712 = vpow.pop %v2711
        %v2713 = vsub.f32 %v2706, %v2709
        %v2714 = vmul.f32 %v2713, 1.442695
        %v2715 = vpow.pop %v2714
        %v2716 = vmul.f32 %v2634, %v2712
        %v2717 = vadd.f32 %v2716, %v2715
        %v2718 = vmul.f32 %v2637, %v2712
        %v2719 = vmul.f32 %v2715, %v1753
        %v2720 = vadd.f32 %v2718, %v2719
        %v2721 = vrcp.pop %v2717
        %v2722 = vmul.f32 %v2720, %v2721
        %v2723 = vadd.f32 %v2401, %v2722
        %v2724 = vmul.f32 %v1758, %v1267
        %2725 = vmatprep.subr.mxu0 0.0
        %2726 = vmatpush1.msra.mxu0 %v1007
        %2727 = vmatprep.subr.mxu0 0.0
        %2728 = vmatpush1.msra.mxu0 %v1008
        %2729 = vmatprep.subr.mxu0 0.0
        %2730 = vmatpush1.msra.mxu0 %v1009
        %2731 = vmatprep.subr.mxu0 0.0
        %2732 = vmatpush1.msra.mxu0 %v1010
        %2733 = vmatprep.subr.mxu0 0.0
        %2734 = vmatpush1.msra.mxu0 %v1011
        %2735 = vmatprep.subr.mxu0 0.0
        %2736 = vmatpush1.msra.mxu0 %v1012
        %2737 = vmatprep.subr.mxu0 0.0
        %2738 = vmatpush1.msra.mxu0 %v1013
        %2739 = vmatprep.subr.mxu0 0.0
        %2740 = vmatpush1.msra.mxu0 %v1014
        %2741 = vmatprep.subr.mxu0 0.0
        %2742 = vmatpush1.msra.mxu0 %v1015
        %2743 = vmatprep.subr.mxu0 0.0
        %2744 = vmatpush1.msra.mxu0 %v1016
        %2745 = vmatprep.subr.mxu0 0.0
        %2746 = vmatpush1.msra.mxu0 %v1017
        %2747 = vmatprep.subr.mxu0 0.0
        %2748 = vmatpush1.msra.mxu0 %v1018
        %2749 = vmatprep.subr.mxu0 0.0
        %2750 = vmatpush1.msra.mxu0 %v1019
        %2751 = vmatprep.subr.mxu0 0.0
        %2752 = vmatpush1.msra.mxu0 %v1020
        %2753 = vmatprep.subr.mxu0 0.0
        %2754 = vmatpush1.msra.mxu0 %v1021
        %2755 = vmatprep.subr.mxu0 0.0
        %2756 = vmatpush1.msra.mxu0 %v1022
        %2757 = vmatprep.subr.mxu0 0.0
        %2758 = vmatpush1.msra.mxu0 0.0
        %2759 = vmatprep.subr.mxu0 0.0
        %2760 = vmatpush1.msra.mxu0 0.0
        %2761 = vmatprep.subr.mxu0 0.0
        %2762 = vmatpush1.msra.mxu0 0.0
        %2763 = vmatprep.subr.mxu0 0.0
        %2764 = vmatpush1.msra.mxu0 0.0
        %2765 = vmatprep.subr.mxu0 0.0
        %2766 = vmatpush1.msra.mxu0 0.0
        %2767 = vmatprep.subr.mxu0 0.0
        %2768 = vmatpush1.msra.mxu0 0.0
        %2769 = vmatprep.subr.mxu0 0.0
        %2770 = vmatpush1.msra.mxu0 0.0
        %2771 = vmatprep.subr.mxu0 0.0
        %2772 = vmatpush1.msra.mxu0 0.0
        %2773 = vmatprep.subr.mxu0 0.0
        %2774 = vmatpush1.msra.mxu0 0.0
        %2775 = vmatprep.subr.mxu0 0.0
        %2776 = vmatpush1.msra.mxu0 0.0
        %2777 = vmatprep.subr.mxu0 0.0
        %2778 = vmatpush1.msra.mxu0 0.0
        %2779 = vmatprep.subr.mxu0 0.0
        %2780 = vmatpush1.msra.mxu0 0.0
        %2781 = vmatprep.subr.mxu0 0.0
        %2782 = vmatpush1.msra.mxu0 0.0
        %2783 = vmatprep.subr.mxu0 0.0
        %2784 = vmatpush1.msra.mxu0 0.0
        %2785 = vmatprep.subr.mxu0 0.0
        %2786 = vmatpush1.msra.mxu0 0.0
        %2787 = vmatprep.subr.mxu0 0.0
        %2788 = vmatpush1.msra.mxu0 0.0
        %2789 = vmatprep.mubr.f32.mxu0 0.0
        %2790 = vmatmul.mubr.f32.gmra.mrb[0].mxu0 %v2724
        %v2791 = vpop.f32.mrb[0].mxu0
        %v2792 = vadd.f32 0.0, %v2791
        %v2793 = vpop.f32.mrb[0].mxu0
        %2794 = vdwg.mxu0
        %v2795 = vmul.f32 %v1758, %v1420
        %2796 = vmatprep.subr.mxu0 0.0
        %2797 = vmatpush1.msra.mxu0 %v1007
        %2798 = vmatprep.subr.mxu0 0.0
        %2799 = vmatpush1.msra.mxu0 %v1008
        %2800 = vmatprep.subr.mxu0 0.0
        %2801 = vmatpush1.msra.mxu0 %v1009
        %2802 = vmatprep.subr.mxu0 0.0
        %2803 = vmatpush1.msra.mxu0 %v1010
        %2804 = vmatprep.subr.mxu0 0.0
        %2805 = vmatpush1.msra.mxu0 %v1011
        %2806 = vmatprep.subr.mxu0 0.0
        %2807 = vmatpush1.msra.mxu0 %v1012
        %2808 = vmatprep.subr.mxu0 0.0
        %2809 = vmatpush1.msra.mxu0 %v1013
        %2810 = vmatprep.subr.mxu0 0.0
        %2811 = vmatpush1.msra.mxu0 %v1014
        %2812 = vmatprep.subr.mxu0 0.0
        %2813 = vmatpush1.msra.mxu0 %v1015
        %2814 = vmatprep.subr.mxu0 0.0
        %2815 = vmatpush1.msra.mxu0 %v1016
        %2816 = vmatprep.subr.mxu0 0.0
        %2817 = vmatpush1.msra.mxu0 %v1017
        %2818 = vmatprep.subr.mxu0 0.0
        %2819 = vmatpush1.msra.mxu0 %v1018
        %2820 = vmatprep.subr.mxu0 0.0
        %2821 = vmatpush1.msra.mxu0 %v1019
        %2822 = vmatprep.subr.mxu0 0.0
        %2823 = vmatpush1.msra.mxu0 %v1020
        %2824 = vmatprep.subr.mxu0 0.0
        %2825 = vmatpush1.msra.mxu0 %v1021
        %2826 = vmatprep.subr.mxu0 0.0
        %2827 = vmatpush1.msra.mxu0 %v1022
        %2828 = vmatprep.subr.mxu0 0.0
        %2829 = vmatpush1.msra.mxu0 0.0
        %2830 = vmatprep.subr.mxu0 0.0
        %2831 = vmatpush1.msra.mxu0 0.0
        %2832 = vmatprep.subr.mxu0 0.0
        %2833 = vmatpush1.msra.mxu0 0.0
        %2834 = vmatprep.subr.mxu0 0.0
        %2835 = vmatpush1.msra.mxu0 0.0
        %2836 = vmatprep.subr.mxu0 0.0
        %2837 = vmatpush1.msra.mxu0 0.0
        %2838 = vmatprep.subr.mxu0 0.0
        %2839 = vmatpush1.msra.mxu0 0.0
        %2840 = vmatprep.subr.mxu0 0.0
        %2841 = vmatpush1.msra.mxu0 0.0
        %2842 = vmatprep.subr.mxu0 0.0
        %2843 = vmatpush1.msra.mxu0 0.0
        %2844 = vmatprep.subr.mxu0 0.0
        %2845 = vmatpush1.msra.mxu0 0.0
        %2846 = vmatprep.subr.mxu0 0.0
        %2847 = vmatpush1.msra.mxu0 0.0
        %2848 = vmatprep.subr.mxu0 0.0
        %2849 = vmatpush1.msra.mxu0 0.0
        %2850 = vmatprep.subr.mxu0 0.0
        %2851 = vmatpush1.msra.mxu0 0.0
        %2852 = vmatprep.subr.mxu0 0.0
        %2853 = vmatpush1.msra.mxu0 0.0
        %2854 = vmatprep.subr.mxu0 0.0
        %2855 = vmatpush1.msra.mxu0 0.0
        %2856 = vmatprep.subr.mxu0 0.0
        %2857 = vmatpush1.msra.mxu0 0.0
        %2858 = vmatprep.subr.mxu0 0.0
        %2859 = vmatpush1.msra.mxu0 0.0
        %2860 = vmatprep.mubr.f32.mxu0 0.0
        %2861 = vmatmul.mubr.f32.gmra.mrb[0].mxu0 %v2795
        %v2862 = vpop.f32.mrb[0].mxu0
        %v2863 = vadd.f32 0.0, %v2862
        %v2864 = vpop.f32.mrb[0].mxu0
        %2865 = vdwg.mxu0
        %v2866 = vmax.f32 %v2792, %v2863
        %v2867 = vsub.f32 %v2792, %v2866
        %v2868 = vmul.f32 %v2867, 1.442695
        %v2869 = vpow.pop %v2868
        %v2870 = vsub.f32 %v2863, %v2866
        %v2871 = vmul.f32 %v2870, 1.442695
        %v2872 = vpow.pop %v2871
        %v2873 = vadd.f32 %v2869, %v2872
        %v2874 = vmul.f32 %v1306, %v2869
        %v2875 = vmul.f32 %v2872, %v1459
        %v2876 = vadd.f32 %v2874, %v2875
        %v2877 = vmul.f32 %v1758, %v1573
        %2878 = vmatprep.subr.mxu0 0.0
        %2879 = vmatpush1.msra.mxu0 %v1007
        %2880 = vmatprep.subr.mxu0 0.0
        %2881 = vmatpush1.msra.mxu0 %v1008
        %2882 = vmatprep.subr.mxu0 0.0
        %2883 = vmatpush1.msra.mxu0 %v1009
        %2884 = vmatprep.subr.mxu0 0.0
        %2885 = vmatpush1.msra.mxu0 %v1010
        %2886 = vmatprep.subr.mxu0 0.0
        %2887 = vmatpush1.msra.mxu0 %v1011
        %2888 = vmatprep.subr.mxu0 0.0
        %2889 = vmatpush1.msra.mxu0 %v1012
        %2890 = vmatprep.subr.mxu0 0.0
        %2891 = vmatpush1.msra.mxu0 %v1013
        %2892 = vmatprep.subr.mxu0 0.0
        %2893 = vmatpush1.msra.mxu0 %v1014
        %2894 = vmatprep.subr.mxu0 0.0
        %2895 = vmatpush1.msra.mxu0 %v1015
        %2896 = vmatprep.subr.mxu0 0.0
        %2897 = vmatpush1.msra.mxu0 %v1016
        %2898 = vmatprep.subr.mxu0 0.0
        %2899 = vmatpush1.msra.mxu0 %v1017
        %2900 = vmatprep.subr.mxu0 0.0
        %2901 = vmatpush1.msra.mxu0 %v1018
        %2902 = vmatprep.subr.mxu0 0.0
        %2903 = vmatpush1.msra.mxu0 %v1019
        %2904 = vmatprep.subr.mxu0 0.0
        %2905 = vmatpush1.msra.mxu0 %v1020
        %2906 = vmatprep.subr.mxu0 0.0
        %2907 = vmatpush1.msra.mxu0 %v1021
        %2908 = vmatprep.subr.mxu0 0.0
        %2909 = vmatpush1.msra.mxu0 %v1022
        %2910 = vmatprep.subr.mxu0 0.0
        %2911 = vmatpush1.msra.mxu0 0.0
        %2912 = vmatprep.subr.mxu0 0.0
        %2913 = vmatpush1.msra.mxu0 0.0
        %2914 = vmatprep.subr.mxu0 0.0
        %2915 = vmatpush1.msra.mxu0 0.0
        %2916 = vmatprep.subr.mxu0 0.0
        %2917 = vmatpush1.msra.mxu0 0.0
        %2918 = vmatprep.subr.mxu0 0.0
        %2919 = vmatpush1.msra.mxu0 0.0
        %2920 = vmatprep.subr.mxu0 0.0
        %2921 = vmatpush1.msra.mxu0 0.0
        %2922 = vmatprep.subr.mxu0 0.0
        %2923 = vmatpush1.msra.mxu0 0.0
        %2924 = vmatprep.subr.mxu0 0.0
        %2925 = vmatpush1.msra.mxu0 0.0
        %2926 = vmatprep.subr.mxu0 0.0
        %2927 = vmatpush1.msra.mxu0 0.0
        %2928 = vmatprep.subr.mxu0 0.0
        %2929 = vmatpush1.msra.mxu0 0.0
        %2930 = vmatprep.subr.mxu0 0.0
        %2931 = vmatpush1.msra.mxu0 0.0
        %2932 = vmatprep.subr.mxu0 0.0
        %2933 = vmatpush1.msra.mxu0 0.0
        %2934 = vmatprep.subr.mxu0 0.0
        %2935 = vmatpush1.msra.mxu0 0.0
        %2936 = vmatprep.subr.mxu0 0.0
        %2937 = vmatpush1.msra.mxu0 0.0
        %2938 = vmatprep.subr.mxu0 0.0
        %2939 = vmatpush1.msra.mxu0 0.0
        %2940 = vmatprep.subr.mxu0 0.0
        %2941 = vmatpush1.msra.mxu0 0.0
        %2942 = vmatprep.mubr.f32.mxu0 0.0
        %2943 = vmatmul.mubr.f32.gmra.mrb[0].mxu0 %v2877
        %v2944 = vpop.f32.mrb[0].mxu0
        %v2945 = vadd.f32 0.0, %v2944
        %v2946 = vpop.f32.mrb[0].mxu0
        %2947 = vdwg.mxu0
        %v2948 = vmax.f32 %v2866, %v2945
        %v2949 = vsub.f32 %v2866, %v2948
        %v2950 = vmul.f32 %v2949, 1.442695
        %v2951 = vpow.pop %v2950
        %v2952 = vsub.f32 %v2945, %v2948
        %v2953 = vmul.f32 %v2952, 1.442695
        %v2954 = vpow.pop %v2953
        %v2955 = vmul.f32 %v2873, %v2951
        %v2956 = vadd.f32 %v2955, %v2954
        %v2957 = vmul.f32 %v2876, %v2951
        %v2958 = vmul.f32 %v2954, %v1612
        %v2959 = vadd.f32 %v2957, %v2958
        %v2960 = vmul.f32 %v1758, %v1714
        %2961 = vmatprep.subr.mxu0 0.0
        %2962 = vmatpush1.msra.mxu0 %v1007
        %2963 = vmatprep.subr.mxu0 0.0
        %2964 = vmatpush1.msra.mxu0 %v1008
        %2965 = vmatprep.subr.mxu0 0.0
        %2966 = vmatpush1.msra.mxu0 %v1009
        %2967 = vmatprep.subr.mxu0 0.0
        %2968 = vmatpush1.msra.mxu0 %v1010
        %2969 = vmatprep.subr.mxu0 0.0
        %2970 = vmatpush1.msra.mxu0 %v1011
        %2971 = vmatprep.subr.mxu0 0.0
        %2972 = vmatpush1.msra.mxu0 %v1012
        %2973 = vmatprep.subr.mxu0 0.0
        %2974 = vmatpush1.msra.mxu0 %v1013
        %2975 = vmatprep.subr.mxu0 0.0
        %2976 = vmatpush1.msra.mxu0 %v1014
        %2977 = vmatprep.subr.mxu0 0.0
        %2978 = vmatpush1.msra.mxu0 %v1015
        %2979 = vmatprep.subr.mxu0 0.0
        %2980 = vmatpush1.msra.mxu0 %v1016
        %2981 = vmatprep.subr.mxu0 0.0
        %2982 = vmatpush1.msra.mxu0 %v1017
        %2983 = vmatprep.subr.mxu0 0.0
        %2984 = vmatpush1.msra.mxu0 %v1018
        %2985 = vmatprep.subr.mxu0 0.0
        %2986 = vmatpush1.msra.mxu0 %v1019
        %2987 = vmatprep.subr.mxu0 0.0
        %2988 = vmatpush1.msra.mxu0 %v1020
        %2989 = vmatprep.subr.mxu0 0.0
        %2990 = vmatpush1.msra.mxu0 %v1021
        %2991 = vmatprep.subr.mxu0 0.0
        %2992 = vmatpush1.msra.mxu0 %v1022
        %2993 = vmatprep.subr.mxu0 0.0
        %2994 = vmatpush1.msra.mxu0 0.0
        %2995 = vmatprep.subr.mxu0 0.0
        %2996 = vmatpush1.msra.mxu0 0.0
        %2997 = vmatprep.subr.mxu0 0.0
        %2998 = vmatpush1.msra.mxu0 0.0
        %2999 = vmatprep.subr.mxu0 0.0
        %3000 = vmatpush1.msra.mxu0 0.0
        %3001 = vmatprep.subr.mxu0 0.0
        %3002 = vmatpush1.msra.mxu0 0.0
        %3003 = vmatprep.subr.mxu0 0.0
        %3004 = vmatpush1.msra.mxu0 0.0
        %3005 = vmatprep.subr.mxu0 0.0
        %3006 = vmatpush1.msra.mxu0 0.0
        %3007 = vmatprep.subr.mxu0 0.0
        %3008 = vmatpush1.msra.mxu0 0.0
        %3009 = vmatprep.subr.mxu0 0.0
        %3010 = vmatpush1.msra.mxu0 0.0
        %3011 = vmatprep.subr.mxu0 0.0
        %3012 = vmatpush1.msra.mxu0 0.0
        %3013 = vmatprep.subr.mxu0 0.0
        %3014 = vmatpush1.msra.mxu0 0.0
        %3015 = vmatprep.subr.mxu0 0.0
        %3016 = vmatpush1.msra.mxu0 0.0
        %3017 = vmatprep.subr.mxu0 0.0
        %3018 = vmatpush1.msra.mxu0 0.0
        %3019 = vmatprep.subr.mxu0 0.0
        %3020 = vmatpush1.msra.mxu0 0.0
        %3021 = vmatprep.subr.mxu0 0.0
        %3022 = vmatpush1.msra.mxu0 0.0
        %3023 = vmatprep.subr.mxu0 0.0
        %3024 = vmatpush1.msra.mxu0 0.0
        %3025 = vmatprep.mubr.f32.mxu0 0.0
        %3026 = vmatmul.mubr.f32.gmra.mrb[0].mxu0 %v2960
        %v3027 = vpop.f32.mrb[0].mxu0
        %v3028 = vadd.f32 0.0, %v3027
        %v3029 = vpop.f32.mrb[0].mxu0
        %3030 = vdwg.mxu0
        %v3031 = vmax.f32 %v2948, %v3028
        %v3032 = vsub.f32 %v2948, %v3031
        %v3033 = vmul.f32 %v3032, 1.442695
        %v3034 = vpow.pop %v3033
        %v3035 = vsub.f32 %v3028, %v3031
        %v3036 = vmul.f32 %v3035, 1.442695
        %v3037 = vpow.pop %v3036
        %v3038 = vmul.f32 %v2956, %v3034
        %v3039 = vadd.f32 %v3038, %v3037
        %v3040 = vmul.f32 %v2959, %v3034
        %v3041 = vmul.f32 %v3037, %v1753
        %v3042 = vadd.f32 %v3040, %v3041
        %v3043 = vrcp.pop %v3039
        %v3044 = vmul.f32 %v3042, %v3043
        %v3045 = vadd.f32 %v2723, %v3044
        %v3046 = vmul.f32 %v3045, 0.25
        %v3047 = vpack.c.bf16 %v3046, %v3046
        %v3048 = vld [vmem:[%s15] sm:$0xf]
        %v3049 = vld [vmem:[%s15 + $0x4] sm:$0xf]
        %v3050 = vld [vmem:[%s15 + $0x8] sm:$0xf]
        %v3051 = vld [vmem:[%s15 + $0xc] sm:$0xf]
        %v3052 = vld [vmem:[%s15 + $0x10] sm:$0xf]
        %v3053 = vld [vmem:[%s15 + $0x14] sm:$0xf]
        %v3054 = vld [vmem:[%s15 + $0x18] sm:$0xf]
        %v3055 = vld [vmem:[%s15 + $0x1c] sm:$0xf]
        %v3056 = vld [vmem:[%s15 + $0x20] sm:$0xf]
        %v3057 = vld [vmem:[%s15 + $0x24] sm:$0xf]
        %v3058 = vld [vmem:[%s15 + $0x28] sm:$0xf]
        %v3059 = vld [vmem:[%s15 + $0x2c] sm:$0xf]
        %v3060 = vld [vmem:[%s15 + $0x30] sm:$0xf]
        %v3061 = vld [vmem:[%s15 + $0x34] sm:$0xf]
        %v3062 = vld [vmem:[%s15 + $0x38] sm:$0xf]
        %v3063 = vld [vmem:[%s15 + $0x3c] sm:$0xf]
        %v3064 = vld [vmem:[%s16] sm:$0x1]
        %v3066 = vlaneseq
        %v3067 = vshrl.u32 %v3066, 7
        %v3068 = vsub.s32 0, %v3067
        %v3069 = vrot.slane %v3064, %v3068
        %v3087 = vunpack.c.l.b16 %v3048
        %v3088 = vunpack.c.l.b16 %v3049
        %v3089 = vunpack.c.l.b16 %v3050
        %v3090 = vunpack.c.l.b16 %v3051
        %v3091 = vunpack.c.l.b16 %v3052
        %v3092 = vunpack.c.l.b16 %v3053
        %v3093 = vunpack.c.l.b16 %v3054
        %v3094 = vunpack.c.l.b16 %v3055
        %v3095 = vunpack.c.l.b16 %v3056
        %v3096 = vunpack.c.l.b16 %v3057
        %v3097 = vunpack.c.l.b16 %v3058
        %v3098 = vunpack.c.l.b16 %v3059
        %v3099 = vunpack.c.l.b16 %v3060
        %v3100 = vunpack.c.l.b16 %v3061
        %v3101 = vunpack.c.l.b16 %v3062
        %v3102 = vunpack.c.l.b16 %v3063
        %v3103 = vpack.c.b16 %v3088, %v3087
        %v3104 = vpack.c.b16 %v3090, %v3089
        %v3105 = vpack.c.b16 %v3092, %v3091
        %v3106 = vpack.c.b16 %v3094, %v3093
        %v3107 = vpack.c.b16 %v3096, %v3095
        %v3108 = vpack.c.b16 %v3098, %v3097
        %v3109 = vpack.c.b16 %v3100, %v3099
        %v3110 = vpack.c.b16 %v3102, %v3101
        %3119 = vmatprep.subr.bf16.mxu0 0
        %3120 = vmatpush1.bf16.msra.mxu0 %v3103
        %3121 = vmatprep.subr.bf16.mxu0 0
        %3122 = vmatpush1.bf16.msra.mxu0 %v3104
        %3123 = vmatprep.subr.bf16.mxu0 0
        %3124 = vmatpush1.bf16.msra.mxu0 %v3105
        %3125 = vmatprep.subr.bf16.mxu0 0
        %3126 = vmatpush1.bf16.msra.mxu0 %v3106
        %3127 = vmatprep.subr.bf16.mxu0 0
        %3128 = vmatpush1.bf16.msra.mxu0 %v3107
        %3129 = vmatprep.subr.bf16.mxu0 0
        %3130 = vmatpush1.bf16.msra.mxu0 %v3108
        %3131 = vmatprep.subr.bf16.mxu0 0
        %3132 = vmatpush1.bf16.msra.mxu0 %v3109
        %3133 = vmatprep.subr.bf16.mxu0 0
        %3134 = vmatpush1.bf16.msra.mxu0 %v3110
        %3135 = vmatprep.subr.bf16.mxu0 0
        %3136 = vmatpush1.bf16.msra.mxu0 0
        %3137 = vmatprep.subr.bf16.mxu0 0
        %3138 = vmatpush1.bf16.msra.mxu0 0
        %3139 = vmatprep.subr.bf16.mxu0 0
        %3140 = vmatpush1.bf16.msra.mxu0 0
        %3141 = vmatprep.subr.bf16.mxu0 0
        %3142 = vmatpush1.bf16.msra.mxu0 0
        %3143 = vmatprep.subr.bf16.mxu0 0
        %3144 = vmatpush1.bf16.msra.mxu0 0
        %3145 = vmatprep.subr.bf16.mxu0 0
        %3146 = vmatpush1.bf16.msra.mxu0 0
        %3147 = vmatprep.subr.bf16.mxu0 0
        %3148 = vmatpush1.bf16.msra.mxu0 0
        %3149 = vmatprep.subr.bf16.mxu0 0
        %3150 = vmatpush1.bf16.msra.mxu0 0
        %3151 = vmatprep.mubr.bf16.mxu0 0
        %3152 = vmatmul.mubr.bf16.gmra.mrb[0].mxu0 %v3047
        %v3153 = vpop.f32.mrb[0].mxu0
        %v3154 = vadd.f32 %v3069, %v3153
        %v3155 = vpop.f32.mrb[0].mxu0
        %v3156 = vpop.f32.mrb[0].mxu0
        %v3157 = vpop.f32.mrb[0].mxu0
        %3158 = vdwg.mxu0
        %3159 = vadd.xlane.f32.xlu0 %v3154
        %v3160 = vpop.xlane.xlu0 %3159
        %v3161 = vrcp.pop 128.0
        %v3162 = vmul.f32 %v3160, %v3161
        %v3163 = vsub.f32 %v3154, %v3162
        %v3164 = vmul.f32 %v3163, %v3163
        %3165 = vadd.xlane.f32.xlu0 %v3164
        %v3166 = vpop.xlane.xlu0 %3165
        %v3167 = vmul.f32 %v3166, %v3161
        %v3168 = vadd.f32 %v3167, 1e-05
        %v3169 = vrsqrt.pop %v3168
        %v3170 = vmul.f32 %v3163, %v3169
        %v3171 = vld [vmem:[%s17] sm:$0x1]
        %v3173 = vlaneseq
        %v3174 = vshrl.u32 %v3173, 7
        %v3175 = vsub.s32 0, %v3174
        %v3176 = vrot.slane %v3171, %v3175
        %v3178 = vmul.f32 %v3170, %v3176
        %v3179 = vld [vmem:[%s18] sm:$0x1]
        %v3181 = vlaneseq
        %v3182 = vshrl.u32 %v3181, 7
        %v3183 = vsub.s32 0, %v3182
        %v3184 = vrot.slane %v3179, %v3183
        %v3186 = vadd.f32 %v3178, %v3184
        %v3187 = vpack.c.bf16 %v3186, %v3186
        %v3188 = vld [vmem:[#allocation23] sm:$0xf]
        %v3189 = vld [vmem:[#allocation23 + $0x4] sm:$0xf]
        %v3190 = vld [vmem:[#allocation23 + $0x8] sm:$0xf]
        %v3191 = vld [vmem:[#allocation23 + $0xc] sm:$0xf]
        %v3192 = vld [vmem:[#allocation23 + $0x10] sm:$0xf]
        %v3193 = vld [vmem:[#allocation23 + $0x14] sm:$0xf]
        %v3194 = vld [vmem:[#allocation23 + $0x18] sm:$0xf]
        %v3195 = vld [vmem:[#allocation23 + $0x1c] sm:$0xf]
        %v3196 = vld [vmem:[#allocation23 + $0x20] sm:$0xf]
        %v3197 = vld [vmem:[#allocation23 + $0x24] sm:$0xf]
        %v3198 = vld [vmem:[#allocation23 + $0x28] sm:$0xf]
        %v3199 = vld [vmem:[#allocation23 + $0x2c] sm:$0xf]
        %v3200 = vld [vmem:[#allocation23 + $0x30] sm:$0xf]
        %v3201 = vld [vmem:[#allocation23 + $0x34] sm:$0xf]
        %v3202 = vld [vmem:[#allocation23 + $0x38] sm:$0xf]
        %v3203 = vld [vmem:[#allocation23 + $0x3c] sm:$0xf]
        %v3204 = vld [vmem:[%s20] sm:$0x1]
        %v3206 = vlaneseq
        %v3207 = vshrl.u32 %v3206, 7
        %v3208 = vsub.s32 0, %v3207
        %v3209 = vrot.slane %v3204, %v3208
        %v3227 = vunpack.c.l.b16 %v3188
        %v3228 = vunpack.c.l.b16 %v3189
        %v3229 = vunpack.c.l.b16 %v3190
        %v3230 = vunpack.c.l.b16 %v3191
        %v3231 = vunpack.c.l.b16 %v3192
        %v3232 = vunpack.c.l.b16 %v3193
        %v3233 = vunpack.c.l.b16 %v3194
        %v3234 = vunpack.c.l.b16 %v3195
        %v3235 = vunpack.c.l.b16 %v3196
        %v3236 = vunpack.c.l.b16 %v3197
        %v3237 = vunpack.c.l.b16 %v3198
        %v3238 = vunpack.c.l.b16 %v3199
        %v3239 = vunpack.c.l.b16 %v3200
        %v3240 = vunpack.c.l.b16 %v3201
        %v3241 = vunpack.c.l.b16 %v3202
        %v3242 = vunpack.c.l.b16 %v3203
        %v3243 = vpack.c.b16 %v3228, %v3227
        %v3244 = vpack.c.b16 %v3230, %v3229
        %v3245 = vpack.c.b16 %v3232, %v3231
        %v3246 = vpack.c.b16 %v3234, %v3233
        %v3247 = vpack.c.b16 %v3236, %v3235
        %v3248 = vpack.c.b16 %v3238, %v3237
        %v3249 = vpack.c.b16 %v3240, %v3239
        %v3250 = vpack.c.b16 %v3242, %v3241
        %3259 = vmatprep.subr.bf16.mxu0 0
        %3260 = vmatpush1.bf16.msra.mxu0 %v3243
        %3261 = vmatprep.subr.bf16.mxu0 0
        %3262 = vmatpush1.bf16.msra.mxu0 %v3244
        %3263 = vmatprep.subr.bf16.mxu0 0
        %3264 = vmatpush1.bf16.msra.mxu0 %v3245
        %3265 = vmatprep.subr.bf16.mxu0 0
        %3266 = vmatpush1.bf16.msra.mxu0 %v3246
        %3267 = vmatprep.subr.bf16.mxu0 0
        %3268 = vmatpush1.bf16.msra.mxu0 %v3247
        %3269 = vmatprep.subr.bf16.mxu0 0
        %3270 = vmatpush1.bf16.msra.mxu0 %v3248
        %3271 = vmatprep.subr.bf16.mxu0 0
        %3272 = vmatpush1.bf16.msra.mxu0 %v3249
        %3273 = vmatprep.subr.bf16.mxu0 0
        %3274 = vmatpush1.bf16.msra.mxu0 %v3250
        %3275 = vmatprep.subr.bf16.mxu0 0
        %3276 = vmatpush1.bf16.msra.mxu0 0
        %3277 = vmatprep.subr.bf16.mxu0 0
        %3278 = vmatpush1.bf16.msra.mxu0 0
        %3279 = vmatprep.subr.bf16.mxu0 0
        %3280 = vmatpush1.bf16.msra.mxu0 0
        %3281 = vmatprep.subr.bf16.mxu0 0
        %3282 = vmatpush1.bf16.msra.mxu0 0
        %3283 = vmatprep.subr.bf16.mxu0 0
        %3284 = vmatpush1.bf16.msra.mxu0 0
        %3285 = vmatprep.subr.bf16.mxu0 0
        %3286 = vmatpush1.bf16.msra.mxu0 0
        %3287 = vmatprep.subr.bf16.mxu0 0
        %3288 = vmatpush1.bf16.msra.mxu0 0
        %3289 = vmatprep.subr.bf16.mxu0 0
        %3290 = vmatpush1.bf16.msra.mxu0 0
        %3291 = vmatprep.mubr.bf16.mxu0 0
        %3292 = vmatmul.mubr.bf16.gmra.mrb[0].mxu0 %v3187
        %v3293 = vpop.f32.mrb[0].mxu0
        %v3294 = vadd.f32 %v3209, %v3293
        %v3295 = vpop.f32.mrb[0].mxu0
        %v3296 = vpop.f32.mrb[0].mxu0
        %v3297 = vpop.f32.mrb[0].mxu0
        %3298 = vdwg.mxu0
        %v3299 = vmax.f32 %v3294, 0.0
        %v3300 = vpack.c.bf16 %v3299, %v3299
        %v3301 = vld [vmem:[#allocation25] sm:$0xf]
        %v3302 = vld [vmem:[#allocation25 + $0x4] sm:$0xf]
        %v3303 = vld [vmem:[#allocation25 + $0x8] sm:$0xf]
        %v3304 = vld [vmem:[#allocation25 + $0xc] sm:$0xf]
        %v3305 = vld [vmem:[#allocation25 + $0x10] sm:$0xf]
        %v3306 = vld [vmem:[#allocation25 + $0x14] sm:$0xf]
        %v3307 = vld [vmem:[#allocation25 + $0x18] sm:$0xf]
        %v3308 = vld [vmem:[#allocation25 + $0x1c] sm:$0xf]
        %v3309 = vld [vmem:[#allocation25 + $0x20] sm:$0xf]
        %v3310 = vld [vmem:[#allocation25 + $0x24] sm:$0xf]
        %v3311 = vld [vmem:[#allocation25 + $0x28] sm:$0xf]
        %v3312 = vld [vmem:[#allocation25 + $0x2c] sm:$0xf]
        %v3313 = vld [vmem:[#allocation25 + $0x30] sm:$0xf]
        %v3314 = vld [vmem:[#allocation25 + $0x34] sm:$0xf]
        %v3315 = vld [vmem:[#allocation25 + $0x38] sm:$0xf]
        %v3316 = vld [vmem:[#allocation25 + $0x3c] sm:$0xf]
        %v3317 = vld [vmem:[%s22] sm:$0x1]
        %v3319 = vlaneseq
        %v3320 = vshrl.u32 %v3319, 7
        %v3321 = vsub.s32 0, %v3320
        %v3322 = vrot.slane %v3317, %v3321
        %v3340 = vunpack.c.l.b16 %v3301
        %v3341 = vunpack.c.l.b16 %v3302
        %v3342 = vunpack.c.l.b16 %v3303
        %v3343 = vunpack.c.l.b16 %v3304
        %v3344 = vunpack.c.l.b16 %v3305
        %v3345 = vunpack.c.l.b16 %v3306
        %v3346 = vunpack.c.l.b16 %v3307
        %v3347 = vunpack.c.l.b16 %v3308
        %v3348 = vunpack.c.l.b16 %v3309
        %v3349 = vunpack.c.l.b16 %v3310
        %v3350 = vunpack.c.l.b16 %v3311
        %v3351 = vunpack.c.l.b16 %v3312
        %v3352 = vunpack.c.l.b16 %v3313
        %v3353 = vunpack.c.l.b16 %v3314
        %v3354 = vunpack.c.l.b16 %v3315
        %v3355 = vunpack.c.l.b16 %v3316
        %v3356 = vpack.c.b16 %v3341, %v3340
        %v3357 = vpack.c.b16 %v3343, %v3342
        %v3358 = vpack.c.b16 %v3345, %v3344
        %v3359 = vpack.c.b16 %v3347, %v3346
        %v3360 = vpack.c.b16 %v3349, %v3348
        %v3361 = vpack.c.b16 %v3351, %v3350
        %v3362 = vpack.c.b16 %v3353, %v3352
        %v3363 = vpack.c.b16 %v3355, %v3354
        %3372 = vmatprep.subr.bf16.mxu0 0
        %3373 = vmatpush1.bf16.msra.mxu0 %v3356
        %3374 = vmatprep.subr.bf16.mxu0 0
        %3375 = vmatpush1.bf16.msra.mxu0 %v3357
        %3376 = vmatprep.subr.bf16.mxu0 0
        %3377 = vmatpush1.bf16.msra.mxu0 %v3358
        %3378 = vmatprep.subr.bf16.mxu0 0
        %3379 = vmatpush1.bf16.msra.mxu0 %v3359
        %3380 = vmatprep.subr.bf16.mxu0 0
        %3381 = vmatpush1.bf16.msra.mxu0 %v3360
        %3382 = vmatprep.subr.bf16.mxu0 0
        %3383 = vmatpush1.bf16.msra.mxu0 %v3361
        %3384 = vmatprep.subr.bf16.mxu0 0
        %3385 = vmatpush1.bf16.msra.mxu0 %v3362
        %3386 = vmatprep.subr.bf16.mxu0 0
        %3387 = vmatpush1.bf16.msra.mxu0 %v3363
        %3388 = vmatprep.subr.bf16.mxu0 0
        %3389 = vmatpush1.bf16.msra.mxu0 0
        %3390 = vmatprep.subr.bf16.mxu0 0
        %3391 = vmatpush1.bf16.msra.mxu0 0
        %3392 = vmatprep.subr.bf16.mxu0 0
        %3393 = vmatpush1.bf16.msra.mxu0 0
        %3394 = vmatprep.subr.bf16.mxu0 0
        %3395 = vmatpush1.bf16.msra.mxu0 0
        %3396 = vmatprep.subr.bf16.mxu0 0
        %3397 = vmatpush1.bf16.msra.mxu0 0
        %3398 = vmatprep.subr.bf16.mxu0 0
        %3399 = vmatpush1.bf16.msra.mxu0 0
        %3400 = vmatprep.subr.bf16.mxu0 0
        %3401 = vmatpush1.bf16.msra.mxu0 0
        %3402 = vmatprep.subr.bf16.mxu0 0
        %3403 = vmatpush1.bf16.msra.mxu0 0
        %3404 = vmatprep.mubr.bf16.mxu0 0
        %3405 = vmatmul.mubr.bf16.gmra.mrb[0].mxu0 %v3300
        %v3406 = vpop.f32.mrb[0].mxu0
        %v3407 = vadd.f32 %v3322, %v3406
        %v3408 = vpop.f32.mrb[0].mxu0
        %v3409 = vpop.f32.mrb[0].mxu0
        %v3410 = vpop.f32.mrb[0].mxu0
        %3411 = vdwg.mxu0
        %3412 = vst [vmem:[%s964] sm:$0xff] %v3407
        %s3413 = sand.u32 %s560, 1
        %s3414 = scalar_lea.sflag [#allocation4], %s3413
        %s3415 = sand.u32 %s560, 1
        %s3416 = smul.addr %s3415, 8
        %s3417 = scalar_lea.vmem [#allocation26], %s3416
        // Predicated region
        $region173: #{tpu_custom_call.1} parent=111 // pred_check
          %p3418 = pneg %p570
        $region174: #{tpu_custom_call.1} parent=111 // pred_check_branch
          %3420 = sbr.rel (%p3418) target = $region176
        $region175: #{tpu_custom_call.1} parent=111 // pred_region
          %s3422 = ssub.s32 128, 128
          %3423 = vsyncadd %s3414, %s3422
          %s3424 = smul.addr %s49, 128
          %s3425 = scalar_lea.hbm %s23, %s3424
          %s3427 = sshll.u32 %s3417, 4
          %s3428 = int_to_ptr.vmem [resolvable:$true] %s3427
          %3430 = dma.vmem_to_hbm [thread:$0]  %s3428, 128, %s3425, %s3414
        $region176: #{tpu_custom_call.1} parent=111 // pred_fallthru
          _
      $region112: #{tpu_custom_call.1} parent=5 // pred_fallthru
        _
      %p3431 = scmp.le.s32.totalorder 2, %s44
      // Predicated region
      $region177: #{tpu_custom_call.1} parent=5 // pred_check
        %p3432 = pneg %p3431
      $region178: #{tpu_custom_call.1} parent=5 // pred_check_branch
        %3434 = sbr.rel (%p3432) target = $region180
      $region179: #{tpu_custom_call.1} parent=5 // pred_region
        %s3435 = ssub.s32 %s44, 2
        // Predicated region
        $region181: #{tpu_custom_call.1} parent=179 // pred_check
          %p3436 = pneg %p576
        $region182: #{tpu_custom_call.1} parent=179 // pred_check_branch
          %3438 = sbr.rel (%p3436) target = $region184
        $region183: #{tpu_custom_call.1} parent=179 // pred_region
          %s3439 = sand.u32 %s561, 1
          %s3440 = scalar_lea.sflag [#allocation4], %s3439
          %s3441 = sand.u32 %s561, 1
          %s3442 = smul.addr %s3441, 8
          %s3443 = scalar_lea.vmem [#allocation26], %s3442
          %3444 = dma.done %s3440, 128
        $region184: #{tpu_custom_call.1} parent=179 // pred_fallthru
          _
      $region180: #{tpu_custom_call.1} parent=5 // pred_fallthru
        _
    $region6: #{tpu_custom_call.1} parent=1 // loop_footer
      %s48 = sadd.s32 1, %s44
    $region7: #{tpu_custom_call.1} parent=1 // loop_footer_branch
      %43 = sbr.rel target = $region3
    $region8: #{tpu_custom_call.1} parent=1 // loop_exit
      _
    %3445 = vsyncpa [#allocation3], 1
    %s3446 = scalar_lea.sflag [#allocation3], 1
    %3447 = vsyncpa %s3446, 1
    %3448 = vsyncpa [#allocation6], 1
    %s3449 = scalar_lea.sflag [#allocation6], 1
    %3450 = vsyncpa %s3449, 1
    %3451 = vsyncpa [#allocation9], 1
    %3452 = vsyncpa [#allocation12], 1
    %3453 = vsyncpa [#allocation15], 1
    %3454 = vsyncpa [#allocation18], 1
    %3455 = vsyncpa [#allocation21], 1
    %3456 = vsyncpa [#allocation24], 1
    %3457 = vsyncpa [#allocation4], 1
    %s3458 = scalar_lea.sflag [#allocation4], 1
    %3459 = vsyncpa %s3458, 1

</llo_original>
